<compile_context>
chip_gen: v7x
topology: tpu7x:2x2x1
jax: 0.10.0
libtpu: 0.0.40
codegen_flags: <defaults>
</compile_context>

<pallas_src>
import jax
import jax.numpy as jnp
from jax.experimental import pallas as pl
from jax.experimental.pallas import tpu as pltpu


# ----------------------------- fused MLP kernel -----------------------------

def _fused_mlp_kernel(x_ref, m0_ref, w1_ref, b1_ref, m1_ref, w2_ref, b2_ref,
                      w3_ref, b3_ref, o_ref):
    """dropout -> fc1+relu -> dropout -> fc2+relu -> fc3 (one (i,j) tile)."""
    wdt = w1_ref.dtype

    # dropout(fea): mask already holds {0, 1/(1-p)}
    xd = (x_ref[...] * m0_ref[...]).astype(wdt)

    # fc1 + ReLU   (f32 accumulation on the MXU)
    h1 = jnp.dot(xd, w1_ref[...], preferred_element_type=jnp.float32)
    h1 = jnp.maximum(h1 + b1_ref[...], 0.0)

    # dropout(fc1_out)
    h1d = (h1 * m1_ref[...]).astype(wdt)

    # fc2 + ReLU
    h2 = jnp.dot(h1d, w2_ref[...], preferred_element_type=jnp.float32)
    h2 = jnp.maximum(h2 + b2_ref[...], 0.0)

    # fc3 — only this layer is large; tiled over the column grid axis
    out = jnp.dot(h2.astype(w3_ref.dtype), w3_ref[...],
                  preferred_element_type=jnp.float32)
    o_ref[...] = (out + b3_ref[...]).astype(o_ref.dtype)


# ------------------------------- module glue --------------------------------

def init_params(key, cls_num):
    """Matches the PyTorch init: Linear weights ~ N(0, 0.02), biases = 0.
    Weights are stored (in_features, out_features) so the kernel computes
    y = x @ W + b directly."""
    k1, k2, k3 = jax.random.split(key, 3)
    return {
        "w1": jax.random.normal(k1, (512, 1024), jnp.float32) * 0.02,
        "b1": jnp.zeros((1024,), jnp.float32),
        "w2": jax.random.normal(k2, (1024, 1024), jnp.float32) * 0.02,
        "b2": jnp.zeros((1024,), jnp.float32),
        "w3": jax.random.normal(k3, (1024, cls_num), jnp.float32) * 0.02,
        "b3": jnp.zeros((cls_num,), jnp.float32),
    }


def make_dropout_masks(rng, batch, in_dim, hidden, p):
    """nn.Dropout training-mode masks, pre-scaled by 1/(1-p)."""
    k0, k1 = jax.random.split(rng)
    scale = jnp.float32(1.0 / (1.0 - p))
    m0 = jax.random.bernoulli(k0, 1.0 - p, (batch, in_dim)).astype(jnp.float32) * scale
    m1 = jax.random.bernoulli(k1, 1.0 - p, (batch, hidden)).astype(jnp.float32) * scale
    return m0, m1


def fc_layer_resnet18_forward(params, fea, *, p=0.5, training=True,
                              dropout_rng=None, dropout_masks=None,
                              tm=256, tn=1024, weights_dtype=jnp.bfloat16):
    """Forward pass of fc_layer_resnet18 as one fused Pallas kernel."""
    B = fea.shape[0]
    x = fea.reshape(B, -1).astype(jnp.float32)       # fea.view(fea.size(0), -1)
    K = x.shape[1]                                    # 512
    H = params["w1"].shape[1]                         # 1024
    N = params["w3"].shape[1]                         # cls_num

    if training and p > 0.0:
        if dropout_masks is not None:
            m0, m1 = dropout_masks
        else:
            if dropout_rng is None:
                dropout_rng = jax.random.PRNGKey(0)
            m0, m1 = make_dropout_masks(dropout_rng, B, K, H, p)
    else:  # eval: identity dropout
        m0 = jnp.ones((B, K), jnp.float32)
        m1 = jnp.ones((B, H), jnp.float32)

    # Stream weights in (by default) bf16; biases / activations stay f32.
    w1 = params["w1"].astype(weights_dtype)
    w2 = params["w2"].astype(weights_dtype)
    w3 = params["w3"].astype(weights_dtype)
    b1 = params["b1"].reshape(1, H).astype(jnp.float32)
    b2 = params["b2"].reshape(1, H).astype(jnp.float32)
    b3 = params["b3"].reshape(1, N).astype(jnp.float32)

    # Batch tile: full B for typical batches (one tile); sublane-aligned cap
    # for very large batches so VMEM residency stays bounded.
    if B <= tm:
        tm = B
    else:
        tm = max(8, (tm // 8) * 8)

    # fc3 output-column tile: full N when small, else lane-aligned (mult of 128)
    if N <= tn:
        tn = N
    else:
        tn = max(128, (tn // 128) * 128)

    const2d = lambda i, j: (0, 0)   # VMEM-resident across all grid steps
    by_row = lambda i, j: (i, 0)    # changes only with the batch tile
    by_col = lambda i, j: (0, j)    # streamed per fc3 column tile
    by_both = lambda i, j: (i, j)

    return pl.pallas_call(
        _fused_mlp_kernel,
        out_shape=jax.ShapeDtypeStruct((B, N), jnp.float32),
        grid=(pl.cdiv(B, tm), pl.cdiv(N, tn)),        # batch outer, columns inner
        in_specs=[
            pl.BlockSpec((tm, K), by_row),    # x
            pl.BlockSpec((tm, K), by_row),    # dropout mask 0
            pl.BlockSpec((K, H), const2d),    # w1
            pl.BlockSpec((1, H), const2d),    # b1
            pl.BlockSpec((tm, H), by_row),    # dropout mask 1
            pl.BlockSpec((H, H), const2d),    # w2
            pl.BlockSpec((1, H), const2d),    # b2
            pl.BlockSpec((H, tn), by_col),    # w3 column tile (streamed)
            pl.BlockSpec((1, tn), by_col),    # b3 column tile
        ],
        out_specs=pl.BlockSpec((tm, tn), by_both),
        compiler_params=pltpu.CompilerParams(
            dimension_semantics=("parallel", "parallel"),   # no cross-step state
            vmem_limit_bytes=32 * 1024 * 1024,              # safe on v5e/v6e/v7x
        ),
    )(x, m0, w1, b1, m1, w2, b2, w3, b3)


# --------------------------- plain-JAX reference ----------------------------

def _reference_forward(params, fea, masks, weights_dtype=jnp.bfloat16):
    B = fea.shape[0]
    x = fea.reshape(B, -1).astype(jnp.float32)
    m0, m1 = masks
    w1 = params["w1"].astype(weights_dtype)
    w2 = params["w2"].astype(weights_dtype)
    w3 = params["w3"].astype(weights_dtype)
    xd = (x * m0).astype(weights_dtype)
    h1 = jnp.maximum(
        jnp.dot(xd, w1, preferred_element_type=jnp.float32) + params["b1"][None, :], 0.0)
    h1d = (h1 * m1).astype(weights_dtype)
    h2 = jnp.maximum(
        jnp.dot(h1d, w2, preferred_element_type=jnp.float32) + params["b2"][None, :], 0.0)
    out = jnp.dot(h2.astype(weights_dtype), w3,
                  preferred_element_type=jnp.float32) + params["b3"][None, :]
    return out


if __name__ == "__main__":
    key = jax.random.PRNGKey(0)
    pkey, xkey, dkey = jax.random.split(key, 3)

    cls_num = 512   # small class count for the smoke test (module default is 10575)
    B = 2
    params = init_params(pkey, cls_num)

    # resnet18 global-pool feature map: (B, 512, 1, 1); forward flattens it.
    fea = jax.random.normal(xkey, (B, 512, 1, 1), jnp.float32)

    masks = make_dropout_masks(dkey, B, 512, 1024, 0.5)

    # tn=256 so the smoke test exercises the tiled fc3 column grid (2 steps).
    out = fc_layer_resnet18_forward(params, fea, p=0.5, training=True,
                                    dropout_masks=masks, tn=256)
    out = jax.block_until_ready(out)
    assert out.shape == (B, cls_num) and out.dtype == jnp.float32

    ref = _reference_forward(params, fea, masks)
    assert jnp.allclose(out, ref, atol=1e-2, rtol=1e-2), \
        float(jnp.max(jnp.abs(out - ref)))

    print("KERNEL_OK")
</pallas_src>

<mosaic_0001>
module attributes {stable_mosaic.version = 11 : i64} {
  func.func @_fused_mlp_kernel(%arg0: i32, %arg1: i32, %arg2: memref<2x512xf32, #tpu.memory_space<vmem>>, %arg3: memref<2x512xf32, #tpu.memory_space<vmem>>, %arg4: memref<512x1024xbf16, #tpu.memory_space<vmem>>, %arg5: memref<1x1024xf32, #tpu.memory_space<vmem>>, %arg6: memref<2x1024xf32, #tpu.memory_space<vmem>>, %arg7: memref<1024x1024xbf16, #tpu.memory_space<vmem>>, %arg8: memref<1x1024xf32, #tpu.memory_space<vmem>>, %arg9: memref<1024x256xbf16, #tpu.memory_space<vmem>>, %arg10: memref<1x256xf32, #tpu.memory_space<vmem>>, %arg11: memref<2x256xf32, #tpu.memory_space<vmem>>) attributes {dimension_semantics = [#tpu.dimension_semantics<parallel>, #tpu.dimension_semantics<parallel>], iteration_bounds = array<i64: 1, 2>, scalar_prefetch = 0 : i64, scratch_operands = 0 : i64, tpu.core_type = #tpu.core_type<tc>, window_params = [{transform_indices = @transform_0, window_bounds = array<i64: 2, 512>}, {transform_indices = @transform_1, window_bounds = array<i64: 2, 512>}, {pipeline_mode = #tpu.pipeline_mode<synchronous>, transform_indices = @transform_2, window_bounds = array<i64: 512, 1024>}, {pipeline_mode = #tpu.pipeline_mode<synchronous>, transform_indices = @transform_3, window_bounds = array<i64: 1, 1024>}, {transform_indices = @transform_4, window_bounds = array<i64: 2, 1024>}, {pipeline_mode = #tpu.pipeline_mode<synchronous>, transform_indices = @transform_5, window_bounds = array<i64: 1024, 1024>}, {pipeline_mode = #tpu.pipeline_mode<synchronous>, transform_indices = @transform_6, window_bounds = array<i64: 1, 1024>}, {transform_indices = @transform_7, window_bounds = array<i64: 1024, 256>}, {transform_indices = @transform_8, window_bounds = array<i64: 1, 256>}, {transform_indices = @transform_9, window_bounds = array<i64: 2, 256>}]} {
    %c0 = arith.constant 0 : index
    %c0_0 = arith.constant 0 : index
    %0 = vector.load %arg2[%c0, %c0_0] : memref<2x512xf32, #tpu.memory_space<vmem>>, vector<2x512xf32>
    %c0_1 = arith.constant 0 : index
    %c0_2 = arith.constant 0 : index
    %1 = vector.load %arg3[%c0_1, %c0_2] : memref<2x512xf32, #tpu.memory_space<vmem>>, vector<2x512xf32>
    %2 = arith.mulf %0, %1 : vector<2x512xf32>
    %3 = arith.truncf %2 : vector<2x512xf32> to vector<2x512xbf16>
    %c0_3 = arith.constant 0 : index
    %c0_4 = arith.constant 0 : index
    %4 = vector.load %arg4[%c0_3, %c0_4] : memref<512x1024xbf16, #tpu.memory_space<vmem>>, vector<512x1024xbf16>
    %cst = arith.constant dense<0.000000e+00> : vector<2x1024xf32>
    %5 = tpu.matmul %3, %4, %cst {dimension_numbers = #tpu.dot_dimension_numbers<[1], [0], [0], [1], [0, 0, 1, 1], [], []>} : vector<2x512xbf16>, vector<512x1024xbf16>, vector<2x1024xf32> -> vector<2x1024xf32>
    %c0_5 = arith.constant 0 : index
    %c0_6 = arith.constant 0 : index
    %6 = vector.load %arg5[%c0_5, %c0_6] : memref<1x1024xf32, #tpu.memory_space<vmem>>, vector<1x1024xf32>
    %7 = vector.broadcast %6 : vector<1x1024xf32> to vector<2x1024xf32>
    %8 = arith.addf %5, %7 : vector<2x1024xf32>
    %cst_7 = arith.constant 0.000000e+00 : f32
    %9 = vector.broadcast %cst_7 : f32 to vector<2x1024xf32>
    %10 = arith.maximumf %8, %9 : vector<2x1024xf32>
    %c0_8 = arith.constant 0 : index
    %c0_9 = arith.constant 0 : index
    %11 = vector.load %arg6[%c0_8, %c0_9] : memref<2x1024xf32, #tpu.memory_space<vmem>>, vector<2x1024xf32>
    %12 = arith.mulf %10, %11 : vector<2x1024xf32>
    %13 = arith.truncf %12 : vector<2x1024xf32> to vector<2x1024xbf16>
    %c0_10 = arith.constant 0 : index
    %c0_11 = arith.constant 0 : index
    %14 = vector.load %arg7[%c0_10, %c0_11] : memref<1024x1024xbf16, #tpu.memory_space<vmem>>, vector<1024x1024xbf16>
    %cst_12 = arith.constant dense<0.000000e+00> : vector<2x1024xf32>
    %15 = tpu.matmul %13, %14, %cst_12 {dimension_numbers = #tpu.dot_dimension_numbers<[1], [0], [0], [1], [0, 0, 1, 1], [], []>} : vector<2x1024xbf16>, vector<1024x1024xbf16>, vector<2x1024xf32> -> vector<2x1024xf32>
    %c0_13 = arith.constant 0 : index
    %c0_14 = arith.constant 0 : index
    %16 = vector.load %arg8[%c0_13, %c0_14] : memref<1x1024xf32, #tpu.memory_space<vmem>>, vector<1x1024xf32>
    %17 = vector.broadcast %16 : vector<1x1024xf32> to vector<2x1024xf32>
    %18 = arith.addf %15, %17 : vector<2x1024xf32>
    %cst_15 = arith.constant 0.000000e+00 : f32
    %19 = vector.broadcast %cst_15 : f32 to vector<2x1024xf32>
    %20 = arith.maximumf %18, %19 : vector<2x1024xf32>
    %21 = arith.truncf %20 : vector<2x1024xf32> to vector<2x1024xbf16>
    %c0_16 = arith.constant 0 : index
    %c0_17 = arith.constant 0 : index
    %22 = vector.load %arg9[%c0_16, %c0_17] : memref<1024x256xbf16, #tpu.memory_space<vmem>>, vector<1024x256xbf16>
    %cst_18 = arith.constant dense<0.000000e+00> : vector<2x256xf32>
    %23 = tpu.matmul %21, %22, %cst_18 {dimension_numbers = #tpu.dot_dimension_numbers<[1], [0], [0], [1], [0, 0, 1, 1], [], []>} : vector<2x1024xbf16>, vector<1024x256xbf16>, vector<2x256xf32> -> vector<2x256xf32>
    %c0_19 = arith.constant 0 : index
    %c0_20 = arith.constant 0 : index
    %24 = vector.load %arg10[%c0_19, %c0_20] : memref<1x256xf32, #tpu.memory_space<vmem>>, vector<1x256xf32>
    %25 = vector.broadcast %24 : vector<1x256xf32> to vector<2x256xf32>
    %26 = arith.addf %23, %25 : vector<2x256xf32>
    %c0_21 = arith.constant 0 : index
    %c0_22 = arith.constant 0 : index
    %27 = vector.load %arg11[%c0_21, %c0_22] : memref<2x256xf32, #tpu.memory_space<vmem>>, vector<2x256xf32>
    tpu.vector_store %arg11[%c0_21, %c0_22], %26 {strides = array<i32>} : memref<2x256xf32, #tpu.memory_space<vmem>>, vector<2x256xf32>,
    return
  }
  func.func @transform_0(%arg0: i32, %arg1: i32) -> (i32, i32) {
    %c0_i32 = arith.constant 0 : i32
    %c0_i32_0 = arith.constant 0 : i32
    return %arg0, %c0_i32 : i32, i32
  }
  func.func @transform_1(%arg0: i32, %arg1: i32) -> (i32, i32) {
    %c0_i32 = arith.constant 0 : i32
    %c0_i32_0 = arith.constant 0 : i32
    return %arg0, %c0_i32 : i32, i32
  }
  func.func @transform_2(%arg0: i32, %arg1: i32) -> (i32, i32) {
    %c0_i32 = arith.constant 0 : i32
    %c0_i32_0 = arith.constant 0 : i32
    %c0_i32_1 = arith.constant 0 : i32
    return %c0_i32, %c0_i32_0 : i32, i32
  }
  func.func @transform_3(%arg0: i32, %arg1: i32) -> (i32, i32) {
    %c0_i32 = arith.constant 0 : i32
    %c0_i32_0 = arith.constant 0 : i32
    %c0_i32_1 = arith.constant 0 : i32
    return %c0_i32, %c0_i32_0 : i32, i32
  }
  func.func @transform_4(%arg0: i32, %arg1: i32) -> (i32, i32) {
    %c0_i32 = arith.constant 0 : i32
    %c0_i32_0 = arith.constant 0 : i32
    return %arg0, %c0_i32 : i32, i32
  }
  func.func @transform_5(%arg0: i32, %arg1: i32) -> (i32, i32) {
    %c0_i32 = arith.constant 0 : i32
    %c0_i32_0 = arith.constant 0 : i32
    %c0_i32_1 = arith.constant 0 : i32
    return %c0_i32, %c0_i32_0 : i32, i32
  }
  func.func @transform_6(%arg0: i32, %arg1: i32) -> (i32, i32) {
    %c0_i32 = arith.constant 0 : i32
    %c0_i32_0 = arith.constant 0 : i32
    %c0_i32_1 = arith.constant 0 : i32
    return %c0_i32, %c0_i32_0 : i32, i32
  }
  func.func @transform_7(%arg0: i32, %arg1: i32) -> (i32, i32) {
    %c0_i32 = arith.constant 0 : i32
    %c0_i32_0 = arith.constant 0 : i32
    return %c0_i32, %arg1 : i32, i32
  }
  func.func @transform_8(%arg0: i32, %arg1: i32) -> (i32, i32) {
    %c0_i32 = arith.constant 0 : i32
    %c0_i32_0 = arith.constant 0 : i32
    return %c0_i32, %arg1 : i32, i32
  }
  func.func @transform_9(%arg0: i32, %arg1: i32) -> (i32, i32) {
    %c0_i32 = arith.constant 0 : i32
    return %arg0, %arg1 : i32, i32
  }
}

</mosaic_0001>

<llo_original>
// kernel: tpu_custom_call.1
$region0: #{tpu_custom_call.1}
  #allocation0 [shape = 'u32[]', space=smem, size = 0x4, offset = 0x4, fixed_abs, tag = 'smem constant byte address 0x4 - core index']
  #allocation1 [shape = 'u32[144,128]{1,0:T(1,128)}', space=vmem, size = 0x12000, scoped, tag = 'internal scratch']
  %s0 = inlined_call_operand.hbm [shape: f32[2,512], index: 0, kind: input, shape index: {}]
  %s1 = inlined_call_operand.hbm [shape: f32[2,512], index: 1, kind: input, shape index: {}]
  %s2 = inlined_call_operand.hbm [shape: bf16[512,1024], index: 2, kind: input, shape index: {}]
  %s3 = inlined_call_operand.hbm [shape: f32[1,1024], index: 3, kind: input, shape index: {}]
  %s4 = inlined_call_operand.hbm [shape: f32[2,1024], index: 4, kind: input, shape index: {}]
  %s5 = inlined_call_operand.hbm [shape: bf16[1024,1024], index: 5, kind: input, shape index: {}]
  %s6 = inlined_call_operand.hbm [shape: f32[1,1024], index: 6, kind: input, shape index: {}]
  %s7 = inlined_call_operand.hbm [shape: bf16[1024,512], index: 7, kind: input, shape index: {}]
  %s8 = inlined_call_operand.hbm [shape: f32[1,512], index: 8, kind: input, shape index: {}]
  %s9 = inlined_call_operand.hbm [shape: f32[2,512], index: 9, kind: output, shape index: {}]
  %s10 = sld [smem:[#allocation0]]
  $region105: #{tpu_custom_call.1} parent=0
    _
  %s12 = ssub.s32 1, %s10
  %s13 = scalar_select 0, %s12, %s10
  $region1: #{tpu_custom_call.1} parent=0
    #allocation2 [shape = 'u8[4096]{0}', space=vmem, size = 0x1000, scoped, tag = 'input window, operand 0, single buffered']
    #allocation3 [shape = 's32[2]{0}', space=sflag, size = 0x8, scoped, tag = 'scoped memory for tpu_custom_call.1']
    #allocation4 [shape = 's32[2]{0}', space=sflag, size = 0x8, scoped, tag = 'scoped memory for tpu_custom_call.1']
    #allocation5 [shape = 'u8[4096]{0}', space=vmem, size = 0x1000, scoped, tag = 'input window, operand 1, single buffered']
    #allocation6 [shape = 's32[1]{0}', space=sflag, size = 0x4, scoped, tag = 'scoped memory for tpu_custom_call.1']
    #allocation7 [shape = 'u8[1048576]{0}', space=vmem, size = 0x100000, scoped, tag = 'input window, operand 2, single buffered']
    #allocation8 [shape = 'u8[4096]{0}', space=vmem, size = 0x1000, scoped, tag = 'input window, operand 3, single buffered']
    #allocation9 [shape = 's32[1]{0}', space=sflag, size = 0x4, scoped, tag = 'scoped memory for tpu_custom_call.1']
    #allocation10 [shape = 'u8[8192]{0}', space=vmem, size = 0x2000, scoped, tag = 'input window, operand 4, single buffered']
    #allocation11 [shape = 'u8[2097152]{0}', space=vmem, size = 0x200000, scoped, tag = 'input window, operand 5, single buffered']
    #allocation12 [shape = 's32[1]{0}', space=sflag, size = 0x4, scoped, tag = 'scoped memory for tpu_custom_call.1']
    #allocation13 [shape = 'u8[4096]{0}', space=vmem, size = 0x1000, scoped, tag = 'input window, operand 6, single buffered']
    #allocation14 [shape = 'u8[1048576]{0}', space=vmem, size = 0x100000, scoped, tag = 'input window, operand 7']
    #allocation15 [shape = 's32[2]{0}', space=sflag, size = 0x8, scoped, tag = 'scoped memory for tpu_custom_call.1']
    #allocation16 [shape = 'u8[2048]{0}', space=vmem, size = 0x800, scoped, tag = 'input window, operand 8']
    #allocation17 [shape = 'u8[4096]{0}', space=vmem, size = 0x1000, scoped, tag = 'output window, operand 0']
    %14 = vsyncpa [#allocation3], 0
    %15 = vsyncpa [#allocation6], 0
    %16 = vsyncpa [#allocation9], 0
    %17 = vsyncpa [#allocation12], 0
    %18 = vsyncpa [#allocation15], 0
    %s19 = scalar_lea.sflag [#allocation15], 1
    %20 = vsyncpa %s19, 0
    %21 = vsyncpa [#allocation4], 0
    %s22 = scalar_lea.sflag [#allocation4], 1
    %23 = vsyncpa %s22, 0
    loop: start=0, step=1, limit=4
    $region2: #{tpu_custom_call.1} parent=1 // loop_pre_header
      _
    $region3: #{tpu_custom_call.1} parent=1 // loop_header
      %s25 = sphi 0, %s29
      %p26 = scmp.ge.s32.totalorder %s25, 4
      %s32 = sphi 0, %s44
      %s33 = sphi 0, %s40
      %s34 = sphi 0, %s32
      %s35 = sphi 0, %s33
      %s36 = sphi 0, %s34
      %s37 = sphi 0, %s35
      %s47 = sphi 0, %s49
      %s50 = sphi 0, %s47
      %s51 = sphi 0, %s50
      %s67 = sphi 0, %s51
      %s73 = sphi 0, %s75
      %s76 = sphi 0, %s73
      %s77 = sphi 0, %s76
      %s93 = sphi 0, %s77
      %s97 = sphi 0, %s97
      %s99 = sphi 0, %s97
      %s100 = sphi 0, %s99
      %s114 = sphi 0, %s100
      %s118 = sphi 0, %s118
      %s120 = sphi 0, %s118
      %s121 = sphi 0, %s120
      %s135 = sphi 0, %s121
      %s141 = sphi 0, %s143
      %s144 = sphi 0, %s141
      %s145 = sphi 0, %s144
      %s161 = sphi 0, %s145
      %s165 = sphi 0, %s165
      %s167 = sphi 0, %s165
      %s168 = sphi 0, %s167
      %s182 = sphi 0, %s168
      %s186 = sphi 0, %s186
      %s188 = sphi 0, %s186
      %s189 = sphi 0, %s188
      %s203 = sphi 0, %s189
      %s209 = sphi 0, %s211
      %s212 = sphi 0, %s209
      %s213 = sphi 0, %s212
      %s229 = sphi 0, %s213
      %s235 = sphi 0, %s237
      %s238 = sphi 0, %s235
      %s239 = sphi 0, %s238
      %s255 = sphi 0, %s239
      %s263 = sphi 0, %s265
      %s266 = sphi 0, %s263
      %s267 = sphi 0, %s266
      %s283 = sphi 0, %s267
    $region4: #{tpu_custom_call.1} parent=1 // loop_header_branch
      %28 = sbr.rel (%p26) target = $region8
    $region5: #{tpu_custom_call.1} parent=1 // loop_body
      %s30 = ssub.s32 %s25, 1
      %s31 = ssub.s32 %s25, 2
      %s38 = sadd.s32 1, %s33
      %p39 = scmp.ge.s32.totalorder %s38, 2
      %s40 = scalar_select %p39, 0, %s38
      %s41 = sadd.s32 1, %s32
      %s42 = scalar_select %p39, %s41, %s32
      %p43 = scmp.ge.s32.totalorder %s42, 1
      %s44 = scalar_select %p43, 0, %s42
      %s45 = ssub.s32 %s32, %s44
      %p46 = scmp.eq.s32.totalorder %s45, 0
      %s48 = sadd.s32 %s47, 1
      %s49 = scalar_select %p46, %s47, %s48
      %p52 = pneg %p46
      %p53 = scmp.eq.s32.totalorder %s25, 1
      %p54 = por %p52, %p53
      %p55 = scmp.ne.s32.totalorder %s47, %s50
      %p56 = scmp.eq.s32.totalorder %s25, 0
      %p57 = por %p55, %p56
      %p58 = scmp.ne.s32.totalorder %s47, %s50
      %p59 = scmp.eq.s32.totalorder %s30, 1
      %p60 = por %p58, %p59
      %p61 = scmp.ne.s32.totalorder %s50, %s51
      %p62 = scmp.eq.s32.totalorder %s30, 0
      %p63 = por %p61, %p62
      %p64 = scmp.ne.s32.totalorder %s50, %s51
      %p65 = scmp.eq.s32.totalorder %s31, 1
      %p66 = por %p64, %p65
      %p68 = scmp.ne.s32.totalorder %s51, %s67
      %p69 = scmp.eq.s32.totalorder %s31, 0
      %p70 = por %p68, %p69
      %s71 = ssub.s32 %s32, %s44
      %p72 = scmp.eq.s32.totalorder %s71, 0
      %s74 = sadd.s32 %s73, 1
      %s75 = scalar_select %p72, %s73, %s74
      %p78 = pneg %p72
      %p79 = scmp.eq.s32.totalorder %s25, 1
      %p80 = por %p78, %p79
      %p81 = scmp.ne.s32.totalorder %s73, %s76
      %p82 = scmp.eq.s32.totalorder %s25, 0
      %p83 = por %p81, %p82
      %p84 = scmp.ne.s32.totalorder %s73, %s76
      %p85 = scmp.eq.s32.totalorder %s30, 1
      %p86 = por %p84, %p85
      %p87 = scmp.ne.s32.totalorder %s76, %s77
      %p88 = scmp.eq.s32.totalorder %s30, 0
      %p89 = por %p87, %p88
      %p90 = scmp.ne.s32.totalorder %s76, %s77
      %p91 = scmp.eq.s32.totalorder %s31, 1
      %p92 = por %p90, %p91
      %p94 = scmp.ne.s32.totalorder %s77, %s93
      %p95 = scmp.eq.s32.totalorder %s31, 0
      %p96 = por %p94, %p95
      %s98 = sadd.s32 %s97, 1
      %p101 = scmp.eq.s32.totalorder %s25, 1
      %p102 = scmp.ne.s32.totalorder %s97, %s99
      %p103 = scmp.eq.s32.totalorder %s25, 0
      %p104 = por %p102, %p103
      %p105 = scmp.ne.s32.totalorder %s97, %s99
      %p106 = scmp.eq.s32.totalorder %s30, 1
      %p107 = por %p105, %p106
      %p108 = scmp.ne.s32.totalorder %s99, %s100
      %p109 = scmp.eq.s32.totalorder %s30, 0
      %p110 = por %p108, %p109
      %p111 = scmp.ne.s32.totalorder %s99, %s100
      %p112 = scmp.eq.s32.totalorder %s31, 1
      %p113 = por %p111, %p112
      %p115 = scmp.ne.s32.totalorder %s100, %s114
      %p116 = scmp.eq.s32.totalorder %s31, 0
      %p117 = por %p115, %p116
      %s119 = sadd.s32 %s118, 1
      %p122 = scmp.eq.s32.totalorder %s25, 1
      %p123 = scmp.ne.s32.totalorder %s118, %s120
      %p124 = scmp.eq.s32.totalorder %s25, 0
      %p125 = por %p123, %p124
      %p126 = scmp.ne.s32.totalorder %s118, %s120
      %p127 = scmp.eq.s32.totalorder %s30, 1
      %p128 = por %p126, %p127
      %p129 = scmp.ne.s32.totalorder %s120, %s121
      %p130 = scmp.eq.s32.totalorder %s30, 0
      %p131 = por %p129, %p130
      %p132 = scmp.ne.s32.totalorder %s120, %s121
      %p133 = scmp.eq.s32.totalorder %s31, 1
      %p134 = por %p132, %p133
      %p136 = scmp.ne.s32.totalorder %s121, %s135
      %p137 = scmp.eq.s32.totalorder %s31, 0
      %p138 = por %p136, %p137
      %s139 = ssub.s32 %s32, %s44
      %p140 = scmp.eq.s32.totalorder %s139, 0
      %s142 = sadd.s32 %s141, 1
      %s143 = scalar_select %p140, %s141, %s142
      %p146 = pneg %p140
      %p147 = scmp.eq.s32.totalorder %s25, 1
      %p148 = por %p146, %p147
      %p149 = scmp.ne.s32.totalorder %s141, %s144
      %p150 = scmp.eq.s32.totalorder %s25, 0
      %p151 = por %p149, %p150
      %p152 = scmp.ne.s32.totalorder %s141, %s144
      %p153 = scmp.eq.s32.totalorder %s30, 1
      %p154 = por %p152, %p153
      %p155 = scmp.ne.s32.totalorder %s144, %s145
      %p156 = scmp.eq.s32.totalorder %s30, 0
      %p157 = por %p155, %p156
      %p158 = scmp.ne.s32.totalorder %s144, %s145
      %p159 = scmp.eq.s32.totalorder %s31, 1
      %p160 = por %p158, %p159
      %p162 = scmp.ne.s32.totalorder %s145, %s161
      %p163 = scmp.eq.s32.totalorder %s31, 0
      %p164 = por %p162, %p163
      %s166 = sadd.s32 %s165, 1
      %p169 = scmp.eq.s32.totalorder %s25, 1
      %p170 = scmp.ne.s32.totalorder %s165, %s167
      %p171 = scmp.eq.s32.totalorder %s25, 0
      %p172 = por %p170, %p171
      %p173 = scmp.ne.s32.totalorder %s165, %s167
      %p174 = scmp.eq.s32.totalorder %s30, 1
      %p175 = por %p173, %p174
      %p176 = scmp.ne.s32.totalorder %s167, %s168
      %p177 = scmp.eq.s32.totalorder %s30, 0
      %p178 = por %p176, %p177
      %p179 = scmp.ne.s32.totalorder %s167, %s168
      %p180 = scmp.eq.s32.totalorder %s31, 1
      %p181 = por %p179, %p180
      %p183 = scmp.ne.s32.totalorder %s168, %s182
      %p184 = scmp.eq.s32.totalorder %s31, 0
      %p185 = por %p183, %p184
      %s187 = sadd.s32 %s186, 1
      %p190 = scmp.eq.s32.totalorder %s25, 1
      %p191 = scmp.ne.s32.totalorder %s186, %s188
      %p192 = scmp.eq.s32.totalorder %s25, 0
      %p193 = por %p191, %p192
      %p194 = scmp.ne.s32.totalorder %s186, %s188
      %p195 = scmp.eq.s32.totalorder %s30, 1
      %p196 = por %p194, %p195
      %p197 = scmp.ne.s32.totalorder %s188, %s189
      %p198 = scmp.eq.s32.totalorder %s30, 0
      %p199 = por %p197, %p198
      %p200 = scmp.ne.s32.totalorder %s188, %s189
      %p201 = scmp.eq.s32.totalorder %s31, 1
      %p202 = por %p200, %p201
      %p204 = scmp.ne.s32.totalorder %s189, %s203
      %p205 = scmp.eq.s32.totalorder %s31, 0
      %p206 = por %p204, %p205
      %s207 = ssub.s32 %s33, %s40
      %p208 = scmp.eq.s32.totalorder %s207, 0
      %s210 = sadd.s32 %s209, 1
      %s211 = scalar_select %p208, %s209, %s210
      %p214 = pneg %p208
      %p215 = scmp.eq.s32.totalorder %s25, 1
      %p216 = por %p214, %p215
      %p217 = scmp.ne.s32.totalorder %s209, %s212
      %p218 = scmp.eq.s32.totalorder %s25, 0
      %p219 = por %p217, %p218
      %p220 = scmp.ne.s32.totalorder %s209, %s212
      %p221 = scmp.eq.s32.totalorder %s30, 1
      %p222 = por %p220, %p221
      %p223 = scmp.ne.s32.totalorder %s212, %s213
      %p224 = scmp.eq.s32.totalorder %s30, 0
      %p225 = por %p223, %p224
      %p226 = scmp.ne.s32.totalorder %s212, %s213
      %p227 = scmp.eq.s32.totalorder %s31, 1
      %p228 = por %p226, %p227
      %p230 = scmp.ne.s32.totalorder %s213, %s229
      %p231 = scmp.eq.s32.totalorder %s31, 0
      %p232 = por %p230, %p231
      %s233 = ssub.s32 %s33, %s40
      %p234 = scmp.eq.s32.totalorder %s233, 0
      %s236 = sadd.s32 %s235, 1
      %s237 = scalar_select %p234, %s235, %s236
      %p240 = pneg %p234
      %p241 = scmp.eq.s32.totalorder %s25, 1
      %p242 = por %p240, %p241
      %p243 = scmp.ne.s32.totalorder %s235, %s238
      %p244 = scmp.eq.s32.totalorder %s25, 0
      %p245 = por %p243, %p244
      %p246 = scmp.ne.s32.totalorder %s235, %s238
      %p247 = scmp.eq.s32.totalorder %s30, 1
      %p248 = por %p246, %p247
      %p249 = scmp.ne.s32.totalorder %s238, %s239
      %p250 = scmp.eq.s32.totalorder %s30, 0
      %p251 = por %p249, %p250
      %p252 = scmp.ne.s32.totalorder %s238, %s239
      %p253 = scmp.eq.s32.totalorder %s31, 1
      %p254 = por %p252, %p253
      %p256 = scmp.ne.s32.totalorder %s239, %s255
      %p257 = scmp.eq.s32.totalorder %s31, 0
      %p258 = por %p256, %p257
      %s259 = ssub.s32 %s32, %s44
      %s260 = ssub.s32 %s33, %s40
      %s261 = sor.u32 %s259, %s260
      %p262 = scmp.eq.s32.totalorder %s261, 0
      %s264 = sadd.s32 %s263, 1
      %s265 = scalar_select %p262, %s263, %s264
      %p268 = pneg %p262
      %p269 = scmp.eq.s32.totalorder %s25, 1
      %p270 = por %p268, %p269
      %p271 = scmp.ne.s32.totalorder %s263, %s266
      %p272 = scmp.eq.s32.totalorder %s25, 0
      %p273 = por %p271, %p272
      %p274 = scmp.ne.s32.totalorder %s263, %s266
      %p275 = scmp.eq.s32.totalorder %s30, 1
      %p276 = por %p274, %p275
      %p277 = scmp.ne.s32.totalorder %s266, %s267
      %p278 = scmp.eq.s32.totalorder %s30, 0
      %p279 = por %p277, %p278
      %p280 = scmp.ne.s32.totalorder %s266, %s267
      %p281 = scmp.eq.s32.totalorder %s31, 1
      %p282 = por %p280, %p281
      %p284 = scmp.ne.s32.totalorder %s267, %s283
      %p285 = scmp.eq.s32.totalorder %s31, 0
      %p286 = por %p284, %p285
      %p287 = scmp.le.s32.totalorder 1, %s25
      %p288 = scmp.lt.s32.totalorder %s25, 3
      %p289 = pnand %p287, %p288
      %p290 = pneg %p289
      // Predicated region
      $region9: #{tpu_custom_call.1} parent=5 // pred_check
        _
      $region10: #{tpu_custom_call.1} parent=5 // pred_check_branch
        %292 = sbr.rel (%p289) target = $region12
      $region11: #{tpu_custom_call.1} parent=5 // pred_region
        %s293 = ssub.s32 %s25, 1
        // Predicated region
        $region13: #{tpu_custom_call.1} parent=11 // pred_check
          %p294 = pneg %p63
        $region14: #{tpu_custom_call.1} parent=11 // pred_check_branch
          %296 = sbr.rel (%p294) target = $region16
        $region15: #{tpu_custom_call.1} parent=11 // pred_region
          %s298 = ssub.s32 128, 128
          %299 = vsyncadd [#allocation3], %s298
          %s300 = smul.addr %s34, 4
          %s301 = smul.addr %s300, 32
          %s302 = scalar_lea.hbm %s0, %s301
          %s304 = sshll.u32 [#allocation2], 4
          %s305 = int_to_ptr.vmem [resolvable:$true] %s304
          %307 = dma.hbm_to_vmem [thread:$0]  %s302, 128, %s305, [#allocation3]
        $region16: #{tpu_custom_call.1} parent=11 // pred_fallthru
          _
        // Predicated region
        $region17: #{tpu_custom_call.1} parent=11 // pred_check
          %p308 = pneg %p89
        $region18: #{tpu_custom_call.1} parent=11 // pred_check_branch
          %310 = sbr.rel (%p308) target = $region20
        $region19: #{tpu_custom_call.1} parent=11 // pred_region
          %s312 = ssub.s32 128, 128
          %313 = vsyncadd [#allocation6], %s312
          %s314 = smul.addr %s34, 4
          %s315 = smul.addr %s314, 32
          %s316 = scalar_lea.hbm %s1, %s315
          %s318 = sshll.u32 [#allocation5], 4
          %s319 = int_to_ptr.vmem [resolvable:$true] %s318
          %321 = dma.hbm_to_vmem [thread:$0]  %s316, 128, %s319, [#allocation6]
        $region20: #{tpu_custom_call.1} parent=11 // pred_fallthru
          _
        // Predicated region
        $region21: #{tpu_custom_call.1} parent=11 // pred_check
          %p322 = pneg %p110
        $region22: #{tpu_custom_call.1} parent=11 // pred_check_branch
          %324 = sbr.rel (%p322) target = $region24
        $region23: #{tpu_custom_call.1} parent=11 // pred_region
          %s326 = ssub.s32 32768, 32768
          %327 = vsyncadd [#allocation6], %s326
          %s328 = sshll.u32 [#allocation7], 4
          %s329 = int_to_ptr.vmem [resolvable:$true] %s328
          %334 = dma.hbm_to_vmem [thread:$0]  %s2, 32768, %s329, [#allocation6], 512, 512, 32
        $region24: #{tpu_custom_call.1} parent=11 // pred_fallthru
          _
        // Predicated region
        $region25: #{tpu_custom_call.1} parent=11 // pred_check
          %p335 = pneg %p131
        $region26: #{tpu_custom_call.1} parent=11 // pred_check_branch
          %337 = sbr.rel (%p335) target = $region28
        $region27: #{tpu_custom_call.1} parent=11 // pred_region
          %s339 = ssub.s32 128, 128
          %340 = vsyncadd [#allocation9], %s339
          %s342 = sshll.u32 [#allocation8], 4
          %s343 = int_to_ptr.vmem [resolvable:$true] %s342
          %345 = dma.hbm_to_vmem [thread:$0]  %s3, 128, %s343, [#allocation9]
        $region28: #{tpu_custom_call.1} parent=11 // pred_fallthru
          _
        // Predicated region
        $region29: #{tpu_custom_call.1} parent=11 // pred_check
          %p346 = pneg %p157
        $region30: #{tpu_custom_call.1} parent=11 // pred_check_branch
          %348 = sbr.rel (%p346) target = $region32
        $region31: #{tpu_custom_call.1} parent=11 // pred_region
          %s350 = ssub.s32 256, 256
          %351 = vsyncadd [#allocation9], %s350
          %s352 = smul.addr %s34, 8
          %s353 = smul.addr %s352, 32
          %s354 = scalar_lea.hbm %s4, %s353
          %s356 = sshll.u32 [#allocation10], 4
          %s357 = int_to_ptr.vmem [resolvable:$true] %s356
          %359 = dma.hbm_to_vmem [thread:$0]  %s354, 256, %s357, [#allocation9]
        $region32: #{tpu_custom_call.1} parent=11 // pred_fallthru
          _
        // Predicated region
        $region33: #{tpu_custom_call.1} parent=11 // pred_check
          %p360 = pneg %p178
        $region34: #{tpu_custom_call.1} parent=11 // pred_check_branch
          %362 = sbr.rel (%p360) target = $region36
        $region35: #{tpu_custom_call.1} parent=11 // pred_region
          %s364 = ssub.s32 65536, 65536
          %365 = vsyncadd [#allocation12], %s364
          %s366 = sshll.u32 [#allocation11], 4
          %s367 = int_to_ptr.vmem [resolvable:$true] %s366
          %372 = dma.hbm_to_vmem [thread:$0]  %s5, 65536, %s367, [#allocation12], 512, 512, 32
        $region36: #{tpu_custom_call.1} parent=11 // pred_fallthru
          _
        // Predicated region
        $region37: #{tpu_custom_call.1} parent=11 // pred_check
          %p373 = pneg %p199
        $region38: #{tpu_custom_call.1} parent=11 // pred_check_branch
          %375 = sbr.rel (%p373) target = $region40
        $region39: #{tpu_custom_call.1} parent=11 // pred_region
          %s377 = ssub.s32 128, 128
          %378 = vsyncadd [#allocation12], %s377
          %s380 = sshll.u32 [#allocation13], 4
          %s381 = int_to_ptr.vmem [resolvable:$true] %s380
          %383 = dma.hbm_to_vmem [thread:$0]  %s6, 128, %s381, [#allocation12]
        $region40: #{tpu_custom_call.1} parent=11 // pred_fallthru
          _
      $region12: #{tpu_custom_call.1} parent=5 // pred_fallthru
        _
      %p384 = scmp.lt.s32.totalorder %s25, 2
      // Predicated region
      $region41: #{tpu_custom_call.1} parent=5 // pred_check
        %p385 = pneg %p384
      $region42: #{tpu_custom_call.1} parent=5 // pred_check_branch
        %387 = sbr.rel (%p385) target = $region44
      $region43: #{tpu_custom_call.1} parent=5 // pred_region
        // Predicated region
        $region45: #{tpu_custom_call.1} parent=43 // pred_check
          %p388 = pneg %p219
        $region46: #{tpu_custom_call.1} parent=43 // pred_check_branch
          %390 = sbr.rel (%p388) target = $region48
        $region47: #{tpu_custom_call.1} parent=43 // pred_region
          %s391 = sand.u32 %s25, 1
          %s392 = scalar_lea.sflag [#allocation15], %s391
          %s393 = sand.u32 %s209, 1
          %s394 = smul.addr %s393, 1024
          %s395 = scalar_lea.vmem [#allocation14], %s394
          %s396 = smul.u32 2, %s33
          %s398 = ssub.s32 16384, 16384
          %399 = vsyncadd %s392, %s398
          %s400 = smul.addr %s396, 64
          %s401 = scalar_lea.hbm %s7, %s400
          %s402 = sshll.u32 %s395, 4
          %s403 = int_to_ptr.vmem [resolvable:$true] %s402
          %408 = dma.hbm_to_vmem [thread:$0]  %s401, 16384, %s403, %s392, 256, 128, 8
        $region48: #{tpu_custom_call.1} parent=43 // pred_fallthru
          _
        // Predicated region
        $region49: #{tpu_custom_call.1} parent=43 // pred_check
          %p409 = pneg %p245
        $region50: #{tpu_custom_call.1} parent=43 // pred_check_branch
          %411 = sbr.rel (%p409) target = $region52
        $region51: #{tpu_custom_call.1} parent=43 // pred_region
          %s412 = sand.u32 %s25, 1
          %s413 = scalar_lea.sflag [#allocation15], %s412
          %s414 = sand.u32 %s235, 1
          %s415 = smul.addr %s414, 2
          %s416 = scalar_lea.vmem [#allocation16], %s415
          %s417 = smul.u32 2, %s33
          %s419 = ssub.s32 32, 32
          %420 = vsyncadd %s413, %s419
          %s421 = smul.addr %s417, 16
          %s422 = scalar_lea.hbm %s8, %s421
          %s424 = sshll.u32 %s416, 4
          %s425 = int_to_ptr.vmem [resolvable:$true] %s424
          %427 = dma.hbm_to_vmem [thread:$0]  %s422, 32, %s425, %s413
        $region52: #{tpu_custom_call.1} parent=43 // pred_fallthru
          _
      $region44: #{tpu_custom_call.1} parent=5 // pred_fallthru
        _
      %p428 = scmp.le.s32.totalorder 1, %s25
      %p429 = scmp.lt.s32.totalorder %s25, 3
      %p430 = pnand %p428, %p429
      %p431 = pneg %p430
      // Predicated region
      $region53: #{tpu_custom_call.1} parent=5 // pred_check
        _
      $region54: #{tpu_custom_call.1} parent=5 // pred_check_branch
        %433 = sbr.rel (%p430) target = $region56
      $region55: #{tpu_custom_call.1} parent=5 // pred_region
        %s434 = ssub.s32 %s25, 1
        // Predicated region
        $region57: #{tpu_custom_call.1} parent=55 // pred_check
          %p435 = pneg %p63
        $region58: #{tpu_custom_call.1} parent=55 // pred_check_branch
          %437 = sbr.rel (%p435) target = $region60
        $region59: #{tpu_custom_call.1} parent=55 // pred_region
          %438 = dma.done [#allocation3], 128
        $region60: #{tpu_custom_call.1} parent=55 // pred_fallthru
          _
        // Predicated region
        $region61: #{tpu_custom_call.1} parent=55 // pred_check
          %p439 = pneg %p89
        $region62: #{tpu_custom_call.1} parent=55 // pred_check_branch
          %441 = sbr.rel (%p439) target = $region64
        $region63: #{tpu_custom_call.1} parent=55 // pred_region
          %442 = dma.done [#allocation6], 128
        $region64: #{tpu_custom_call.1} parent=55 // pred_fallthru
          _
        // Predicated region
        $region65: #{tpu_custom_call.1} parent=55 // pred_check
          %p443 = pneg %p110
        $region66: #{tpu_custom_call.1} parent=55 // pred_check_branch
          %445 = sbr.rel (%p443) target = $region68
        $region67: #{tpu_custom_call.1} parent=55 // pred_region
          %446 = dma.done [#allocation6], 32768
        $region68: #{tpu_custom_call.1} parent=55 // pred_fallthru
          _
        // Predicated region
        $region69: #{tpu_custom_call.1} parent=55 // pred_check
          %p447 = pneg %p131
        $region70: #{tpu_custom_call.1} parent=55 // pred_check_branch
          %449 = sbr.rel (%p447) target = $region72
        $region71: #{tpu_custom_call.1} parent=55 // pred_region
          %450 = dma.done [#allocation9], 128
        $region72: #{tpu_custom_call.1} parent=55 // pred_fallthru
          _
        // Predicated region
        $region73: #{tpu_custom_call.1} parent=55 // pred_check
          %p451 = pneg %p157
        $region74: #{tpu_custom_call.1} parent=55 // pred_check_branch
          %453 = sbr.rel (%p451) target = $region76
        $region75: #{tpu_custom_call.1} parent=55 // pred_region
          %454 = dma.done [#allocation9], 256
        $region76: #{tpu_custom_call.1} parent=55 // pred_fallthru
          _
        // Predicated region
        $region77: #{tpu_custom_call.1} parent=55 // pred_check
          %p455 = pneg %p178
        $region78: #{tpu_custom_call.1} parent=55 // pred_check_branch
          %457 = sbr.rel (%p455) target = $region80
        $region79: #{tpu_custom_call.1} parent=55 // pred_region
          %458 = dma.done [#allocation12], 65536
        $region80: #{tpu_custom_call.1} parent=55 // pred_fallthru
          _
        // Predicated region
        $region81: #{tpu_custom_call.1} parent=55 // pred_check
          %p459 = pneg %p199
        $region82: #{tpu_custom_call.1} parent=55 // pred_check_branch
          %461 = sbr.rel (%p459) target = $region84
        $region83: #{tpu_custom_call.1} parent=55 // pred_region
          %462 = dma.done [#allocation12], 128
        $region84: #{tpu_custom_call.1} parent=55 // pred_fallthru
          _
        %s463 = sand.u32 %s30, 1
        %s464 = scalar_lea.sflag [#allocation15], %s463
        %s465 = sand.u32 %s212, 1
        %s466 = smul.addr %s465, 1024
        %s467 = scalar_lea.vmem [#allocation14], %s466
        // Predicated region
        $region85: #{tpu_custom_call.1} parent=55 // pred_check
          %p468 = pneg %p225
        $region86: #{tpu_custom_call.1} parent=55 // pred_check_branch
          %470 = sbr.rel (%p468) target = $region88
        $region87: #{tpu_custom_call.1} parent=55 // pred_region
          %471 = dma.done %s464, 16384
        $region88: #{tpu_custom_call.1} parent=55 // pred_fallthru
          _
        %s472 = sand.u32 %s30, 1
        %s473 = scalar_lea.sflag [#allocation15], %s472
        %s474 = sand.u32 %s238, 1
        %s475 = smul.addr %s474, 2
        %s476 = scalar_lea.vmem [#allocation16], %s475
        // Predicated region
        $region89: #{tpu_custom_call.1} parent=55 // pred_check
          %p477 = pneg %p251
        $region90: #{tpu_custom_call.1} parent=55 // pred_check_branch
          %479 = sbr.rel (%p477) target = $region92
        $region91: #{tpu_custom_call.1} parent=55 // pred_region
          %480 = dma.done %s473, 32
        $region92: #{tpu_custom_call.1} parent=55 // pred_fallthru
          _
        %p481 = pneg %p63
        %p482 = pneg %p60
        %p483 = pneg %p89
        %p484 = pneg %p86
        %p485 = pneg %p110
        %p486 = pneg %p107
        %p487 = pneg %p131
        %p488 = pneg %p128
        %p489 = pneg %p157
        %p490 = pneg %p154
        %p491 = pneg %p178
        %p492 = pneg %p175
        %p493 = pneg %p199
        %p494 = pneg %p196
        %s495 = sand.u32 %s30, 1
        %s496 = scalar_lea.sflag [#allocation15], %s495
        %s497 = sand.u32 %s212, 1
        %s498 = smul.addr %s497, 1024
        %s499 = scalar_lea.vmem [#allocation14], %s498
        %p500 = pneg %p225
        %p501 = pneg %p222
        %s502 = sand.u32 %s30, 1
        %s503 = scalar_lea.sflag [#allocation15], %s502
        %s504 = sand.u32 %s238, 1
        %s505 = smul.addr %s504, 2
        %s506 = scalar_lea.vmem [#allocation16], %s505
        %p507 = pneg %p251
        %p508 = pneg %p248
        %p509 = pneg %p279
        %p510 = pneg %p276
        %s511 = sand.u32 %s266, 1
        %s512 = scalar_lea.sflag [#allocation4], %s511
        %s513 = sand.u32 %s266, 1
        %s514 = smul.addr %s513, 4
        %s515 = scalar_lea.vmem [#allocation17], %s514
        %s516 = smul.u32 2, %s35
        %s517 = smul.u32 2, %s35
        %s518 = smul.u32 2, %s35
        %v519 = vld [vmem:[#allocation2] sm:$0xff]
        %v520 = vld [vmem:[#allocation5] sm:$0xff]
        %v521 = vmul.f32 %v519, %v520
        %v523 = vcombine.high %v521, %v521
        %v525 = vunpack.c.l.s4 1983009808
        %v526 = vunpack.c.0.s8 %v525
        %v527 = vlaneseq
        %v528 = vshrl.u32 %v527, 7
        %v529 = vsub.s32 %v526, %v528
        %v530 = vrot.slane %v521, %v529
        %v532 = vunpack.c.l.s4 1983009808
        %v533 = vunpack.c.0.s8 %v532
        %v534 = vlaneseq
        %v535 = vshrl.u32 %v534, 7
        %v536 = vsub.s32 %v533, %v535
        %v537 = vrot.slane %v523, %v536
        %v538 = vcombine.high %v530, %v530
        %v539 = vcombine.high %v537, %v537
        %v544 = vpack.c.bf16 %v530, %v530
        %v545 = vpack.c.bf16 %v538, %v538
        %v546 = vpack.c.bf16 %v537, %v537
        %v547 = vpack.c.bf16 %v539, %v539
        %v548 = vld [vmem:[#allocation7] sm:$0xff]
        %v549 = vld [vmem:[#allocation7 + $0x8] sm:$0xff]
        %v550 = vld [vmem:[#allocation7 + $0x10] sm:$0xff]
        %v551 = vld [vmem:[#allocation7 + $0x18] sm:$0xff]
        %v552 = vld [vmem:[#allocation7 + $0x20] sm:$0xff]
        %v553 = vld [vmem:[#allocation7 + $0x28] sm:$0xff]
        %v554 = vld [vmem:[#allocation7 + $0x30] sm:$0xff]
        %v555 = vld [vmem:[#allocation7 + $0x38] sm:$0xff]
        %v556 = vld [vmem:[#allocation7 + $0x40] sm:$0xff]
        %v557 = vld [vmem:[#allocation7 + $0x48] sm:$0xff]
        %v558 = vld [vmem:[#allocation7 + $0x50] sm:$0xff]
        %v559 = vld [vmem:[#allocation7 + $0x58] sm:$0xff]
        %v560 = vld [vmem:[#allocation7 + $0x60] sm:$0xff]
        %v561 = vld [vmem:[#allocation7 + $0x68] sm:$0xff]
        %v562 = vld [vmem:[#allocation7 + $0x70] sm:$0xff]
        %v563 = vld [vmem:[#allocation7 + $0x78] sm:$0xff]
        %v564 = vld [vmem:[#allocation7 + $0x80] sm:$0xff]
        %v565 = vld [vmem:[#allocation7 + $0x88] sm:$0xff]
        %v566 = vld [vmem:[#allocation7 + $0x90] sm:$0xff]
        %v567 = vld [vmem:[#allocation7 + $0x98] sm:$0xff]
        %v568 = vld [vmem:[#allocation7 + $0xa0] sm:$0xff]
        %v569 = vld [vmem:[#allocation7 + $0xa8] sm:$0xff]
        %v570 = vld [vmem:[#allocation7 + $0xb0] sm:$0xff]
        %v571 = vld [vmem:[#allocation7 + $0xb8] sm:$0xff]
        %v572 = vld [vmem:[#allocation7 + $0xc0] sm:$0xff]
        %v573 = vld [vmem:[#allocation7 + $0xc8] sm:$0xff]
        %v574 = vld [vmem:[#allocation7 + $0xd0] sm:$0xff]
        %v575 = vld [vmem:[#allocation7 + $0xd8] sm:$0xff]
        %v576 = vld [vmem:[#allocation7 + $0xe0] sm:$0xff]
        %v577 = vld [vmem:[#allocation7 + $0xe8] sm:$0xff]
        %v578 = vld [vmem:[#allocation7 + $0xf0] sm:$0xff]
        %v579 = vld [vmem:[#allocation7 + $0xf8] sm:$0xff]
        %v580 = vld [vmem:[#allocation7 + $0x100] sm:$0xff]
        %v581 = vld [vmem:[#allocation7 + $0x108] sm:$0xff]
        %v582 = vld [vmem:[#allocation7 + $0x110] sm:$0xff]
        %v583 = vld [vmem:[#allocation7 + $0x118] sm:$0xff]
        %v584 = vld [vmem:[#allocation7 + $0x120] sm:$0xff]
        %v585 = vld [vmem:[#allocation7 + $0x128] sm:$0xff]
        %v586 = vld [vmem:[#allocation7 + $0x130] sm:$0xff]
        %v587 = vld [vmem:[#allocation7 + $0x138] sm:$0xff]
        %v588 = vld [vmem:[#allocation7 + $0x140] sm:$0xff]
        %v589 = vld [vmem:[#allocation7 + $0x148] sm:$0xff]
        %v590 = vld [vmem:[#allocation7 + $0x150] sm:$0xff]
        %v591 = vld [vmem:[#allocation7 + $0x158] sm:$0xff]
        %v592 = vld [vmem:[#allocation7 + $0x160] sm:$0xff]
        %v593 = vld [vmem:[#allocation7 + $0x168] sm:$0xff]
        %v594 = vld [vmem:[#allocation7 + $0x170] sm:$0xff]
        %v595 = vld [vmem:[#allocation7 + $0x178] sm:$0xff]
        %v596 = vld [vmem:[#allocation7 + $0x180] sm:$0xff]
        %v597 = vld [vmem:[#allocation7 + $0x188] sm:$0xff]
        %v598 = vld [vmem:[#allocation7 + $0x190] sm:$0xff]
        %v599 = vld [vmem:[#allocation7 + $0x198] sm:$0xff]
        %v600 = vld [vmem:[#allocation7 + $0x1a0] sm:$0xff]
        %v601 = vld [vmem:[#allocation7 + $0x1a8] sm:$0xff]
        %v602 = vld [vmem:[#allocation7 + $0x1b0] sm:$0xff]
        %v603 = vld [vmem:[#allocation7 + $0x1b8] sm:$0xff]
        %v604 = vld [vmem:[#allocation7 + $0x1c0] sm:$0xff]
        %v605 = vld [vmem:[#allocation7 + $0x1c8] sm:$0xff]
        %v606 = vld [vmem:[#allocation7 + $0x1d0] sm:$0xff]
        %v607 = vld [vmem:[#allocation7 + $0x1d8] sm:$0xff]
        %v608 = vld [vmem:[#allocation7 + $0x1e0] sm:$0xff]
        %v609 = vld [vmem:[#allocation7 + $0x1e8] sm:$0xff]
        %v610 = vld [vmem:[#allocation7 + $0x1f0] sm:$0xff]
        %v611 = vld [vmem:[#allocation7 + $0x1f8] sm:$0xff]
        %v612 = vld [vmem:[#allocation7 + $0x200] sm:$0xff]
        %v613 = vld [vmem:[#allocation7 + $0x208] sm:$0xff]
        %v614 = vld [vmem:[#allocation7 + $0x210] sm:$0xff]
        %v615 = vld [vmem:[#allocation7 + $0x218] sm:$0xff]
        %v616 = vld [vmem:[#allocation7 + $0x220] sm:$0xff]
        %v617 = vld [vmem:[#allocation7 + $0x228] sm:$0xff]
        %v618 = vld [vmem:[#allocation7 + $0x230] sm:$0xff]
        %v619 = vld [vmem:[#allocation7 + $0x238] sm:$0xff]
        %v620 = vld [vmem:[#allocation7 + $0x240] sm:$0xff]
        %v621 = vld [vmem:[#allocation7 + $0x248] sm:$0xff]
        %v622 = vld [vmem:[#allocation7 + $0x250] sm:$0xff]
        %v623 = vld [vmem:[#allocation7 + $0x258] sm:$0xff]
        %v624 = vld [vmem:[#allocation7 + $0x260] sm:$0xff]
        %v625 = vld [vmem:[#allocation7 + $0x268] sm:$0xff]
        %v626 = vld [vmem:[#allocation7 + $0x270] sm:$0xff]
        %v627 = vld [vmem:[#allocation7 + $0x278] sm:$0xff]
        %v628 = vld [vmem:[#allocation7 + $0x280] sm:$0xff]
        %v629 = vld [vmem:[#allocation7 + $0x288] sm:$0xff]
        %v630 = vld [vmem:[#allocation7 + $0x290] sm:$0xff]
        %v631 = vld [vmem:[#allocation7 + $0x298] sm:$0xff]
        %v632 = vld [vmem:[#allocation7 + $0x2a0] sm:$0xff]
        %v633 = vld [vmem:[#allocation7 + $0x2a8] sm:$0xff]
        %v634 = vld [vmem:[#allocation7 + $0x2b0] sm:$0xff]
        %v635 = vld [vmem:[#allocation7 + $0x2b8] sm:$0xff]
        %v636 = vld [vmem:[#allocation7 + $0x2c0] sm:$0xff]
        %v637 = vld [vmem:[#allocation7 + $0x2c8] sm:$0xff]
        %v638 = vld [vmem:[#allocation7 + $0x2d0] sm:$0xff]
        %v639 = vld [vmem:[#allocation7 + $0x2d8] sm:$0xff]
        %v640 = vld [vmem:[#allocation7 + $0x2e0] sm:$0xff]
        %v641 = vld [vmem:[#allocation7 + $0x2e8] sm:$0xff]
        %v642 = vld [vmem:[#allocation7 + $0x2f0] sm:$0xff]
        %v643 = vld [vmem:[#allocation7 + $0x2f8] sm:$0xff]
        %v644 = vld [vmem:[#allocation7 + $0x300] sm:$0xff]
        %v645 = vld [vmem:[#allocation7 + $0x308] sm:$0xff]
        %v646 = vld [vmem:[#allocation7 + $0x310] sm:$0xff]
        %v647 = vld [vmem:[#allocation7 + $0x318] sm:$0xff]
        %v648 = vld [vmem:[#allocation7 + $0x320] sm:$0xff]
        %v649 = vld [vmem:[#allocation7 + $0x328] sm:$0xff]
        %v650 = vld [vmem:[#allocation7 + $0x330] sm:$0xff]
        %v651 = vld [vmem:[#allocation7 + $0x338] sm:$0xff]
        %v652 = vld [vmem:[#allocation7 + $0x340] sm:$0xff]
        %v653 = vld [vmem:[#allocation7 + $0x348] sm:$0xff]
        %v654 = vld [vmem:[#allocation7 + $0x350] sm:$0xff]
        %v655 = vld [vmem:[#allocation7 + $0x358] sm:$0xff]
        %v656 = vld [vmem:[#allocation7 + $0x360] sm:$0xff]
        %v657 = vld [vmem:[#allocation7 + $0x368] sm:$0xff]
        %v658 = vld [vmem:[#allocation7 + $0x370] sm:$0xff]
        %v659 = vld [vmem:[#allocation7 + $0x378] sm:$0xff]
        %v660 = vld [vmem:[#allocation7 + $0x380] sm:$0xff]
        %v661 = vld [vmem:[#allocation7 + $0x388] sm:$0xff]
        %v662 = vld [vmem:[#allocation7 + $0x390] sm:$0xff]
        %v663 = vld [vmem:[#allocation7 + $0x398] sm:$0xff]
        %v664 = vld [vmem:[#allocation7 + $0x3a0] sm:$0xff]
        %v665 = vld [vmem:[#allocation7 + $0x3a8] sm:$0xff]
        %v666 = vld [vmem:[#allocation7 + $0x3b0] sm:$0xff]
        %v667 = vld [vmem:[#allocation7 + $0x3b8] sm:$0xff]
        %v668 = vld [vmem:[#allocation7 + $0x3c0] sm:$0xff]
        %v669 = vld [vmem:[#allocation7 + $0x3c8] sm:$0xff]
        %v670 = vld [vmem:[#allocation7 + $0x3d0] sm:$0xff]
        %v671 = vld [vmem:[#allocation7 + $0x3d8] sm:$0xff]
        %v672 = vld [vmem:[#allocation7 + $0x3e0] sm:$0xff]
        %v673 = vld [vmem:[#allocation7 + $0x3e8] sm:$0xff]
        %v674 = vld [vmem:[#allocation7 + $0x3f0] sm:$0xff]
        %v675 = vld [vmem:[#allocation7 + $0x3f8] sm:$0xff]
        %v676 = vld [vmem:[#allocation7 + $0x400] sm:$0xff]
        %v677 = vld [vmem:[#allocation7 + $0x408] sm:$0xff]
        %v678 = vld [vmem:[#allocation7 + $0x410] sm:$0xff]
        %v679 = vld [vmem:[#allocation7 + $0x418] sm:$0xff]
        %v680 = vld [vmem:[#allocation7 + $0x420] sm:$0xff]
        %v681 = vld [vmem:[#allocation7 + $0x428] sm:$0xff]
        %v682 = vld [vmem:[#allocation7 + $0x430] sm:$0xff]
        %v683 = vld [vmem:[#allocation7 + $0x438] sm:$0xff]
        %v684 = vld [vmem:[#allocation7 + $0x440] sm:$0xff]
        %v685 = vld [vmem:[#allocation7 + $0x448] sm:$0xff]
        %v686 = vld [vmem:[#allocation7 + $0x450] sm:$0xff]
        %v687 = vld [vmem:[#allocation7 + $0x458] sm:$0xff]
        %v688 = vld [vmem:[#allocation7 + $0x460] sm:$0xff]
        %v689 = vld [vmem:[#allocation7 + $0x468] sm:$0xff]
        %v690 = vld [vmem:[#allocation7 + $0x470] sm:$0xff]
        %v691 = vld [vmem:[#allocation7 + $0x478] sm:$0xff]
        %v692 = vld [vmem:[#allocation7 + $0x480] sm:$0xff]
        %v693 = vld [vmem:[#allocation7 + $0x488] sm:$0xff]
        %v694 = vld [vmem:[#allocation7 + $0x490] sm:$0xff]
        %v695 = vld [vmem:[#allocation7 + $0x498] sm:$0xff]
        %v696 = vld [vmem:[#allocation7 + $0x4a0] sm:$0xff]
        %v697 = vld [vmem:[#allocation7 + $0x4a8] sm:$0xff]
        %v698 = vld [vmem:[#allocation7 + $0x4b0] sm:$0xff]
        %v699 = vld [vmem:[#allocation7 + $0x4b8] sm:$0xff]
        %v700 = vld [vmem:[#allocation7 + $0x4c0] sm:$0xff]
        %v701 = vld [vmem:[#allocation7 + $0x4c8] sm:$0xff]
        %v702 = vld [vmem:[#allocation7 + $0x4d0] sm:$0xff]
        %v703 = vld [vmem:[#allocation7 + $0x4d8] sm:$0xff]
        %v704 = vld [vmem:[#allocation7 + $0x4e0] sm:$0xff]
        %v705 = vld [vmem:[#allocation7 + $0x4e8] sm:$0xff]
        %v706 = vld [vmem:[#allocation7 + $0x4f0] sm:$0xff]
        %v707 = vld [vmem:[#allocation7 + $0x4f8] sm:$0xff]
        %v708 = vld [vmem:[#allocation7 + $0x500] sm:$0xff]
        %v709 = vld [vmem:[#allocation7 + $0x508] sm:$0xff]
        %v710 = vld [vmem:[#allocation7 + $0x510] sm:$0xff]
        %v711 = vld [vmem:[#allocation7 + $0x518] sm:$0xff]
        %v712 = vld [vmem:[#allocation7 + $0x520] sm:$0xff]
        %v713 = vld [vmem:[#allocation7 + $0x528] sm:$0xff]
        %v714 = vld [vmem:[#allocation7 + $0x530] sm:$0xff]
        %v715 = vld [vmem:[#allocation7 + $0x538] sm:$0xff]
        %v716 = vld [vmem:[#allocation7 + $0x540] sm:$0xff]
        %v717 = vld [vmem:[#allocation7 + $0x548] sm:$0xff]
        %v718 = vld [vmem:[#allocation7 + $0x550] sm:$0xff]
        %v719 = vld [vmem:[#allocation7 + $0x558] sm:$0xff]
        %v720 = vld [vmem:[#allocation7 + $0x560] sm:$0xff]
        %v721 = vld [vmem:[#allocation7 + $0x568] sm:$0xff]
        %v722 = vld [vmem:[#allocation7 + $0x570] sm:$0xff]
        %v723 = vld [vmem:[#allocation7 + $0x578] sm:$0xff]
        %v724 = vld [vmem:[#allocation7 + $0x580] sm:$0xff]
        %v725 = vld [vmem:[#allocation7 + $0x588] sm:$0xff]
        %v726 = vld [vmem:[#allocation7 + $0x590] sm:$0xff]
        %v727 = vld [vmem:[#allocation7 + $0x598] sm:$0xff]
        %v728 = vld [vmem:[#allocation7 + $0x5a0] sm:$0xff]
        %v729 = vld [vmem:[#allocation7 + $0x5a8] sm:$0xff]
        %v730 = vld [vmem:[#allocation7 + $0x5b0] sm:$0xff]
        %v731 = vld [vmem:[#allocation7 + $0x5b8] sm:$0xff]
        %v732 = vld [vmem:[#allocation7 + $0x5c0] sm:$0xff]
        %v733 = vld [vmem:[#allocation7 + $0x5c8] sm:$0xff]
        %v734 = vld [vmem:[#allocation7 + $0x5d0] sm:$0xff]
        %v735 = vld [vmem:[#allocation7 + $0x5d8] sm:$0xff]
        %v736 = vld [vmem:[#allocation7 + $0x5e0] sm:$0xff]
        %v737 = vld [vmem:[#allocation7 + $0x5e8] sm:$0xff]
        %v738 = vld [vmem:[#allocation7 + $0x5f0] sm:$0xff]
        %v739 = vld [vmem:[#allocation7 + $0x5f8] sm:$0xff]
        %v740 = vld [vmem:[#allocation7 + $0x600] sm:$0xff]
        %v741 = vld [vmem:[#allocation7 + $0x608] sm:$0xff]
        %v742 = vld [vmem:[#allocation7 + $0x610] sm:$0xff]
        %v743 = vld [vmem:[#allocation7 + $0x618] sm:$0xff]
        %v744 = vld [vmem:[#allocation7 + $0x620] sm:$0xff]
        %v745 = vld [vmem:[#allocation7 + $0x628] sm:$0xff]
        %v746 = vld [vmem:[#allocation7 + $0x630] sm:$0xff]
        %v747 = vld [vmem:[#allocation7 + $0x638] sm:$0xff]
        %v748 = vld [vmem:[#allocation7 + $0x640] sm:$0xff]
        %v749 = vld [vmem:[#allocation7 + $0x648] sm:$0xff]
        %v750 = vld [vmem:[#allocation7 + $0x650] sm:$0xff]
        %v751 = vld [vmem:[#allocation7 + $0x658] sm:$0xff]
        %v752 = vld [vmem:[#allocation7 + $0x660] sm:$0xff]
        %v753 = vld [vmem:[#allocation7 + $0x668] sm:$0xff]
        %v754 = vld [vmem:[#allocation7 + $0x670] sm:$0xff]
        %v755 = vld [vmem:[#allocation7 + $0x678] sm:$0xff]
        %v756 = vld [vmem:[#allocation7 + $0x680] sm:$0xff]
        %v757 = vld [vmem:[#allocation7 + $0x688] sm:$0xff]
        %v758 = vld [vmem:[#allocation7 + $0x690] sm:$0xff]
        %v759 = vld [vmem:[#allocation7 + $0x698] sm:$0xff]
        %v760 = vld [vmem:[#allocation7 + $0x6a0] sm:$0xff]
        %v761 = vld [vmem:[#allocation7 + $0x6a8] sm:$0xff]
        %v762 = vld [vmem:[#allocation7 + $0x6b0] sm:$0xff]
        %v763 = vld [vmem:[#allocation7 + $0x6b8] sm:$0xff]
        %v764 = vld [vmem:[#allocation7 + $0x6c0] sm:$0xff]
        %v765 = vld [vmem:[#allocation7 + $0x6c8] sm:$0xff]
        %v766 = vld [vmem:[#allocation7 + $0x6d0] sm:$0xff]
        %v767 = vld [vmem:[#allocation7 + $0x6d8] sm:$0xff]
        %v768 = vld [vmem:[#allocation7 + $0x6e0] sm:$0xff]
        %v769 = vld [vmem:[#allocation7 + $0x6e8] sm:$0xff]
        %v770 = vld [vmem:[#allocation7 + $0x6f0] sm:$0xff]
        %v771 = vld [vmem:[#allocation7 + $0x6f8] sm:$0xff]
        %v772 = vld [vmem:[#allocation7 + $0x700] sm:$0xff]
        %v773 = vld [vmem:[#allocation7 + $0x708] sm:$0xff]
        %v774 = vld [vmem:[#allocation7 + $0x710] sm:$0xff]
        %v775 = vld [vmem:[#allocation7 + $0x718] sm:$0xff]
        %v776 = vld [vmem:[#allocation7 + $0x720] sm:$0xff]
        %v777 = vld [vmem:[#allocation7 + $0x728] sm:$0xff]
        %v778 = vld [vmem:[#allocation7 + $0x730] sm:$0xff]
        %v779 = vld [vmem:[#allocation7 + $0x738] sm:$0xff]
        %v780 = vld [vmem:[#allocation7 + $0x740] sm:$0xff]
        %v781 = vld [vmem:[#allocation7 + $0x748] sm:$0xff]
        %v782 = vld [vmem:[#allocation7 + $0x750] sm:$0xff]
        %v783 = vld [vmem:[#allocation7 + $0x758] sm:$0xff]
        %v784 = vld [vmem:[#allocation7 + $0x760] sm:$0xff]
        %v785 = vld [vmem:[#allocation7 + $0x768] sm:$0xff]
        %v786 = vld [vmem:[#allocation7 + $0x770] sm:$0xff]
        %v787 = vld [vmem:[#allocation7 + $0x778] sm:$0xff]
        %v788 = vld [vmem:[#allocation7 + $0x780] sm:$0xff]
        %v789 = vld [vmem:[#allocation7 + $0x788] sm:$0xff]
        %v790 = vld [vmem:[#allocation7 + $0x790] sm:$0xff]
        %v791 = vld [vmem:[#allocation7 + $0x798] sm:$0xff]
        %v792 = vld [vmem:[#allocation7 + $0x7a0] sm:$0xff]
        %v793 = vld [vmem:[#allocation7 + $0x7a8] sm:$0xff]
        %v794 = vld [vmem:[#allocation7 + $0x7b0] sm:$0xff]
        %v795 = vld [vmem:[#allocation7 + $0x7b8] sm:$0xff]
        %v796 = vld [vmem:[#allocation7 + $0x7c0] sm:$0xff]
        %v797 = vld [vmem:[#allocation7 + $0x7c8] sm:$0xff]
        %v798 = vld [vmem:[#allocation7 + $0x7d0] sm:$0xff]
        %v799 = vld [vmem:[#allocation7 + $0x7d8] sm:$0xff]
        %v800 = vld [vmem:[#allocation7 + $0x7e0] sm:$0xff]
        %v801 = vld [vmem:[#allocation7 + $0x7e8] sm:$0xff]
        %v802 = vld [vmem:[#allocation7 + $0x7f0] sm:$0xff]
        %v803 = vld [vmem:[#allocation7 + $0x7f8] sm:$0xff]
        %v804 = vld [vmem:[#allocation8] sm:$0xff]
        %v806 = vlaneseq
        %v807 = vshrl.u32 %v806, 7
        %v808 = vsub.s32 0, %v807
        %v809 = vrot.slane %v804, %v808
        %v810 = vlaneseq
        %v811 = vshrl.u32 %v810, 7
        %v812 = vsub.s32 1, %v811
        %v813 = vrot.slane %v804, %v812
        %v814 = vlaneseq
        %v815 = vshrl.u32 %v814, 7
        %v816 = vsub.s32 2, %v815
        %v817 = vrot.slane %v804, %v816
        %v818 = vlaneseq
        %v819 = vshrl.u32 %v818, 7
        %v820 = vsub.s32 3, %v819
        %v821 = vrot.slane %v804, %v820
        %v822 = vlaneseq
        %v823 = vshrl.u32 %v822, 7
        %v824 = vsub.s32 4, %v823
        %v825 = vrot.slane %v804, %v824
        %v826 = vlaneseq
        %v827 = vshrl.u32 %v826, 7
        %v828 = vsub.s32 5, %v827
        %v829 = vrot.slane %v804, %v828
        %v830 = vlaneseq
        %v831 = vshrl.u32 %v830, 7
        %v832 = vsub.s32 6, %v831
        %v833 = vrot.slane %v804, %v832
        %v834 = vlaneseq
        %v835 = vshrl.u32 %v834, 7
        %v836 = vsub.s32 7, %v835
        %v837 = vrot.slane %v804, %v836
        %v1102 = vunpack.c.l.b16 %v548
        %v1103 = vunpack.c.h.b16 %v548
        %v1104 = vunpack.c.l.b16 %v549
        %v1105 = vunpack.c.h.b16 %v549
        %v1106 = vunpack.c.l.b16 %v550
        %v1107 = vunpack.c.h.b16 %v550
        %v1108 = vunpack.c.l.b16 %v551
        %v1109 = vunpack.c.h.b16 %v551
        %v1110 = vunpack.c.l.b16 %v552
        %v1111 = vunpack.c.h.b16 %v552
        %v1112 = vunpack.c.l.b16 %v553
        %v1113 = vunpack.c.h.b16 %v553
        %v1114 = vunpack.c.l.b16 %v554
        %v1115 = vunpack.c.h.b16 %v554
        %v1116 = vunpack.c.l.b16 %v555
        %v1117 = vunpack.c.h.b16 %v555
        %v1118 = vunpack.c.l.b16 %v556
        %v1119 = vunpack.c.h.b16 %v556
        %v1120 = vunpack.c.l.b16 %v557
        %v1121 = vunpack.c.h.b16 %v557
        %v1122 = vunpack.c.l.b16 %v558
        %v1123 = vunpack.c.h.b16 %v558
        %v1124 = vunpack.c.l.b16 %v559
        %v1125 = vunpack.c.h.b16 %v559
        %v1126 = vunpack.c.l.b16 %v560
        %v1127 = vunpack.c.h.b16 %v560
        %v1128 = vunpack.c.l.b16 %v561
        %v1129 = vunpack.c.h.b16 %v561
        %v1130 = vunpack.c.l.b16 %v562
        %v1131 = vunpack.c.h.b16 %v562
        %v1132 = vunpack.c.l.b16 %v563
        %v1133 = vunpack.c.h.b16 %v563
        %v1134 = vunpack.c.l.b16 %v564
        %v1135 = vunpack.c.h.b16 %v564
        %v1136 = vunpack.c.l.b16 %v565
        %v1137 = vunpack.c.h.b16 %v565
        %v1138 = vunpack.c.l.b16 %v566
        %v1139 = vunpack.c.h.b16 %v566
        %v1140 = vunpack.c.l.b16 %v567
        %v1141 = vunpack.c.h.b16 %v567
        %v1142 = vunpack.c.l.b16 %v568
        %v1143 = vunpack.c.h.b16 %v568
        %v1144 = vunpack.c.l.b16 %v569
        %v1145 = vunpack.c.h.b16 %v569
        %v1146 = vunpack.c.l.b16 %v570
        %v1147 = vunpack.c.h.b16 %v570
        %v1148 = vunpack.c.l.b16 %v571
        %v1149 = vunpack.c.h.b16 %v571
        %v1150 = vunpack.c.l.b16 %v572
        %v1151 = vunpack.c.h.b16 %v572
        %v1152 = vunpack.c.l.b16 %v573
        %v1153 = vunpack.c.h.b16 %v573
        %v1154 = vunpack.c.l.b16 %v574
        %v1155 = vunpack.c.h.b16 %v574
        %v1156 = vunpack.c.l.b16 %v575
        %v1157 = vunpack.c.h.b16 %v575
        %v1158 = vunpack.c.l.b16 %v576
        %v1159 = vunpack.c.h.b16 %v576
        %v1160 = vunpack.c.l.b16 %v577
        %v1161 = vunpack.c.h.b16 %v577
        %v1162 = vunpack.c.l.b16 %v578
        %v1163 = vunpack.c.h.b16 %v578
        %v1164 = vunpack.c.l.b16 %v579
        %v1165 = vunpack.c.h.b16 %v579
        %v1166 = vunpack.c.l.b16 %v580
        %v1167 = vunpack.c.h.b16 %v580
        %v1168 = vunpack.c.l.b16 %v581
        %v1169 = vunpack.c.h.b16 %v581
        %v1170 = vunpack.c.l.b16 %v582
        %v1171 = vunpack.c.h.b16 %v582
        %v1172 = vunpack.c.l.b16 %v583
        %v1173 = vunpack.c.h.b16 %v583
        %v1174 = vunpack.c.l.b16 %v584
        %v1175 = vunpack.c.h.b16 %v584
        %v1176 = vunpack.c.l.b16 %v585
        %v1177 = vunpack.c.h.b16 %v585
        %v1178 = vunpack.c.l.b16 %v586
        %v1179 = vunpack.c.h.b16 %v586
        %v1180 = vunpack.c.l.b16 %v587
        %v1181 = vunpack.c.h.b16 %v587
        %v1182 = vunpack.c.l.b16 %v588
        %v1183 = vunpack.c.h.b16 %v588
        %v1184 = vunpack.c.l.b16 %v589
        %v1185 = vunpack.c.h.b16 %v589
        %v1186 = vunpack.c.l.b16 %v590
        %v1187 = vunpack.c.h.b16 %v590
        %v1188 = vunpack.c.l.b16 %v591
        %v1189 = vunpack.c.h.b16 %v591
        %v1190 = vunpack.c.l.b16 %v592
        %v1191 = vunpack.c.h.b16 %v592
        %v1192 = vunpack.c.l.b16 %v593
        %v1193 = vunpack.c.h.b16 %v593
        %v1194 = vunpack.c.l.b16 %v594
        %v1195 = vunpack.c.h.b16 %v594
        %v1196 = vunpack.c.l.b16 %v595
        %v1197 = vunpack.c.h.b16 %v595
        %v1198 = vunpack.c.l.b16 %v596
        %v1199 = vunpack.c.h.b16 %v596
        %v1200 = vunpack.c.l.b16 %v597
        %v1201 = vunpack.c.h.b16 %v597
        %v1202 = vunpack.c.l.b16 %v598
        %v1203 = vunpack.c.h.b16 %v598
        %v1204 = vunpack.c.l.b16 %v599
        %v1205 = vunpack.c.h.b16 %v599
        %v1206 = vunpack.c.l.b16 %v600
        %v1207 = vunpack.c.h.b16 %v600
        %v1208 = vunpack.c.l.b16 %v601
        %v1209 = vunpack.c.h.b16 %v601
        %v1210 = vunpack.c.l.b16 %v602
        %v1211 = vunpack.c.h.b16 %v602
        %v1212 = vunpack.c.l.b16 %v603
        %v1213 = vunpack.c.h.b16 %v603
        %v1214 = vunpack.c.l.b16 %v604
        %v1215 = vunpack.c.h.b16 %v604
        %v1216 = vunpack.c.l.b16 %v605
        %v1217 = vunpack.c.h.b16 %v605
        %v1218 = vunpack.c.l.b16 %v606
        %v1219 = vunpack.c.h.b16 %v606
        %v1220 = vunpack.c.l.b16 %v607
        %v1221 = vunpack.c.h.b16 %v607
        %v1222 = vunpack.c.l.b16 %v608
        %v1223 = vunpack.c.h.b16 %v608
        %v1224 = vunpack.c.l.b16 %v609
        %v1225 = vunpack.c.h.b16 %v609
        %v1226 = vunpack.c.l.b16 %v610
        %v1227 = vunpack.c.h.b16 %v610
        %v1228 = vunpack.c.l.b16 %v611
        %v1229 = vunpack.c.h.b16 %v611
        %v1230 = vunpack.c.l.b16 %v612
        %v1231 = vunpack.c.h.b16 %v612
        %v1232 = vunpack.c.l.b16 %v613
        %v1233 = vunpack.c.h.b16 %v613
        %v1234 = vunpack.c.l.b16 %v614
        %v1235 = vunpack.c.h.b16 %v614
        %v1236 = vunpack.c.l.b16 %v615
        %v1237 = vunpack.c.h.b16 %v615
        %v1238 = vunpack.c.l.b16 %v616
        %v1239 = vunpack.c.h.b16 %v616
        %v1240 = vunpack.c.l.b16 %v617
        %v1241 = vunpack.c.h.b16 %v617
        %v1242 = vunpack.c.l.b16 %v618
        %v1243 = vunpack.c.h.b16 %v618
        %v1244 = vunpack.c.l.b16 %v619
        %v1245 = vunpack.c.h.b16 %v619
        %v1246 = vunpack.c.l.b16 %v620
        %v1247 = vunpack.c.h.b16 %v620
        %v1248 = vunpack.c.l.b16 %v621
        %v1249 = vunpack.c.h.b16 %v621
        %v1250 = vunpack.c.l.b16 %v622
        %v1251 = vunpack.c.h.b16 %v622
        %v1252 = vunpack.c.l.b16 %v623
        %v1253 = vunpack.c.h.b16 %v623
        %v1254 = vunpack.c.l.b16 %v624
        %v1255 = vunpack.c.h.b16 %v624
        %v1256 = vunpack.c.l.b16 %v625
        %v1257 = vunpack.c.h.b16 %v625
        %v1258 = vunpack.c.l.b16 %v626
        %v1259 = vunpack.c.h.b16 %v626
        %v1260 = vunpack.c.l.b16 %v627
        %v1261 = vunpack.c.h.b16 %v627
        %v1262 = vunpack.c.l.b16 %v628
        %v1263 = vunpack.c.h.b16 %v628
        %v1264 = vunpack.c.l.b16 %v629
        %v1265 = vunpack.c.h.b16 %v629
        %v1266 = vunpack.c.l.b16 %v630
        %v1267 = vunpack.c.h.b16 %v630
        %v1268 = vunpack.c.l.b16 %v631
        %v1269 = vunpack.c.h.b16 %v631
        %v1270 = vunpack.c.l.b16 %v632
        %v1271 = vunpack.c.h.b16 %v632
        %v1272 = vunpack.c.l.b16 %v633
        %v1273 = vunpack.c.h.b16 %v633
        %v1274 = vunpack.c.l.b16 %v634
        %v1275 = vunpack.c.h.b16 %v634
        %v1276 = vunpack.c.l.b16 %v635
        %v1277 = vunpack.c.h.b16 %v635
        %v1278 = vunpack.c.l.b16 %v636
        %v1279 = vunpack.c.h.b16 %v636
        %v1280 = vunpack.c.l.b16 %v637
        %v1281 = vunpack.c.h.b16 %v637
        %v1282 = vunpack.c.l.b16 %v638
        %v1283 = vunpack.c.h.b16 %v638
        %v1284 = vunpack.c.l.b16 %v639
        %v1285 = vunpack.c.h.b16 %v639
        %v1286 = vunpack.c.l.b16 %v640
        %v1287 = vunpack.c.h.b16 %v640
        %v1288 = vunpack.c.l.b16 %v641
        %v1289 = vunpack.c.h.b16 %v641
        %v1290 = vunpack.c.l.b16 %v642
        %v1291 = vunpack.c.h.b16 %v642
        %v1292 = vunpack.c.l.b16 %v643
        %v1293 = vunpack.c.h.b16 %v643
        %v1294 = vunpack.c.l.b16 %v644
        %v1295 = vunpack.c.h.b16 %v644
        %v1296 = vunpack.c.l.b16 %v645
        %v1297 = vunpack.c.h.b16 %v645
        %v1298 = vunpack.c.l.b16 %v646
        %v1299 = vunpack.c.h.b16 %v646
        %v1300 = vunpack.c.l.b16 %v647
        %v1301 = vunpack.c.h.b16 %v647
        %v1302 = vunpack.c.l.b16 %v648
        %v1303 = vunpack.c.h.b16 %v648
        %v1304 = vunpack.c.l.b16 %v649
        %v1305 = vunpack.c.h.b16 %v649
        %v1306 = vunpack.c.l.b16 %v650
        %v1307 = vunpack.c.h.b16 %v650
        %v1308 = vunpack.c.l.b16 %v651
        %v1309 = vunpack.c.h.b16 %v651
        %v1310 = vunpack.c.l.b16 %v652
        %v1311 = vunpack.c.h.b16 %v652
        %v1312 = vunpack.c.l.b16 %v653
        %v1313 = vunpack.c.h.b16 %v653
        %v1314 = vunpack.c.l.b16 %v654
        %v1315 = vunpack.c.h.b16 %v654
        %v1316 = vunpack.c.l.b16 %v655
        %v1317 = vunpack.c.h.b16 %v655
        %v1318 = vunpack.c.l.b16 %v656
        %v1319 = vunpack.c.h.b16 %v656
        %v1320 = vunpack.c.l.b16 %v657
        %v1321 = vunpack.c.h.b16 %v657
        %v1322 = vunpack.c.l.b16 %v658
        %v1323 = vunpack.c.h.b16 %v658
        %v1324 = vunpack.c.l.b16 %v659
        %v1325 = vunpack.c.h.b16 %v659
        %v1326 = vunpack.c.l.b16 %v660
        %v1327 = vunpack.c.h.b16 %v660
        %v1328 = vunpack.c.l.b16 %v661
        %v1329 = vunpack.c.h.b16 %v661
        %v1330 = vunpack.c.l.b16 %v662
        %v1331 = vunpack.c.h.b16 %v662
        %v1332 = vunpack.c.l.b16 %v663
        %v1333 = vunpack.c.h.b16 %v663
        %v1334 = vunpack.c.l.b16 %v664
        %v1335 = vunpack.c.h.b16 %v664
        %v1336 = vunpack.c.l.b16 %v665
        %v1337 = vunpack.c.h.b16 %v665
        %v1338 = vunpack.c.l.b16 %v666
        %v1339 = vunpack.c.h.b16 %v666
        %v1340 = vunpack.c.l.b16 %v667
        %v1341 = vunpack.c.h.b16 %v667
        %v1342 = vunpack.c.l.b16 %v668
        %v1343 = vunpack.c.h.b16 %v668
        %v1344 = vunpack.c.l.b16 %v669
        %v1345 = vunpack.c.h.b16 %v669
        %v1346 = vunpack.c.l.b16 %v670
        %v1347 = vunpack.c.h.b16 %v670
        %v1348 = vunpack.c.l.b16 %v671
        %v1349 = vunpack.c.h.b16 %v671
        %v1350 = vunpack.c.l.b16 %v672
        %v1351 = vunpack.c.h.b16 %v672
        %v1352 = vunpack.c.l.b16 %v673
        %v1353 = vunpack.c.h.b16 %v673
        %v1354 = vunpack.c.l.b16 %v674
        %v1355 = vunpack.c.h.b16 %v674
        %v1356 = vunpack.c.l.b16 %v675
        %v1357 = vunpack.c.h.b16 %v675
        %v1358 = vunpack.c.l.b16 %v676
        %v1359 = vunpack.c.h.b16 %v676
        %v1360 = vunpack.c.l.b16 %v677
        %v1361 = vunpack.c.h.b16 %v677
        %v1362 = vunpack.c.l.b16 %v678
        %v1363 = vunpack.c.h.b16 %v678
        %v1364 = vunpack.c.l.b16 %v679
        %v1365 = vunpack.c.h.b16 %v679
        %v1366 = vunpack.c.l.b16 %v680
        %v1367 = vunpack.c.h.b16 %v680
        %v1368 = vunpack.c.l.b16 %v681
        %v1369 = vunpack.c.h.b16 %v681
        %v1370 = vunpack.c.l.b16 %v682
        %v1371 = vunpack.c.h.b16 %v682
        %v1372 = vunpack.c.l.b16 %v683
        %v1373 = vunpack.c.h.b16 %v683
        %v1374 = vunpack.c.l.b16 %v684
        %v1375 = vunpack.c.h.b16 %v684
        %v1376 = vunpack.c.l.b16 %v685
        %v1377 = vunpack.c.h.b16 %v685
        %v1378 = vunpack.c.l.b16 %v686
        %v1379 = vunpack.c.h.b16 %v686
        %v1380 = vunpack.c.l.b16 %v687
        %v1381 = vunpack.c.h.b16 %v687
        %v1382 = vunpack.c.l.b16 %v688
        %v1383 = vunpack.c.h.b16 %v688
        %v1384 = vunpack.c.l.b16 %v689
        %v1385 = vunpack.c.h.b16 %v689
        %v1386 = vunpack.c.l.b16 %v690
        %v1387 = vunpack.c.h.b16 %v690
        %v1388 = vunpack.c.l.b16 %v691
        %v1389 = vunpack.c.h.b16 %v691
        %v1390 = vunpack.c.l.b16 %v692
        %v1391 = vunpack.c.h.b16 %v692
        %v1392 = vunpack.c.l.b16 %v693
        %v1393 = vunpack.c.h.b16 %v693
        %v1394 = vunpack.c.l.b16 %v694
        %v1395 = vunpack.c.h.b16 %v694
        %v1396 = vunpack.c.l.b16 %v695
        %v1397 = vunpack.c.h.b16 %v695
        %v1398 = vunpack.c.l.b16 %v696
        %v1399 = vunpack.c.h.b16 %v696
        %v1400 = vunpack.c.l.b16 %v697
        %v1401 = vunpack.c.h.b16 %v697
        %v1402 = vunpack.c.l.b16 %v698
        %v1403 = vunpack.c.h.b16 %v698
        %v1404 = vunpack.c.l.b16 %v699
        %v1405 = vunpack.c.h.b16 %v699
        %v1406 = vunpack.c.l.b16 %v700
        %v1407 = vunpack.c.h.b16 %v700
        %v1408 = vunpack.c.l.b16 %v701
        %v1409 = vunpack.c.h.b16 %v701
        %v1410 = vunpack.c.l.b16 %v702
        %v1411 = vunpack.c.h.b16 %v702
        %v1412 = vunpack.c.l.b16 %v703
        %v1413 = vunpack.c.h.b16 %v703
        %v1414 = vunpack.c.l.b16 %v704
        %v1415 = vunpack.c.h.b16 %v704
        %v1416 = vunpack.c.l.b16 %v705
        %v1417 = vunpack.c.h.b16 %v705
        %v1418 = vunpack.c.l.b16 %v706
        %v1419 = vunpack.c.h.b16 %v706
        %v1420 = vunpack.c.l.b16 %v707
        %v1421 = vunpack.c.h.b16 %v707
        %v1422 = vunpack.c.l.b16 %v708
        %v1423 = vunpack.c.h.b16 %v708
        %v1424 = vunpack.c.l.b16 %v709
        %v1425 = vunpack.c.h.b16 %v709
        %v1426 = vunpack.c.l.b16 %v710
        %v1427 = vunpack.c.h.b16 %v710
        %v1428 = vunpack.c.l.b16 %v711
        %v1429 = vunpack.c.h.b16 %v711
        %v1430 = vunpack.c.l.b16 %v712
        %v1431 = vunpack.c.h.b16 %v712
        %v1432 = vunpack.c.l.b16 %v713
        %v1433 = vunpack.c.h.b16 %v713
        %v1434 = vunpack.c.l.b16 %v714
        %v1435 = vunpack.c.h.b16 %v714
        %v1436 = vunpack.c.l.b16 %v715
        %v1437 = vunpack.c.h.b16 %v715
        %v1438 = vunpack.c.l.b16 %v716
        %v1439 = vunpack.c.h.b16 %v716
        %v1440 = vunpack.c.l.b16 %v717
        %v1441 = vunpack.c.h.b16 %v717
        %v1442 = vunpack.c.l.b16 %v718
        %v1443 = vunpack.c.h.b16 %v718
        %v1444 = vunpack.c.l.b16 %v719
        %v1445 = vunpack.c.h.b16 %v719
        %v1446 = vunpack.c.l.b16 %v720
        %v1447 = vunpack.c.h.b16 %v720
        %v1448 = vunpack.c.l.b16 %v721
        %v1449 = vunpack.c.h.b16 %v721
        %v1450 = vunpack.c.l.b16 %v722
        %v1451 = vunpack.c.h.b16 %v722
        %v1452 = vunpack.c.l.b16 %v723
        %v1453 = vunpack.c.h.b16 %v723
        %v1454 = vunpack.c.l.b16 %v724
        %v1455 = vunpack.c.h.b16 %v724
        %v1456 = vunpack.c.l.b16 %v725
        %v1457 = vunpack.c.h.b16 %v725
        %v1458 = vunpack.c.l.b16 %v726
        %v1459 = vunpack.c.h.b16 %v726
        %v1460 = vunpack.c.l.b16 %v727
        %v1461 = vunpack.c.h.b16 %v727
        %v1462 = vunpack.c.l.b16 %v728
        %v1463 = vunpack.c.h.b16 %v728
        %v1464 = vunpack.c.l.b16 %v729
        %v1465 = vunpack.c.h.b16 %v729
        %v1466 = vunpack.c.l.b16 %v730
        %v1467 = vunpack.c.h.b16 %v730
        %v1468 = vunpack.c.l.b16 %v731
        %v1469 = vunpack.c.h.b16 %v731
        %v1470 = vunpack.c.l.b16 %v732
        %v1471 = vunpack.c.h.b16 %v732
        %v1472 = vunpack.c.l.b16 %v733
        %v1473 = vunpack.c.h.b16 %v733
        %v1474 = vunpack.c.l.b16 %v734
        %v1475 = vunpack.c.h.b16 %v734
        %v1476 = vunpack.c.l.b16 %v735
        %v1477 = vunpack.c.h.b16 %v735
        %v1478 = vunpack.c.l.b16 %v736
        %v1479 = vunpack.c.h.b16 %v736
        %v1480 = vunpack.c.l.b16 %v737
        %v1481 = vunpack.c.h.b16 %v737
        %v1482 = vunpack.c.l.b16 %v738
        %v1483 = vunpack.c.h.b16 %v738
        %v1484 = vunpack.c.l.b16 %v739
        %v1485 = vunpack.c.h.b16 %v739
        %v1486 = vunpack.c.l.b16 %v740
        %v1487 = vunpack.c.h.b16 %v740
        %v1488 = vunpack.c.l.b16 %v741
        %v1489 = vunpack.c.h.b16 %v741
        %v1490 = vunpack.c.l.b16 %v742
        %v1491 = vunpack.c.h.b16 %v742
        %v1492 = vunpack.c.l.b16 %v743
        %v1493 = vunpack.c.h.b16 %v743
        %v1494 = vunpack.c.l.b16 %v744
        %v1495 = vunpack.c.h.b16 %v744
        %v1496 = vunpack.c.l.b16 %v745
        %v1497 = vunpack.c.h.b16 %v745
        %v1498 = vunpack.c.l.b16 %v746
        %v1499 = vunpack.c.h.b16 %v746
        %v1500 = vunpack.c.l.b16 %v747
        %v1501 = vunpack.c.h.b16 %v747
        %v1502 = vunpack.c.l.b16 %v748
        %v1503 = vunpack.c.h.b16 %v748
        %v1504 = vunpack.c.l.b16 %v749
        %v1505 = vunpack.c.h.b16 %v749
        %v1506 = vunpack.c.l.b16 %v750
        %v1507 = vunpack.c.h.b16 %v750
        %v1508 = vunpack.c.l.b16 %v751
        %v1509 = vunpack.c.h.b16 %v751
        %v1510 = vunpack.c.l.b16 %v752
        %v1511 = vunpack.c.h.b16 %v752
        %v1512 = vunpack.c.l.b16 %v753
        %v1513 = vunpack.c.h.b16 %v753
        %v1514 = vunpack.c.l.b16 %v754
        %v1515 = vunpack.c.h.b16 %v754
        %v1516 = vunpack.c.l.b16 %v755
        %v1517 = vunpack.c.h.b16 %v755
        %v1518 = vunpack.c.l.b16 %v756
        %v1519 = vunpack.c.h.b16 %v756
        %v1520 = vunpack.c.l.b16 %v757
        %v1521 = vunpack.c.h.b16 %v757
        %v1522 = vunpack.c.l.b16 %v758
        %v1523 = vunpack.c.h.b16 %v758
        %v1524 = vunpack.c.l.b16 %v759
        %v1525 = vunpack.c.h.b16 %v759
        %v1526 = vunpack.c.l.b16 %v760
        %v1527 = vunpack.c.h.b16 %v760
        %v1528 = vunpack.c.l.b16 %v761
        %v1529 = vunpack.c.h.b16 %v761
        %v1530 = vunpack.c.l.b16 %v762
        %v1531 = vunpack.c.h.b16 %v762
        %v1532 = vunpack.c.l.b16 %v763
        %v1533 = vunpack.c.h.b16 %v763
        %v1534 = vunpack.c.l.b16 %v764
        %v1535 = vunpack.c.h.b16 %v764
        %v1536 = vunpack.c.l.b16 %v765
        %v1537 = vunpack.c.h.b16 %v765
        %v1538 = vunpack.c.l.b16 %v766
        %v1539 = vunpack.c.h.b16 %v766
        %v1540 = vunpack.c.l.b16 %v767
        %v1541 = vunpack.c.h.b16 %v767
        %v1542 = vunpack.c.l.b16 %v768
        %v1543 = vunpack.c.h.b16 %v768
        %v1544 = vunpack.c.l.b16 %v769
        %v1545 = vunpack.c.h.b16 %v769
        %v1546 = vunpack.c.l.b16 %v770
        %v1547 = vunpack.c.h.b16 %v770
        %v1548 = vunpack.c.l.b16 %v771
        %v1549 = vunpack.c.h.b16 %v771
        %v1550 = vunpack.c.l.b16 %v772
        %v1551 = vunpack.c.h.b16 %v772
        %v1552 = vunpack.c.l.b16 %v773
        %v1553 = vunpack.c.h.b16 %v773
        %v1554 = vunpack.c.l.b16 %v774
        %v1555 = vunpack.c.h.b16 %v774
        %v1556 = vunpack.c.l.b16 %v775
        %v1557 = vunpack.c.h.b16 %v775
        %v1558 = vunpack.c.l.b16 %v776
        %v1559 = vunpack.c.h.b16 %v776
        %v1560 = vunpack.c.l.b16 %v777
        %v1561 = vunpack.c.h.b16 %v777
        %v1562 = vunpack.c.l.b16 %v778
        %v1563 = vunpack.c.h.b16 %v778
        %v1564 = vunpack.c.l.b16 %v779
        %v1565 = vunpack.c.h.b16 %v779
        %v1566 = vunpack.c.l.b16 %v780
        %v1567 = vunpack.c.h.b16 %v780
        %v1568 = vunpack.c.l.b16 %v781
        %v1569 = vunpack.c.h.b16 %v781
        %v1570 = vunpack.c.l.b16 %v782
        %v1571 = vunpack.c.h.b16 %v782
        %v1572 = vunpack.c.l.b16 %v783
        %v1573 = vunpack.c.h.b16 %v783
        %v1574 = vunpack.c.l.b16 %v784
        %v1575 = vunpack.c.h.b16 %v784
        %v1576 = vunpack.c.l.b16 %v785
        %v1577 = vunpack.c.h.b16 %v785
        %v1578 = vunpack.c.l.b16 %v786
        %v1579 = vunpack.c.h.b16 %v786
        %v1580 = vunpack.c.l.b16 %v787
        %v1581 = vunpack.c.h.b16 %v787
        %v1582 = vunpack.c.l.b16 %v788
        %v1583 = vunpack.c.h.b16 %v788
        %v1584 = vunpack.c.l.b16 %v789
        %v1585 = vunpack.c.h.b16 %v789
        %v1586 = vunpack.c.l.b16 %v790
        %v1587 = vunpack.c.h.b16 %v790
        %v1588 = vunpack.c.l.b16 %v791
        %v1589 = vunpack.c.h.b16 %v791
        %v1590 = vunpack.c.l.b16 %v792
        %v1591 = vunpack.c.h.b16 %v792
        %v1592 = vunpack.c.l.b16 %v793
        %v1593 = vunpack.c.h.b16 %v793
        %v1594 = vunpack.c.l.b16 %v794
        %v1595 = vunpack.c.h.b16 %v794
        %v1596 = vunpack.c.l.b16 %v795
        %v1597 = vunpack.c.h.b16 %v795
        %v1598 = vunpack.c.l.b16 %v796
        %v1599 = vunpack.c.h.b16 %v796
        %v1600 = vunpack.c.l.b16 %v797
        %v1601 = vunpack.c.h.b16 %v797
        %v1602 = vunpack.c.l.b16 %v798
        %v1603 = vunpack.c.h.b16 %v798
        %v1604 = vunpack.c.l.b16 %v799
        %v1605 = vunpack.c.h.b16 %v799
        %v1606 = vunpack.c.l.b16 %v800
        %v1607 = vunpack.c.h.b16 %v800
        %v1608 = vunpack.c.l.b16 %v801
        %v1609 = vunpack.c.h.b16 %v801
        %v1610 = vunpack.c.l.b16 %v802
        %v1611 = vunpack.c.h.b16 %v802
        %v1612 = vunpack.c.l.b16 %v803
        %v1613 = vunpack.c.h.b16 %v803
        %v1614 = vpack.c.b16 %v1110, %v1102
        %v1615 = vpack.c.b16 %v1111, %v1103
        %v1616 = vpack.c.b16 %v1112, %v1104
        %v1617 = vpack.c.b16 %v1113, %v1105
        %v1618 = vpack.c.b16 %v1114, %v1106
        %v1619 = vpack.c.b16 %v1115, %v1107
        %v1620 = vpack.c.b16 %v1116, %v1108
        %v1621 = vpack.c.b16 %v1117, %v1109
        %v1622 = vpack.c.b16 %v1126, %v1118
        %v1623 = vpack.c.b16 %v1127, %v1119
        %v1624 = vpack.c.b16 %v1128, %v1120
        %v1625 = vpack.c.b16 %v1129, %v1121
        %v1626 = vpack.c.b16 %v1130, %v1122
        %v1627 = vpack.c.b16 %v1131, %v1123
        %v1628 = vpack.c.b16 %v1132, %v1124
        %v1629 = vpack.c.b16 %v1133, %v1125
        %v1630 = vpack.c.b16 %v1142, %v1134
        %v1631 = vpack.c.b16 %v1143, %v1135
        %v1632 = vpack.c.b16 %v1144, %v1136
        %v1633 = vpack.c.b16 %v1145, %v1137
        %v1634 = vpack.c.b16 %v1146, %v1138
        %v1635 = vpack.c.b16 %v1147, %v1139
        %v1636 = vpack.c.b16 %v1148, %v1140
        %v1637 = vpack.c.b16 %v1149, %v1141
        %v1638 = vpack.c.b16 %v1158, %v1150
        %v1639 = vpack.c.b16 %v1159, %v1151
        %v1640 = vpack.c.b16 %v1160, %v1152
        %v1641 = vpack.c.b16 %v1161, %v1153
        %v1642 = vpack.c.b16 %v1162, %v1154
        %v1643 = vpack.c.b16 %v1163, %v1155
        %v1644 = vpack.c.b16 %v1164, %v1156
        %v1645 = vpack.c.b16 %v1165, %v1157
        %v1646 = vpack.c.b16 %v1174, %v1166
        %v1647 = vpack.c.b16 %v1175, %v1167
        %v1648 = vpack.c.b16 %v1176, %v1168
        %v1649 = vpack.c.b16 %v1177, %v1169
        %v1650 = vpack.c.b16 %v1178, %v1170
        %v1651 = vpack.c.b16 %v1179, %v1171
        %v1652 = vpack.c.b16 %v1180, %v1172
        %v1653 = vpack.c.b16 %v1181, %v1173
        %v1654 = vpack.c.b16 %v1190, %v1182
        %v1655 = vpack.c.b16 %v1191, %v1183
        %v1656 = vpack.c.b16 %v1192, %v1184
        %v1657 = vpack.c.b16 %v1193, %v1185
        %v1658 = vpack.c.b16 %v1194, %v1186
        %v1659 = vpack.c.b16 %v1195, %v1187
        %v1660 = vpack.c.b16 %v1196, %v1188
        %v1661 = vpack.c.b16 %v1197, %v1189
        %v1662 = vpack.c.b16 %v1206, %v1198
        %v1663 = vpack.c.b16 %v1207, %v1199
        %v1664 = vpack.c.b16 %v1208, %v1200
        %v1665 = vpack.c.b16 %v1209, %v1201
        %v1666 = vpack.c.b16 %v1210, %v1202
        %v1667 = vpack.c.b16 %v1211, %v1203
        %v1668 = vpack.c.b16 %v1212, %v1204
        %v1669 = vpack.c.b16 %v1213, %v1205
        %v1670 = vpack.c.b16 %v1222, %v1214
        %v1671 = vpack.c.b16 %v1223, %v1215
        %v1672 = vpack.c.b16 %v1224, %v1216
        %v1673 = vpack.c.b16 %v1225, %v1217
        %v1674 = vpack.c.b16 %v1226, %v1218
        %v1675 = vpack.c.b16 %v1227, %v1219
        %v1676 = vpack.c.b16 %v1228, %v1220
        %v1677 = vpack.c.b16 %v1229, %v1221
        %v1678 = vpack.c.b16 %v1238, %v1230
        %v1679 = vpack.c.b16 %v1239, %v1231
        %v1680 = vpack.c.b16 %v1240, %v1232
        %v1681 = vpack.c.b16 %v1241, %v1233
        %v1682 = vpack.c.b16 %v1242, %v1234
        %v1683 = vpack.c.b16 %v1243, %v1235
        %v1684 = vpack.c.b16 %v1244, %v1236
        %v1685 = vpack.c.b16 %v1245, %v1237
        %v1686 = vpack.c.b16 %v1254, %v1246
        %v1687 = vpack.c.b16 %v1255, %v1247
        %v1688 = vpack.c.b16 %v1256, %v1248
        %v1689 = vpack.c.b16 %v1257, %v1249
        %v1690 = vpack.c.b16 %v1258, %v1250
        %v1691 = vpack.c.b16 %v1259, %v1251
        %v1692 = vpack.c.b16 %v1260, %v1252
        %v1693 = vpack.c.b16 %v1261, %v1253
        %v1694 = vpack.c.b16 %v1270, %v1262
        %v1695 = vpack.c.b16 %v1271, %v1263
        %v1696 = vpack.c.b16 %v1272, %v1264
        %v1697 = vpack.c.b16 %v1273, %v1265
        %v1698 = vpack.c.b16 %v1274, %v1266
        %v1699 = vpack.c.b16 %v1275, %v1267
        %v1700 = vpack.c.b16 %v1276, %v1268
        %v1701 = vpack.c.b16 %v1277, %v1269
        %v1702 = vpack.c.b16 %v1286, %v1278
        %v1703 = vpack.c.b16 %v1287, %v1279
        %v1704 = vpack.c.b16 %v1288, %v1280
        %v1705 = vpack.c.b16 %v1289, %v1281
        %v1706 = vpack.c.b16 %v1290, %v1282
        %v1707 = vpack.c.b16 %v1291, %v1283
        %v1708 = vpack.c.b16 %v1292, %v1284
        %v1709 = vpack.c.b16 %v1293, %v1285
        %v1710 = vpack.c.b16 %v1302, %v1294
        %v1711 = vpack.c.b16 %v1303, %v1295
        %v1712 = vpack.c.b16 %v1304, %v1296
        %v1713 = vpack.c.b16 %v1305, %v1297
        %v1714 = vpack.c.b16 %v1306, %v1298
        %v1715 = vpack.c.b16 %v1307, %v1299
        %v1716 = vpack.c.b16 %v1308, %v1300
        %v1717 = vpack.c.b16 %v1309, %v1301
        %v1718 = vpack.c.b16 %v1318, %v1310
        %v1719 = vpack.c.b16 %v1319, %v1311
        %v1720 = vpack.c.b16 %v1320, %v1312
        %v1721 = vpack.c.b16 %v1321, %v1313
        %v1722 = vpack.c.b16 %v1322, %v1314
        %v1723 = vpack.c.b16 %v1323, %v1315
        %v1724 = vpack.c.b16 %v1324, %v1316
        %v1725 = vpack.c.b16 %v1325, %v1317
        %v1726 = vpack.c.b16 %v1334, %v1326
        %v1727 = vpack.c.b16 %v1335, %v1327
        %v1728 = vpack.c.b16 %v1336, %v1328
        %v1729 = vpack.c.b16 %v1337, %v1329
        %v1730 = vpack.c.b16 %v1338, %v1330
        %v1731 = vpack.c.b16 %v1339, %v1331
        %v1732 = vpack.c.b16 %v1340, %v1332
        %v1733 = vpack.c.b16 %v1341, %v1333
        %v1734 = vpack.c.b16 %v1350, %v1342
        %v1735 = vpack.c.b16 %v1351, %v1343
        %v1736 = vpack.c.b16 %v1352, %v1344
        %v1737 = vpack.c.b16 %v1353, %v1345
        %v1738 = vpack.c.b16 %v1354, %v1346
        %v1739 = vpack.c.b16 %v1355, %v1347
        %v1740 = vpack.c.b16 %v1356, %v1348
        %v1741 = vpack.c.b16 %v1357, %v1349
        %v1742 = vpack.c.b16 %v1366, %v1358
        %v1743 = vpack.c.b16 %v1367, %v1359
        %v1744 = vpack.c.b16 %v1368, %v1360
        %v1745 = vpack.c.b16 %v1369, %v1361
        %v1746 = vpack.c.b16 %v1370, %v1362
        %v1747 = vpack.c.b16 %v1371, %v1363
        %v1748 = vpack.c.b16 %v1372, %v1364
        %v1749 = vpack.c.b16 %v1373, %v1365
        %v1750 = vpack.c.b16 %v1382, %v1374
        %v1751 = vpack.c.b16 %v1383, %v1375
        %v1752 = vpack.c.b16 %v1384, %v1376
        %v1753 = vpack.c.b16 %v1385, %v1377
        %v1754 = vpack.c.b16 %v1386, %v1378
        %v1755 = vpack.c.b16 %v1387, %v1379
        %v1756 = vpack.c.b16 %v1388, %v1380
        %v1757 = vpack.c.b16 %v1389, %v1381
        %v1758 = vpack.c.b16 %v1398, %v1390
        %v1759 = vpack.c.b16 %v1399, %v1391
        %v1760 = vpack.c.b16 %v1400, %v1392
        %v1761 = vpack.c.b16 %v1401, %v1393
        %v1762 = vpack.c.b16 %v1402, %v1394
        %v1763 = vpack.c.b16 %v1403, %v1395
        %v1764 = vpack.c.b16 %v1404, %v1396
        %v1765 = vpack.c.b16 %v1405, %v1397
        %v1766 = vpack.c.b16 %v1414, %v1406
        %v1767 = vpack.c.b16 %v1415, %v1407
        %v1768 = vpack.c.b16 %v1416, %v1408
        %v1769 = vpack.c.b16 %v1417, %v1409
        %v1770 = vpack.c.b16 %v1418, %v1410
        %v1771 = vpack.c.b16 %v1419, %v1411
        %v1772 = vpack.c.b16 %v1420, %v1412
        %v1773 = vpack.c.b16 %v1421, %v1413
        %v1774 = vpack.c.b16 %v1430, %v1422
        %v1775 = vpack.c.b16 %v1431, %v1423
        %v1776 = vpack.c.b16 %v1432, %v1424
        %v1777 = vpack.c.b16 %v1433, %v1425
        %v1778 = vpack.c.b16 %v1434, %v1426
        %v1779 = vpack.c.b16 %v1435, %v1427
        %v1780 = vpack.c.b16 %v1436, %v1428
        %v1781 = vpack.c.b16 %v1437, %v1429
        %v1782 = vpack.c.b16 %v1446, %v1438
        %v1783 = vpack.c.b16 %v1447, %v1439
        %v1784 = vpack.c.b16 %v1448, %v1440
        %v1785 = vpack.c.b16 %v1449, %v1441
        %v1786 = vpack.c.b16 %v1450, %v1442
        %v1787 = vpack.c.b16 %v1451, %v1443
        %v1788 = vpack.c.b16 %v1452, %v1444
        %v1789 = vpack.c.b16 %v1453, %v1445
        %v1790 = vpack.c.b16 %v1462, %v1454
        %v1791 = vpack.c.b16 %v1463, %v1455
        %v1792 = vpack.c.b16 %v1464, %v1456
        %v1793 = vpack.c.b16 %v1465, %v1457
        %v1794 = vpack.c.b16 %v1466, %v1458
        %v1795 = vpack.c.b16 %v1467, %v1459
        %v1796 = vpack.c.b16 %v1468, %v1460
        %v1797 = vpack.c.b16 %v1469, %v1461
        %v1798 = vpack.c.b16 %v1478, %v1470
        %v1799 = vpack.c.b16 %v1479, %v1471
        %v1800 = vpack.c.b16 %v1480, %v1472
        %v1801 = vpack.c.b16 %v1481, %v1473
        %v1802 = vpack.c.b16 %v1482, %v1474
        %v1803 = vpack.c.b16 %v1483, %v1475
        %v1804 = vpack.c.b16 %v1484, %v1476
        %v1805 = vpack.c.b16 %v1485, %v1477
        %v1806 = vpack.c.b16 %v1494, %v1486
        %v1807 = vpack.c.b16 %v1495, %v1487
        %v1808 = vpack.c.b16 %v1496, %v1488
        %v1809 = vpack.c.b16 %v1497, %v1489
        %v1810 = vpack.c.b16 %v1498, %v1490
        %v1811 = vpack.c.b16 %v1499, %v1491
        %v1812 = vpack.c.b16 %v1500, %v1492
        %v1813 = vpack.c.b16 %v1501, %v1493
        %v1814 = vpack.c.b16 %v1510, %v1502
        %v1815 = vpack.c.b16 %v1511, %v1503
        %v1816 = vpack.c.b16 %v1512, %v1504
        %v1817 = vpack.c.b16 %v1513, %v1505
        %v1818 = vpack.c.b16 %v1514, %v1506
        %v1819 = vpack.c.b16 %v1515, %v1507
        %v1820 = vpack.c.b16 %v1516, %v1508
        %v1821 = vpack.c.b16 %v1517, %v1509
        %v1822 = vpack.c.b16 %v1526, %v1518
        %v1823 = vpack.c.b16 %v1527, %v1519
        %v1824 = vpack.c.b16 %v1528, %v1520
        %v1825 = vpack.c.b16 %v1529, %v1521
        %v1826 = vpack.c.b16 %v1530, %v1522
        %v1827 = vpack.c.b16 %v1531, %v1523
        %v1828 = vpack.c.b16 %v1532, %v1524
        %v1829 = vpack.c.b16 %v1533, %v1525
        %v1830 = vpack.c.b16 %v1542, %v1534
        %v1831 = vpack.c.b16 %v1543, %v1535
        %v1832 = vpack.c.b16 %v1544, %v1536
        %v1833 = vpack.c.b16 %v1545, %v1537
        %v1834 = vpack.c.b16 %v1546, %v1538
        %v1835 = vpack.c.b16 %v1547, %v1539
        %v1836 = vpack.c.b16 %v1548, %v1540
        %v1837 = vpack.c.b16 %v1549, %v1541
        %v1838 = vpack.c.b16 %v1558, %v1550
        %v1839 = vpack.c.b16 %v1559, %v1551
        %v1840 = vpack.c.b16 %v1560, %v1552
        %v1841 = vpack.c.b16 %v1561, %v1553
        %v1842 = vpack.c.b16 %v1562, %v1554
        %v1843 = vpack.c.b16 %v1563, %v1555
        %v1844 = vpack.c.b16 %v1564, %v1556
        %v1845 = vpack.c.b16 %v1565, %v1557
        %v1846 = vpack.c.b16 %v1574, %v1566
        %v1847 = vpack.c.b16 %v1575, %v1567
        %v1848 = vpack.c.b16 %v1576, %v1568
        %v1849 = vpack.c.b16 %v1577, %v1569
        %v1850 = vpack.c.b16 %v1578, %v1570
        %v1851 = vpack.c.b16 %v1579, %v1571
        %v1852 = vpack.c.b16 %v1580, %v1572
        %v1853 = vpack.c.b16 %v1581, %v1573
        %v1854 = vpack.c.b16 %v1590, %v1582
        %v1855 = vpack.c.b16 %v1591, %v1583
        %v1856 = vpack.c.b16 %v1592, %v1584
        %v1857 = vpack.c.b16 %v1593, %v1585
        %v1858 = vpack.c.b16 %v1594, %v1586
        %v1859 = vpack.c.b16 %v1595, %v1587
        %v1860 = vpack.c.b16 %v1596, %v1588
        %v1861 = vpack.c.b16 %v1597, %v1589
        %v1862 = vpack.c.b16 %v1606, %v1598
        %v1863 = vpack.c.b16 %v1607, %v1599
        %v1864 = vpack.c.b16 %v1608, %v1600
        %v1865 = vpack.c.b16 %v1609, %v1601
        %v1866 = vpack.c.b16 %v1610, %v1602
        %v1867 = vpack.c.b16 %v1611, %v1603
        %v1868 = vpack.c.b16 %v1612, %v1604
        %v1869 = vpack.c.b16 %v1613, %v1605
        %2126 = vmatprep.subr.bf16.mxu0 %v1615
        %2127 = vmatpush1.bf16.msra.mxu0 %v1614
        %2128 = vmatprep.subr.bf16.mxu0 %v1623
        %2129 = vmatpush1.bf16.msra.mxu0 %v1622
        %2130 = vmatprep.subr.bf16.mxu0 %v1631
        %2131 = vmatpush1.bf16.msra.mxu0 %v1630
        %2132 = vmatprep.subr.bf16.mxu0 %v1639
        %2133 = vmatpush1.bf16.msra.mxu0 %v1638
        %2134 = vmatprep.subr.bf16.mxu0 %v1647
        %2135 = vmatpush1.bf16.msra.mxu0 %v1646
        %2136 = vmatprep.subr.bf16.mxu0 %v1655
        %2137 = vmatpush1.bf16.msra.mxu0 %v1654
        %2138 = vmatprep.subr.bf16.mxu0 %v1663
        %2139 = vmatpush1.bf16.msra.mxu0 %v1662
        %2140 = vmatprep.subr.bf16.mxu0 %v1671
        %2141 = vmatpush1.bf16.msra.mxu0 %v1670
        %2142 = vmatprep.subr.bf16.mxu0 %v1679
        %2143 = vmatpush1.bf16.msra.mxu0 %v1678
        %2144 = vmatprep.subr.bf16.mxu0 %v1687
        %2145 = vmatpush1.bf16.msra.mxu0 %v1686
        %2146 = vmatprep.subr.bf16.mxu0 %v1695
        %2147 = vmatpush1.bf16.msra.mxu0 %v1694
        %2148 = vmatprep.subr.bf16.mxu0 %v1703
        %2149 = vmatpush1.bf16.msra.mxu0 %v1702
        %2150 = vmatprep.subr.bf16.mxu0 %v1711
        %2151 = vmatpush1.bf16.msra.mxu0 %v1710
        %2152 = vmatprep.subr.bf16.mxu0 %v1719
        %2153 = vmatpush1.bf16.msra.mxu0 %v1718
        %2154 = vmatprep.subr.bf16.mxu0 %v1727
        %2155 = vmatpush1.bf16.msra.mxu0 %v1726
        %2156 = vmatprep.subr.bf16.mxu0 %v1735
        %2157 = vmatpush1.bf16.msra.mxu0 %v1734
        %2158 = vmatprep.mubr.bf16.mxu0 %v545
        %2159 = vmatmul.mubr.bf16.gmra.mrb[0].mxu0 %v544
        %v2160 = vpop.f32.mrb[0].mxu0
        %v2161 = vadd.f32 %v809, %v2160
        %v2162 = vpop.f32.mrb[0].mxu0
        %v2163 = vadd.f32 %v813, %v2162
        %v2164 = vpop.f32.mrb[0].mxu0
        %v2165 = vpop.f32.mrb[0].mxu0
        %2166 = vdwg.mxu0
        %2167 = vmatprep.subr.bf16.mxu0 %v1743
        %2168 = vmatpush1.bf16.msra.mxu0 %v1742
        %2169 = vmatprep.subr.bf16.mxu0 %v1751
        %2170 = vmatpush1.bf16.msra.mxu0 %v1750
        %2171 = vmatprep.subr.bf16.mxu0 %v1759
        %2172 = vmatpush1.bf16.msra.mxu0 %v1758
        %2173 = vmatprep.subr.bf16.mxu0 %v1767
        %2174 = vmatpush1.bf16.msra.mxu0 %v1766
        %2175 = vmatprep.subr.bf16.mxu0 %v1775
        %2176 = vmatpush1.bf16.msra.mxu0 %v1774
        %2177 = vmatprep.subr.bf16.mxu0 %v1783
        %2178 = vmatpush1.bf16.msra.mxu0 %v1782
        %2179 = vmatprep.subr.bf16.mxu0 %v1791
        %2180 = vmatpush1.bf16.msra.mxu0 %v1790
        %2181 = vmatprep.subr.bf16.mxu0 %v1799
        %2182 = vmatpush1.bf16.msra.mxu0 %v1798
        %2183 = vmatprep.subr.bf16.mxu0 %v1807
        %2184 = vmatpush1.bf16.msra.mxu0 %v1806
        %2185 = vmatprep.subr.bf16.mxu0 %v1815
        %2186 = vmatpush1.bf16.msra.mxu0 %v1814
        %2187 = vmatprep.subr.bf16.mxu0 %v1823
        %2188 = vmatpush1.bf16.msra.mxu0 %v1822
        %2189 = vmatprep.subr.bf16.mxu0 %v1831
        %2190 = vmatpush1.bf16.msra.mxu0 %v1830
        %2191 = vmatprep.subr.bf16.mxu0 %v1839
        %2192 = vmatpush1.bf16.msra.mxu0 %v1838
        %2193 = vmatprep.subr.bf16.mxu0 %v1847
        %2194 = vmatpush1.bf16.msra.mxu0 %v1846
        %2195 = vmatprep.subr.bf16.mxu0 %v1855
        %2196 = vmatpush1.bf16.msra.mxu0 %v1854
        %2197 = vmatprep.subr.bf16.mxu0 %v1863
        %2198 = vmatpush1.bf16.msra.mxu0 %v1862
        %2199 = vmatprep.mubr.bf16.mxu0 %v547
        %2200 = vmatmul.mubr.bf16.gmra.mrb[0].mxu0 %v546
        %v2201 = vpop.f32.mrb[0].mxu0
        %v2202 = vadd.f32 %v2161, %v2201
        %v2203 = vpop.f32.mrb[0].mxu0
        %v2204 = vadd.f32 %v2163, %v2203
        %v2205 = vpop.f32.mrb[0].mxu0
        %v2206 = vpop.f32.mrb[0].mxu0
        %2207 = vdwg.mxu0
        %2208 = vmatprep.subr.bf16.mxu0 %v1617
        %2209 = vmatpush1.bf16.msra.mxu0 %v1616
        %2210 = vmatprep.subr.bf16.mxu0 %v1625
        %2211 = vmatpush1.bf16.msra.mxu0 %v1624
        %2212 = vmatprep.subr.bf16.mxu0 %v1633
        %2213 = vmatpush1.bf16.msra.mxu0 %v1632
        %2214 = vmatprep.subr.bf16.mxu0 %v1641
        %2215 = vmatpush1.bf16.msra.mxu0 %v1640
        %2216 = vmatprep.subr.bf16.mxu0 %v1649
        %2217 = vmatpush1.bf16.msra.mxu0 %v1648
        %2218 = vmatprep.subr.bf16.mxu0 %v1657
        %2219 = vmatpush1.bf16.msra.mxu0 %v1656
        %2220 = vmatprep.subr.bf16.mxu0 %v1665
        %2221 = vmatpush1.bf16.msra.mxu0 %v1664
        %2222 = vmatprep.subr.bf16.mxu0 %v1673
        %2223 = vmatpush1.bf16.msra.mxu0 %v1672
        %2224 = vmatprep.subr.bf16.mxu0 %v1681
        %2225 = vmatpush1.bf16.msra.mxu0 %v1680
        %2226 = vmatprep.subr.bf16.mxu0 %v1689
        %2227 = vmatpush1.bf16.msra.mxu0 %v1688
        %2228 = vmatprep.subr.bf16.mxu0 %v1697
        %2229 = vmatpush1.bf16.msra.mxu0 %v1696
        %2230 = vmatprep.subr.bf16.mxu0 %v1705
        %2231 = vmatpush1.bf16.msra.mxu0 %v1704
        %2232 = vmatprep.subr.bf16.mxu0 %v1713
        %2233 = vmatpush1.bf16.msra.mxu0 %v1712
        %2234 = vmatprep.subr.bf16.mxu0 %v1721
        %2235 = vmatpush1.bf16.msra.mxu0 %v1720
        %2236 = vmatprep.subr.bf16.mxu0 %v1729
        %2237 = vmatpush1.bf16.msra.mxu0 %v1728
        %2238 = vmatprep.subr.bf16.mxu0 %v1737
        %2239 = vmatpush1.bf16.msra.mxu0 %v1736
        %2240 = vmatprep.mubr.bf16.mxu0 %v545
        %2241 = vmatmul.mubr.bf16.gmra.mrb[0].mxu0 %v544
        %v2242 = vpop.f32.mrb[0].mxu0
        %v2243 = vadd.f32 %v817, %v2242
        %v2244 = vpop.f32.mrb[0].mxu0
        %v2245 = vadd.f32 %v821, %v2244
        %v2246 = vpop.f32.mrb[0].mxu0
        %v2247 = vpop.f32.mrb[0].mxu0
        %2248 = vdwg.mxu0
        %2249 = vmatprep.subr.bf16.mxu0 %v1745
        %2250 = vmatpush1.bf16.msra.mxu0 %v1744
        %2251 = vmatprep.subr.bf16.mxu0 %v1753
        %2252 = vmatpush1.bf16.msra.mxu0 %v1752
        %2253 = vmatprep.subr.bf16.mxu0 %v1761
        %2254 = vmatpush1.bf16.msra.mxu0 %v1760
        %2255 = vmatprep.subr.bf16.mxu0 %v1769
        %2256 = vmatpush1.bf16.msra.mxu0 %v1768
        %2257 = vmatprep.subr.bf16.mxu0 %v1777
        %2258 = vmatpush1.bf16.msra.mxu0 %v1776
        %2259 = vmatprep.subr.bf16.mxu0 %v1785
        %2260 = vmatpush1.bf16.msra.mxu0 %v1784
        %2261 = vmatprep.subr.bf16.mxu0 %v1793
        %2262 = vmatpush1.bf16.msra.mxu0 %v1792
        %2263 = vmatprep.subr.bf16.mxu0 %v1801
        %2264 = vmatpush1.bf16.msra.mxu0 %v1800
        %2265 = vmatprep.subr.bf16.mxu0 %v1809
        %2266 = vmatpush1.bf16.msra.mxu0 %v1808
        %2267 = vmatprep.subr.bf16.mxu0 %v1817
        %2268 = vmatpush1.bf16.msra.mxu0 %v1816
        %2269 = vmatprep.subr.bf16.mxu0 %v1825
        %2270 = vmatpush1.bf16.msra.mxu0 %v1824
        %2271 = vmatprep.subr.bf16.mxu0 %v1833
        %2272 = vmatpush1.bf16.msra.mxu0 %v1832
        %2273 = vmatprep.subr.bf16.mxu0 %v1841
        %2274 = vmatpush1.bf16.msra.mxu0 %v1840
        %2275 = vmatprep.subr.bf16.mxu0 %v1849
        %2276 = vmatpush1.bf16.msra.mxu0 %v1848
        %2277 = vmatprep.subr.bf16.mxu0 %v1857
        %2278 = vmatpush1.bf16.msra.mxu0 %v1856
        %2279 = vmatprep.subr.bf16.mxu0 %v1865
        %2280 = vmatpush1.bf16.msra.mxu0 %v1864
        %2281 = vmatprep.mubr.bf16.mxu0 %v547
        %2282 = vmatmul.mubr.bf16.gmra.mrb[0].mxu0 %v546
        %v2283 = vpop.f32.mrb[0].mxu0
        %v2284 = vadd.f32 %v2243, %v2283
        %v2285 = vpop.f32.mrb[0].mxu0
        %v2286 = vadd.f32 %v2245, %v2285
        %v2287 = vpop.f32.mrb[0].mxu0
        %v2288 = vpop.f32.mrb[0].mxu0
        %2289 = vdwg.mxu0
        %2290 = vmatprep.subr.bf16.mxu0 %v1619
        %2291 = vmatpush1.bf16.msra.mxu0 %v1618
        %2292 = vmatprep.subr.bf16.mxu0 %v1627
        %2293 = vmatpush1.bf16.msra.mxu0 %v1626
        %2294 = vmatprep.subr.bf16.mxu0 %v1635
        %2295 = vmatpush1.bf16.msra.mxu0 %v1634
        %2296 = vmatprep.subr.bf16.mxu0 %v1643
        %2297 = vmatpush1.bf16.msra.mxu0 %v1642
        %2298 = vmatprep.subr.bf16.mxu0 %v1651
        %2299 = vmatpush1.bf16.msra.mxu0 %v1650
        %2300 = vmatprep.subr.bf16.mxu0 %v1659
        %2301 = vmatpush1.bf16.msra.mxu0 %v1658
        %2302 = vmatprep.subr.bf16.mxu0 %v1667
        %2303 = vmatpush1.bf16.msra.mxu0 %v1666
        %2304 = vmatprep.subr.bf16.mxu0 %v1675
        %2305 = vmatpush1.bf16.msra.mxu0 %v1674
        %2306 = vmatprep.subr.bf16.mxu0 %v1683
        %2307 = vmatpush1.bf16.msra.mxu0 %v1682
        %2308 = vmatprep.subr.bf16.mxu0 %v1691
        %2309 = vmatpush1.bf16.msra.mxu0 %v1690
        %2310 = vmatprep.subr.bf16.mxu0 %v1699
        %2311 = vmatpush1.bf16.msra.mxu0 %v1698
        %2312 = vmatprep.subr.bf16.mxu0 %v1707
        %2313 = vmatpush1.bf16.msra.mxu0 %v1706
        %2314 = vmatprep.subr.bf16.mxu0 %v1715
        %2315 = vmatpush1.bf16.msra.mxu0 %v1714
        %2316 = vmatprep.subr.bf16.mxu0 %v1723
        %2317 = vmatpush1.bf16.msra.mxu0 %v1722
        %2318 = vmatprep.subr.bf16.mxu0 %v1731
        %2319 = vmatpush1.bf16.msra.mxu0 %v1730
        %2320 = vmatprep.subr.bf16.mxu0 %v1739
        %2321 = vmatpush1.bf16.msra.mxu0 %v1738
        %2322 = vmatprep.mubr.bf16.mxu0 %v545
        %2323 = vmatmul.mubr.bf16.gmra.mrb[0].mxu0 %v544
        %v2324 = vpop.f32.mrb[0].mxu0
        %v2325 = vadd.f32 %v825, %v2324
        %v2326 = vpop.f32.mrb[0].mxu0
        %v2327 = vadd.f32 %v829, %v2326
        %v2328 = vpop.f32.mrb[0].mxu0
        %v2329 = vpop.f32.mrb[0].mxu0
        %2330 = vdwg.mxu0
        %2331 = vmatprep.subr.bf16.mxu0 %v1747
        %2332 = vmatpush1.bf16.msra.mxu0 %v1746
        %2333 = vmatprep.subr.bf16.mxu0 %v1755
        %2334 = vmatpush1.bf16.msra.mxu0 %v1754
        %2335 = vmatprep.subr.bf16.mxu0 %v1763
        %2336 = vmatpush1.bf16.msra.mxu0 %v1762
        %2337 = vmatprep.subr.bf16.mxu0 %v1771
        %2338 = vmatpush1.bf16.msra.mxu0 %v1770
        %2339 = vmatprep.subr.bf16.mxu0 %v1779
        %2340 = vmatpush1.bf16.msra.mxu0 %v1778
        %2341 = vmatprep.subr.bf16.mxu0 %v1787
        %2342 = vmatpush1.bf16.msra.mxu0 %v1786
        %2343 = vmatprep.subr.bf16.mxu0 %v1795
        %2344 = vmatpush1.bf16.msra.mxu0 %v1794
        %2345 = vmatprep.subr.bf16.mxu0 %v1803
        %2346 = vmatpush1.bf16.msra.mxu0 %v1802
        %2347 = vmatprep.subr.bf16.mxu0 %v1811
        %2348 = vmatpush1.bf16.msra.mxu0 %v1810
        %2349 = vmatprep.subr.bf16.mxu0 %v1819
        %2350 = vmatpush1.bf16.msra.mxu0 %v1818
        %2351 = vmatprep.subr.bf16.mxu0 %v1827
        %2352 = vmatpush1.bf16.msra.mxu0 %v1826
        %2353 = vmatprep.subr.bf16.mxu0 %v1835
        %2354 = vmatpush1.bf16.msra.mxu0 %v1834
        %2355 = vmatprep.subr.bf16.mxu0 %v1843
        %2356 = vmatpush1.bf16.msra.mxu0 %v1842
        %2357 = vmatprep.subr.bf16.mxu0 %v1851
        %2358 = vmatpush1.bf16.msra.mxu0 %v1850
        %2359 = vmatprep.subr.bf16.mxu0 %v1859
        %2360 = vmatpush1.bf16.msra.mxu0 %v1858
        %2361 = vmatprep.subr.bf16.mxu0 %v1867
        %2362 = vmatpush1.bf16.msra.mxu0 %v1866
        %2363 = vmatprep.mubr.bf16.mxu0 %v547
        %2364 = vmatmul.mubr.bf16.gmra.mrb[0].mxu0 %v546
        %v2365 = vpop.f32.mrb[0].mxu0
        %v2366 = vadd.f32 %v2325, %v2365
        %v2367 = vpop.f32.mrb[0].mxu0
        %v2368 = vadd.f32 %v2327, %v2367
        %v2369 = vpop.f32.mrb[0].mxu0
        %v2370 = vpop.f32.mrb[0].mxu0
        %2371 = vdwg.mxu0
        %2372 = vmatprep.subr.bf16.mxu0 %v1621
        %2373 = vmatpush1.bf16.msra.mxu0 %v1620
        %2374 = vmatprep.subr.bf16.mxu0 %v1629
        %2375 = vmatpush1.bf16.msra.mxu0 %v1628
        %2376 = vmatprep.subr.bf16.mxu0 %v1637
        %2377 = vmatpush1.bf16.msra.mxu0 %v1636
        %2378 = vmatprep.subr.bf16.mxu0 %v1645
        %2379 = vmatpush1.bf16.msra.mxu0 %v1644
        %2380 = vmatprep.subr.bf16.mxu0 %v1653
        %2381 = vmatpush1.bf16.msra.mxu0 %v1652
        %2382 = vmatprep.subr.bf16.mxu0 %v1661
        %2383 = vmatpush1.bf16.msra.mxu0 %v1660
        %2384 = vmatprep.subr.bf16.mxu0 %v1669
        %2385 = vmatpush1.bf16.msra.mxu0 %v1668
        %2386 = vmatprep.subr.bf16.mxu0 %v1677
        %2387 = vmatpush1.bf16.msra.mxu0 %v1676
        %2388 = vmatprep.subr.bf16.mxu0 %v1685
        %2389 = vmatpush1.bf16.msra.mxu0 %v1684
        %2390 = vmatprep.subr.bf16.mxu0 %v1693
        %2391 = vmatpush1.bf16.msra.mxu0 %v1692
        %2392 = vmatprep.subr.bf16.mxu0 %v1701
        %2393 = vmatpush1.bf16.msra.mxu0 %v1700
        %2394 = vmatprep.subr.bf16.mxu0 %v1709
        %2395 = vmatpush1.bf16.msra.mxu0 %v1708
        %2396 = vmatprep.subr.bf16.mxu0 %v1717
        %2397 = vmatpush1.bf16.msra.mxu0 %v1716
        %2398 = vmatprep.subr.bf16.mxu0 %v1725
        %2399 = vmatpush1.bf16.msra.mxu0 %v1724
        %2400 = vmatprep.subr.bf16.mxu0 %v1733
        %2401 = vmatpush1.bf16.msra.mxu0 %v1732
        %2402 = vmatprep.subr.bf16.mxu0 %v1741
        %2403 = vmatpush1.bf16.msra.mxu0 %v1740
        %2404 = vmatprep.mubr.bf16.mxu0 %v545
        %2405 = vmatmul.mubr.bf16.gmra.mrb[0].mxu0 %v544
        %v2406 = vpop.f32.mrb[0].mxu0
        %v2407 = vadd.f32 %v833, %v2406
        %v2408 = vpop.f32.mrb[0].mxu0
        %v2409 = vadd.f32 %v837, %v2408
        %v2410 = vpop.f32.mrb[0].mxu0
        %v2411 = vpop.f32.mrb[0].mxu0
        %2412 = vdwg.mxu0
        %2413 = vmatprep.subr.bf16.mxu0 %v1749
        %2414 = vmatpush1.bf16.msra.mxu0 %v1748
        %2415 = vmatprep.subr.bf16.mxu0 %v1757
        %2416 = vmatpush1.bf16.msra.mxu0 %v1756
        %2417 = vmatprep.subr.bf16.mxu0 %v1765
        %2418 = vmatpush1.bf16.msra.mxu0 %v1764
        %2419 = vmatprep.subr.bf16.mxu0 %v1773
        %2420 = vmatpush1.bf16.msra.mxu0 %v1772
        %2421 = vmatprep.subr.bf16.mxu0 %v1781
        %2422 = vmatpush1.bf16.msra.mxu0 %v1780
        %2423 = vmatprep.subr.bf16.mxu0 %v1789
        %2424 = vmatpush1.bf16.msra.mxu0 %v1788
        %2425 = vmatprep.subr.bf16.mxu0 %v1797
        %2426 = vmatpush1.bf16.msra.mxu0 %v1796
        %2427 = vmatprep.subr.bf16.mxu0 %v1805
        %2428 = vmatpush1.bf16.msra.mxu0 %v1804
        %2429 = vmatprep.subr.bf16.mxu0 %v1813
        %2430 = vmatpush1.bf16.msra.mxu0 %v1812
        %2431 = vmatprep.subr.bf16.mxu0 %v1821
        %2432 = vmatpush1.bf16.msra.mxu0 %v1820
        %2433 = vmatprep.subr.bf16.mxu0 %v1829
        %2434 = vmatpush1.bf16.msra.mxu0 %v1828
        %2435 = vmatprep.subr.bf16.mxu0 %v1837
        %2436 = vmatpush1.bf16.msra.mxu0 %v1836
        %2437 = vmatprep.subr.bf16.mxu0 %v1845
        %2438 = vmatpush1.bf16.msra.mxu0 %v1844
        %2439 = vmatprep.subr.bf16.mxu0 %v1853
        %2440 = vmatpush1.bf16.msra.mxu0 %v1852
        %2441 = vmatprep.subr.bf16.mxu0 %v1861
        %2442 = vmatpush1.bf16.msra.mxu0 %v1860
        %2443 = vmatprep.subr.bf16.mxu0 %v1869
        %2444 = vmatpush1.bf16.msra.mxu0 %v1868
        %2445 = vmatprep.mubr.bf16.mxu0 %v547
        %2446 = vmatmul.mubr.bf16.gmra.mrb[0].mxu0 %v546
        %v2447 = vpop.f32.mrb[0].mxu0
        %v2448 = vadd.f32 %v2407, %v2447
        %v2449 = vpop.f32.mrb[0].mxu0
        %v2450 = vadd.f32 %v2409, %v2449
        %v2451 = vpop.f32.mrb[0].mxu0
        %v2452 = vpop.f32.mrb[0].mxu0
        %2453 = vdwg.mxu0
        %v2454 = vmax.f32 %v2202, 0.0
        %v2455 = vmax.f32 %v2204, 0.0
        %v2456 = vmax.f32 %v2284, 0.0
        %v2457 = vmax.f32 %v2286, 0.0
        %v2458 = vmax.f32 %v2366, 0.0
        %v2459 = vmax.f32 %v2368, 0.0
        %v2460 = vmax.f32 %v2448, 0.0
        %v2461 = vmax.f32 %v2450, 0.0
        %v2462 = vld [vmem:[#allocation10] sm:$0xff]
        %v2463 = vld [vmem:[#allocation10 + $0x8] sm:$0xff]
        %v2466 = vcombine.high %v2462, %v2462
        %v2468 = vunpack.c.l.s4 1983009808
        %v2469 = vunpack.c.0.s8 %v2468
        %v2470 = vlaneseq
        %v2471 = vshrl.u32 %v2470, 7
        %v2472 = vsub.s32 %v2469, %v2471
        %v2473 = vrot.slane %v2462, %v2472
        %v2475 = vunpack.c.l.s4 1983009808
        %v2476 = vunpack.c.0.s8 %v2475
        %v2477 = vlaneseq
        %v2478 = vshrl.u32 %v2477, 7
        %v2479 = vsub.s32 %v2476, %v2478
        %v2480 = vrot.slane %v2466, %v2479
        %v2481 = vcombine.high %v2473, %v2473
        %v2482 = vcombine.high %v2480, %v2480
        %v2483 = vcombine.high %v2463, %v2463
        %v2485 = vunpack.c.l.s4 1983009808
        %v2486 = vunpack.c.0.s8 %v2485
        %v2487 = vlaneseq
        %v2488 = vshrl.u32 %v2487, 7
        %v2489 = vsub.s32 %v2486, %v2488
        %v2490 = vrot.slane %v2463, %v2489
        %v2492 = vunpack.c.l.s4 1983009808
        %v2493 = vunpack.c.0.s8 %v2492
        %v2494 = vlaneseq
        %v2495 = vshrl.u32 %v2494, 7
        %v2496 = vsub.s32 %v2493, %v2495
        %v2497 = vrot.slane %v2483, %v2496
        %v2498 = vcombine.high %v2490, %v2490
        %v2499 = vcombine.high %v2497, %v2497
        %v2508 = vmul.f32 %v2454, %v2473
        %v2509 = vmul.f32 %v2455, %v2481
        %v2510 = vmul.f32 %v2456, %v2480
        %v2511 = vmul.f32 %v2457, %v2482
        %v2512 = vmul.f32 %v2458, %v2490
        %v2513 = vmul.f32 %v2459, %v2498
        %v2514 = vmul.f32 %v2460, %v2497
        %v2515 = vmul.f32 %v2461, %v2499
        %v2516 = vpack.c.bf16 %v2508, %v2508
        %v2517 = vpack.c.bf16 %v2509, %v2509
        %v2518 = vpack.c.bf16 %v2510, %v2510
        %v2519 = vpack.c.bf16 %v2511, %v2511
        %v2520 = vpack.c.bf16 %v2512, %v2512
        %v2521 = vpack.c.bf16 %v2513, %v2513
        %v2522 = vpack.c.bf16 %v2514, %v2514
        %v2523 = vpack.c.bf16 %v2515, %v2515
        %v2524 = vld [vmem:[#allocation11] sm:$0xff]
        %v2525 = vld [vmem:[#allocation11 + $0x8] sm:$0xff]
        %v2526 = vld [vmem:[#allocation11 + $0x10] sm:$0xff]
        %v2527 = vld [vmem:[#allocation11 + $0x18] sm:$0xff]
        %v2528 = vld [vmem:[#allocation11 + $0x20] sm:$0xff]
        %v2529 = vld [vmem:[#allocation11 + $0x28] sm:$0xff]
        %v2530 = vld [vmem:[#allocation11 + $0x30] sm:$0xff]
        %v2531 = vld [vmem:[#allocation11 + $0x38] sm:$0xff]
        %v2532 = vld [vmem:[#allocation11 + $0x40] sm:$0xff]
        %v2533 = vld [vmem:[#allocation11 + $0x48] sm:$0xff]
        %v2534 = vld [vmem:[#allocation11 + $0x50] sm:$0xff]
        %v2535 = vld [vmem:[#allocation11 + $0x58] sm:$0xff]
        %v2536 = vld [vmem:[#allocation11 + $0x60] sm:$0xff]
        %v2537 = vld [vmem:[#allocation11 + $0x68] sm:$0xff]
        %v2538 = vld [vmem:[#allocation11 + $0x70] sm:$0xff]
        %v2539 = vld [vmem:[#allocation11 + $0x78] sm:$0xff]
        %v2540 = vld [vmem:[#allocation11 + $0x80] sm:$0xff]
        %v2541 = vld [vmem:[#allocation11 + $0x88] sm:$0xff]
        %v2542 = vld [vmem:[#allocation11 + $0x90] sm:$0xff]
        %v2543 = vld [vmem:[#allocation11 + $0x98] sm:$0xff]
        %v2544 = vld [vmem:[#allocation11 + $0xa0] sm:$0xff]
        %v2545 = vld [vmem:[#allocation11 + $0xa8] sm:$0xff]
        %v2546 = vld [vmem:[#allocation11 + $0xb0] sm:$0xff]
        %v2547 = vld [vmem:[#allocation11 + $0xb8] sm:$0xff]
        %v2548 = vld [vmem:[#allocation11 + $0xc0] sm:$0xff]
        %v2549 = vld [vmem:[#allocation11 + $0xc8] sm:$0xff]
        %v2550 = vld [vmem:[#allocation11 + $0xd0] sm:$0xff]
        %v2551 = vld [vmem:[#allocation11 + $0xd8] sm:$0xff]
        %v2552 = vld [vmem:[#allocation11 + $0xe0] sm:$0xff]
        %v2553 = vld [vmem:[#allocation11 + $0xe8] sm:$0xff]
        %v2554 = vld [vmem:[#allocation11 + $0xf0] sm:$0xff]
        %v2555 = vld [vmem:[#allocation11 + $0xf8] sm:$0xff]
        %v2556 = vld [vmem:[#allocation11 + $0x100] sm:$0xff]
        %v2557 = vld [vmem:[#allocation11 + $0x108] sm:$0xff]
        %v2558 = vld [vmem:[#allocation11 + $0x110] sm:$0xff]
        %v2559 = vld [vmem:[#allocation11 + $0x118] sm:$0xff]
        %v2560 = vld [vmem:[#allocation11 + $0x120] sm:$0xff]
        %v2561 = vld [vmem:[#allocation11 + $0x128] sm:$0xff]
        %v2562 = vld [vmem:[#allocation11 + $0x130] sm:$0xff]
        %v2563 = vld [vmem:[#allocation11 + $0x138] sm:$0xff]
        %v2564 = vld [vmem:[#allocation11 + $0x140] sm:$0xff]
        %v2565 = vld [vmem:[#allocation11 + $0x148] sm:$0xff]
        %v2566 = vld [vmem:[#allocation11 + $0x150] sm:$0xff]
        %v2567 = vld [vmem:[#allocation11 + $0x158] sm:$0xff]
        %v2568 = vld [vmem:[#allocation11 + $0x160] sm:$0xff]
        %v2569 = vld [vmem:[#allocation11 + $0x168] sm:$0xff]
        %v2570 = vld [vmem:[#allocation11 + $0x170] sm:$0xff]
        %v2571 = vld [vmem:[#allocation11 + $0x178] sm:$0xff]
        %v2572 = vld [vmem:[#allocation11 + $0x180] sm:$0xff]
        %v2573 = vld [vmem:[#allocation11 + $0x188] sm:$0xff]
        %v2574 = vld [vmem:[#allocation11 + $0x190] sm:$0xff]
        %v2575 = vld [vmem:[#allocation11 + $0x198] sm:$0xff]
        %v2576 = vld [vmem:[#allocation11 + $0x1a0] sm:$0xff]
        %v2577 = vld [vmem:[#allocation11 + $0x1a8] sm:$0xff]
        %v2578 = vld [vmem:[#allocation11 + $0x1b0] sm:$0xff]
        %v2579 = vld [vmem:[#allocation11 + $0x1b8] sm:$0xff]
        %v2580 = vld [vmem:[#allocation11 + $0x1c0] sm:$0xff]
        %v2581 = vld [vmem:[#allocation11 + $0x1c8] sm:$0xff]
        %v2582 = vld [vmem:[#allocation11 + $0x1d0] sm:$0xff]
        %v2583 = vld [vmem:[#allocation11 + $0x1d8] sm:$0xff]
        %v2584 = vld [vmem:[#allocation11 + $0x1e0] sm:$0xff]
        %v2585 = vld [vmem:[#allocation11 + $0x1e8] sm:$0xff]
        %v2586 = vld [vmem:[#allocation11 + $0x1f0] sm:$0xff]
        %v2587 = vld [vmem:[#allocation11 + $0x1f8] sm:$0xff]
        %v2588 = vld [vmem:[#allocation11 + $0x200] sm:$0xff]
        %v2589 = vld [vmem:[#allocation11 + $0x208] sm:$0xff]
        %v2590 = vld [vmem:[#allocation11 + $0x210] sm:$0xff]
        %v2591 = vld [vmem:[#allocation11 + $0x218] sm:$0xff]
        %v2592 = vld [vmem:[#allocation11 + $0x220] sm:$0xff]
        %v2593 = vld [vmem:[#allocation11 + $0x228] sm:$0xff]
        %v2594 = vld [vmem:[#allocation11 + $0x230] sm:$0xff]
        %v2595 = vld [vmem:[#allocation11 + $0x238] sm:$0xff]
        %v2596 = vld [vmem:[#allocation11 + $0x240] sm:$0xff]
        %v2597 = vld [vmem:[#allocation11 + $0x248] sm:$0xff]
        %v2598 = vld [vmem:[#allocation11 + $0x250] sm:$0xff]
        %v2599 = vld [vmem:[#allocation11 + $0x258] sm:$0xff]
        %v2600 = vld [vmem:[#allocation11 + $0x260] sm:$0xff]
        %v2601 = vld [vmem:[#allocation11 + $0x268] sm:$0xff]
        %v2602 = vld [vmem:[#allocation11 + $0x270] sm:$0xff]
        %v2603 = vld [vmem:[#allocation11 + $0x278] sm:$0xff]
        %v2604 = vld [vmem:[#allocation11 + $0x280] sm:$0xff]
        %v2605 = vld [vmem:[#allocation11 + $0x288] sm:$0xff]
        %v2606 = vld [vmem:[#allocation11 + $0x290] sm:$0xff]
        %v2607 = vld [vmem:[#allocation11 + $0x298] sm:$0xff]
        %v2608 = vld [vmem:[#allocation11 + $0x2a0] sm:$0xff]
        %v2609 = vld [vmem:[#allocation11 + $0x2a8] sm:$0xff]
        %v2610 = vld [vmem:[#allocation11 + $0x2b0] sm:$0xff]
        %v2611 = vld [vmem:[#allocation11 + $0x2b8] sm:$0xff]
        %v2612 = vld [vmem:[#allocation11 + $0x2c0] sm:$0xff]
        %v2613 = vld [vmem:[#allocation11 + $0x2c8] sm:$0xff]
        %v2614 = vld [vmem:[#allocation11 + $0x2d0] sm:$0xff]
        %v2615 = vld [vmem:[#allocation11 + $0x2d8] sm:$0xff]
        %v2616 = vld [vmem:[#allocation11 + $0x2e0] sm:$0xff]
        %v2617 = vld [vmem:[#allocation11 + $0x2e8] sm:$0xff]
        %v2618 = vld [vmem:[#allocation11 + $0x2f0] sm:$0xff]
        %v2619 = vld [vmem:[#allocation11 + $0x2f8] sm:$0xff]
        %v2620 = vld [vmem:[#allocation11 + $0x300] sm:$0xff]
        %v2621 = vld [vmem:[#allocation11 + $0x308] sm:$0xff]
        %v2622 = vld [vmem:[#allocation11 + $0x310] sm:$0xff]
        %v2623 = vld [vmem:[#allocation11 + $0x318] sm:$0xff]
        %v2624 = vld [vmem:[#allocation11 + $0x320] sm:$0xff]
        %v2625 = vld [vmem:[#allocation11 + $0x328] sm:$0xff]
        %v2626 = vld [vmem:[#allocation11 + $0x330] sm:$0xff]
        %v2627 = vld [vmem:[#allocation11 + $0x338] sm:$0xff]
        %v2628 = vld [vmem:[#allocation11 + $0x340] sm:$0xff]
        %v2629 = vld [vmem:[#allocation11 + $0x348] sm:$0xff]
        %v2630 = vld [vmem:[#allocation11 + $0x350] sm:$0xff]
        %v2631 = vld [vmem:[#allocation11 + $0x358] sm:$0xff]
        %v2632 = vld [vmem:[#allocation11 + $0x360] sm:$0xff]
        %v2633 = vld [vmem:[#allocation11 + $0x368] sm:$0xff]
        %v2634 = vld [vmem:[#allocation11 + $0x370] sm:$0xff]
        %v2635 = vld [vmem:[#allocation11 + $0x378] sm:$0xff]
        %v2636 = vld [vmem:[#allocation11 + $0x380] sm:$0xff]
        %v2637 = vld [vmem:[#allocation11 + $0x388] sm:$0xff]
        %v2638 = vld [vmem:[#allocation11 + $0x390] sm:$0xff]
        %v2639 = vld [vmem:[#allocation11 + $0x398] sm:$0xff]
        %v2640 = vld [vmem:[#allocation11 + $0x3a0] sm:$0xff]
        %v2641 = vld [vmem:[#allocation11 + $0x3a8] sm:$0xff]
        %v2642 = vld [vmem:[#allocation11 + $0x3b0] sm:$0xff]
        %v2643 = vld [vmem:[#allocation11 + $0x3b8] sm:$0xff]
        %v2644 = vld [vmem:[#allocation11 + $0x3c0] sm:$0xff]
        %v2645 = vld [vmem:[#allocation11 + $0x3c8] sm:$0xff]
        %v2646 = vld [vmem:[#allocation11 + $0x3d0] sm:$0xff]
        %v2647 = vld [vmem:[#allocation11 + $0x3d8] sm:$0xff]
        %v2648 = vld [vmem:[#allocation11 + $0x3e0] sm:$0xff]
        %v2649 = vld [vmem:[#allocation11 + $0x3e8] sm:$0xff]
        %v2650 = vld [vmem:[#allocation11 + $0x3f0] sm:$0xff]
        %v2651 = vld [vmem:[#allocation11 + $0x3f8] sm:$0xff]
        %v2652 = vld [vmem:[#allocation11 + $0x400] sm:$0xff]
        %v2653 = vld [vmem:[#allocation11 + $0x408] sm:$0xff]
        %v2654 = vld [vmem:[#allocation11 + $0x410] sm:$0xff]
        %v2655 = vld [vmem:[#allocation11 + $0x418] sm:$0xff]
        %v2656 = vld [vmem:[#allocation11 + $0x420] sm:$0xff]
        %v2657 = vld [vmem:[#allocation11 + $0x428] sm:$0xff]
        %v2658 = vld [vmem:[#allocation11 + $0x430] sm:$0xff]
        %v2659 = vld [vmem:[#allocation11 + $0x438] sm:$0xff]
        %v2660 = vld [vmem:[#allocation11 + $0x440] sm:$0xff]
        %v2661 = vld [vmem:[#allocation11 + $0x448] sm:$0xff]
        %v2662 = vld [vmem:[#allocation11 + $0x450] sm:$0xff]
        %v2663 = vld [vmem:[#allocation11 + $0x458] sm:$0xff]
        %v2664 = vld [vmem:[#allocation11 + $0x460] sm:$0xff]
        %v2665 = vld [vmem:[#allocation11 + $0x468] sm:$0xff]
        %v2666 = vld [vmem:[#allocation11 + $0x470] sm:$0xff]
        %v2667 = vld [vmem:[#allocation11 + $0x478] sm:$0xff]
        %v2668 = vld [vmem:[#allocation11 + $0x480] sm:$0xff]
        %v2669 = vld [vmem:[#allocation11 + $0x488] sm:$0xff]
        %v2670 = vld [vmem:[#allocation11 + $0x490] sm:$0xff]
        %v2671 = vld [vmem:[#allocation11 + $0x498] sm:$0xff]
        %v2672 = vld [vmem:[#allocation11 + $0x4a0] sm:$0xff]
        %v2673 = vld [vmem:[#allocation11 + $0x4a8] sm:$0xff]
        %v2674 = vld [vmem:[#allocation11 + $0x4b0] sm:$0xff]
        %v2675 = vld [vmem:[#allocation11 + $0x4b8] sm:$0xff]
        %v2676 = vld [vmem:[#allocation11 + $0x4c0] sm:$0xff]
        %v2677 = vld [vmem:[#allocation11 + $0x4c8] sm:$0xff]
        %v2678 = vld [vmem:[#allocation11 + $0x4d0] sm:$0xff]
        %v2679 = vld [vmem:[#allocation11 + $0x4d8] sm:$0xff]
        %v2680 = vld [vmem:[#allocation11 + $0x4e0] sm:$0xff]
        %v2681 = vld [vmem:[#allocation11 + $0x4e8] sm:$0xff]
        %v2682 = vld [vmem:[#allocation11 + $0x4f0] sm:$0xff]
        %v2683 = vld [vmem:[#allocation11 + $0x4f8] sm:$0xff]
        %v2684 = vld [vmem:[#allocation11 + $0x500] sm:$0xff]
        %v2685 = vld [vmem:[#allocation11 + $0x508] sm:$0xff]
        %v2686 = vld [vmem:[#allocation11 + $0x510] sm:$0xff]
        %v2687 = vld [vmem:[#allocation11 + $0x518] sm:$0xff]
        %v2688 = vld [vmem:[#allocation11 + $0x520] sm:$0xff]
        %v2689 = vld [vmem:[#allocation11 + $0x528] sm:$0xff]
        %v2690 = vld [vmem:[#allocation11 + $0x530] sm:$0xff]
        %v2691 = vld [vmem:[#allocation11 + $0x538] sm:$0xff]
        %v2692 = vld [vmem:[#allocation11 + $0x540] sm:$0xff]
        %v2693 = vld [vmem:[#allocation11 + $0x548] sm:$0xff]
        %v2694 = vld [vmem:[#allocation11 + $0x550] sm:$0xff]
        %v2695 = vld [vmem:[#allocation11 + $0x558] sm:$0xff]
        %v2696 = vld [vmem:[#allocation11 + $0x560] sm:$0xff]
        %v2697 = vld [vmem:[#allocation11 + $0x568] sm:$0xff]
        %v2698 = vld [vmem:[#allocation11 + $0x570] sm:$0xff]
        %v2699 = vld [vmem:[#allocation11 + $0x578] sm:$0xff]
        %v2700 = vld [vmem:[#allocation11 + $0x580] sm:$0xff]
        %v2701 = vld [vmem:[#allocation11 + $0x588] sm:$0xff]
        %v2702 = vld [vmem:[#allocation11 + $0x590] sm:$0xff]
        %v2703 = vld [vmem:[#allocation11 + $0x598] sm:$0xff]
        %v2704 = vld [vmem:[#allocation11 + $0x5a0] sm:$0xff]
        %v2705 = vld [vmem:[#allocation11 + $0x5a8] sm:$0xff]
        %v2706 = vld [vmem:[#allocation11 + $0x5b0] sm:$0xff]
        %v2707 = vld [vmem:[#allocation11 + $0x5b8] sm:$0xff]
        %v2708 = vld [vmem:[#allocation11 + $0x5c0] sm:$0xff]
        %v2709 = vld [vmem:[#allocation11 + $0x5c8] sm:$0xff]
        %v2710 = vld [vmem:[#allocation11 + $0x5d0] sm:$0xff]
        %v2711 = vld [vmem:[#allocation11 + $0x5d8] sm:$0xff]
        %v2712 = vld [vmem:[#allocation11 + $0x5e0] sm:$0xff]
        %v2713 = vld [vmem:[#allocation11 + $0x5e8] sm:$0xff]
        %v2714 = vld [vmem:[#allocation11 + $0x5f0] sm:$0xff]
        %v2715 = vld [vmem:[#allocation11 + $0x5f8] sm:$0xff]
        %v2716 = vld [vmem:[#allocation11 + $0x600] sm:$0xff]
        %v2717 = vld [vmem:[#allocation11 + $0x608] sm:$0xff]
        %v2718 = vld [vmem:[#allocation11 + $0x610] sm:$0xff]
        %v2719 = vld [vmem:[#allocation11 + $0x618] sm:$0xff]
        %v2720 = vld [vmem:[#allocation11 + $0x620] sm:$0xff]
        %v2721 = vld [vmem:[#allocation11 + $0x628] sm:$0xff]
        %v2722 = vld [vmem:[#allocation11 + $0x630] sm:$0xff]
        %v2723 = vld [vmem:[#allocation11 + $0x638] sm:$0xff]
        %v2724 = vld [vmem:[#allocation11 + $0x640] sm:$0xff]
        %v2725 = vld [vmem:[#allocation11 + $0x648] sm:$0xff]
        %v2726 = vld [vmem:[#allocation11 + $0x650] sm:$0xff]
        %v2727 = vld [vmem:[#allocation11 + $0x658] sm:$0xff]
        %v2728 = vld [vmem:[#allocation11 + $0x660] sm:$0xff]
        %v2729 = vld [vmem:[#allocation11 + $0x668] sm:$0xff]
        %v2730 = vld [vmem:[#allocation11 + $0x670] sm:$0xff]
        %v2731 = vld [vmem:[#allocation11 + $0x678] sm:$0xff]
        %v2732 = vld [vmem:[#allocation11 + $0x680] sm:$0xff]
        %v2733 = vld [vmem:[#allocation11 + $0x688] sm:$0xff]
        %v2734 = vld [vmem:[#allocation11 + $0x690] sm:$0xff]
        %v2735 = vld [vmem:[#allocation11 + $0x698] sm:$0xff]
        %v2736 = vld [vmem:[#allocation11 + $0x6a0] sm:$0xff]
        %v2737 = vld [vmem:[#allocation11 + $0x6a8] sm:$0xff]
        %v2738 = vld [vmem:[#allocation11 + $0x6b0] sm:$0xff]
        %v2739 = vld [vmem:[#allocation11 + $0x6b8] sm:$0xff]
        %v2740 = vld [vmem:[#allocation11 + $0x6c0] sm:$0xff]
        %v2741 = vld [vmem:[#allocation11 + $0x6c8] sm:$0xff]
        %v2742 = vld [vmem:[#allocation11 + $0x6d0] sm:$0xff]
        %v2743 = vld [vmem:[#allocation11 + $0x6d8] sm:$0xff]
        %v2744 = vld [vmem:[#allocation11 + $0x6e0] sm:$0xff]
        %v2745 = vld [vmem:[#allocation11 + $0x6e8] sm:$0xff]
        %v2746 = vld [vmem:[#allocation11 + $0x6f0] sm:$0xff]
        %v2747 = vld [vmem:[#allocation11 + $0x6f8] sm:$0xff]
        %v2748 = vld [vmem:[#allocation11 + $0x700] sm:$0xff]
        %v2749 = vld [vmem:[#allocation11 + $0x708] sm:$0xff]
        %v2750 = vld [vmem:[#allocation11 + $0x710] sm:$0xff]
        %v2751 = vld [vmem:[#allocation11 + $0x718] sm:$0xff]
        %v2752 = vld [vmem:[#allocation11 + $0x720] sm:$0xff]
        %v2753 = vld [vmem:[#allocation11 + $0x728] sm:$0xff]
        %v2754 = vld [vmem:[#allocation11 + $0x730] sm:$0xff]
        %v2755 = vld [vmem:[#allocation11 + $0x738] sm:$0xff]
        %v2756 = vld [vmem:[#allocation11 + $0x740] sm:$0xff]
        %v2757 = vld [vmem:[#allocation11 + $0x748] sm:$0xff]
        %v2758 = vld [vmem:[#allocation11 + $0x750] sm:$0xff]
        %v2759 = vld [vmem:[#allocation11 + $0x758] sm:$0xff]
        %v2760 = vld [vmem:[#allocation11 + $0x760] sm:$0xff]
        %v2761 = vld [vmem:[#allocation11 + $0x768] sm:$0xff]
        %v2762 = vld [vmem:[#allocation11 + $0x770] sm:$0xff]
        %v2763 = vld [vmem:[#allocation11 + $0x778] sm:$0xff]
        %v2764 = vld [vmem:[#allocation11 + $0x780] sm:$0xff]
        %v2765 = vld [vmem:[#allocation11 + $0x788] sm:$0xff]
        %v2766 = vld [vmem:[#allocation11 + $0x790] sm:$0xff]
        %v2767 = vld [vmem:[#allocation11 + $0x798] sm:$0xff]
        %v2768 = vld [vmem:[#allocation11 + $0x7a0] sm:$0xff]
        %v2769 = vld [vmem:[#allocation11 + $0x7a8] sm:$0xff]
        %v2770 = vld [vmem:[#allocation11 + $0x7b0] sm:$0xff]
        %v2771 = vld [vmem:[#allocation11 + $0x7b8] sm:$0xff]
        %v2772 = vld [vmem:[#allocation11 + $0x7c0] sm:$0xff]
        %v2773 = vld [vmem:[#allocation11 + $0x7c8] sm:$0xff]
        %v2774 = vld [vmem:[#allocation11 + $0x7d0] sm:$0xff]
        %v2775 = vld [vmem:[#allocation11 + $0x7d8] sm:$0xff]
        %v2776 = vld [vmem:[#allocation11 + $0x7e0] sm:$0xff]
        %v2777 = vld [vmem:[#allocation11 + $0x7e8] sm:$0xff]
        %v2778 = vld [vmem:[#allocation11 + $0x7f0] sm:$0xff]
        %v2779 = vld [vmem:[#allocation11 + $0x7f8] sm:$0xff]
        %v2780 = vld [vmem:[#allocation11 + $0x800] sm:$0xff]
        %v2781 = vld [vmem:[#allocation11 + $0x808] sm:$0xff]
        %v2782 = vld [vmem:[#allocation11 + $0x810] sm:$0xff]
        %v2783 = vld [vmem:[#allocation11 + $0x818] sm:$0xff]
        %v2784 = vld [vmem:[#allocation11 + $0x820] sm:$0xff]
        %v2785 = vld [vmem:[#allocation11 + $0x828] sm:$0xff]
        %v2786 = vld [vmem:[#allocation11 + $0x830] sm:$0xff]
        %v2787 = vld [vmem:[#allocation11 + $0x838] sm:$0xff]
        %v2788 = vld [vmem:[#allocation11 + $0x840] sm:$0xff]
        %v2789 = vld [vmem:[#allocation11 + $0x848] sm:$0xff]
        %v2790 = vld [vmem:[#allocation11 + $0x850] sm:$0xff]
        %v2791 = vld [vmem:[#allocation11 + $0x858] sm:$0xff]
        %v2792 = vld [vmem:[#allocation11 + $0x860] sm:$0xff]
        %v2793 = vld [vmem:[#allocation11 + $0x868] sm:$0xff]
        %v2794 = vld [vmem:[#allocation11 + $0x870] sm:$0xff]
        %v2795 = vld [vmem:[#allocation11 + $0x878] sm:$0xff]
        %v2796 = vld [vmem:[#allocation11 + $0x880] sm:$0xff]
        %v2797 = vld [vmem:[#allocation11 + $0x888] sm:$0xff]
        %v2798 = vld [vmem:[#allocation11 + $0x890] sm:$0xff]
        %v2799 = vld [vmem:[#allocation11 + $0x898] sm:$0xff]
        %v2800 = vld [vmem:[#allocation11 + $0x8a0] sm:$0xff]
        %v2801 = vld [vmem:[#allocation11 + $0x8a8] sm:$0xff]
        %v2802 = vld [vmem:[#allocation11 + $0x8b0] sm:$0xff]
        %v2803 = vld [vmem:[#allocation11 + $0x8b8] sm:$0xff]
        %v2804 = vld [vmem:[#allocation11 + $0x8c0] sm:$0xff]
        %v2805 = vld [vmem:[#allocation11 + $0x8c8] sm:$0xff]
        %v2806 = vld [vmem:[#allocation11 + $0x8d0] sm:$0xff]
        %v2807 = vld [vmem:[#allocation11 + $0x8d8] sm:$0xff]
        %v2808 = vld [vmem:[#allocation11 + $0x8e0] sm:$0xff]
        %v2809 = vld [vmem:[#allocation11 + $0x8e8] sm:$0xff]
        %v2810 = vld [vmem:[#allocation11 + $0x8f0] sm:$0xff]
        %v2811 = vld [vmem:[#allocation11 + $0x8f8] sm:$0xff]
        %v2812 = vld [vmem:[#allocation11 + $0x900] sm:$0xff]
        %v2813 = vld [vmem:[#allocation11 + $0x908] sm:$0xff]
        %v2814 = vld [vmem:[#allocation11 + $0x910] sm:$0xff]
        %v2815 = vld [vmem:[#allocation11 + $0x918] sm:$0xff]
        %v2816 = vld [vmem:[#allocation11 + $0x920] sm:$0xff]
        %v2817 = vld [vmem:[#allocation11 + $0x928] sm:$0xff]
        %v2818 = vld [vmem:[#allocation11 + $0x930] sm:$0xff]
        %v2819 = vld [vmem:[#allocation11 + $0x938] sm:$0xff]
        %v2820 = vld [vmem:[#allocation11 + $0x940] sm:$0xff]
        %v2821 = vld [vmem:[#allocation11 + $0x948] sm:$0xff]
        %v2822 = vld [vmem:[#allocation11 + $0x950] sm:$0xff]
        %v2823 = vld [vmem:[#allocation11 + $0x958] sm:$0xff]
        %v2824 = vld [vmem:[#allocation11 + $0x960] sm:$0xff]
        %v2825 = vld [vmem:[#allocation11 + $0x968] sm:$0xff]
        %v2826 = vld [vmem:[#allocation11 + $0x970] sm:$0xff]
        %v2827 = vld [vmem:[#allocation11 + $0x978] sm:$0xff]
        %v2828 = vld [vmem:[#allocation11 + $0x980] sm:$0xff]
        %v2829 = vld [vmem:[#allocation11 + $0x988] sm:$0xff]
        %v2830 = vld [vmem:[#allocation11 + $0x990] sm:$0xff]
        %v2831 = vld [vmem:[#allocation11 + $0x998] sm:$0xff]
        %v2832 = vld [vmem:[#allocation11 + $0x9a0] sm:$0xff]
        %v2833 = vld [vmem:[#allocation11 + $0x9a8] sm:$0xff]
        %v2834 = vld [vmem:[#allocation11 + $0x9b0] sm:$0xff]
        %v2835 = vld [vmem:[#allocation11 + $0x9b8] sm:$0xff]
        %v2836 = vld [vmem:[#allocation11 + $0x9c0] sm:$0xff]
        %v2837 = vld [vmem:[#allocation11 + $0x9c8] sm:$0xff]
        %v2838 = vld [vmem:[#allocation11 + $0x9d0] sm:$0xff]
        %v2839 = vld [vmem:[#allocation11 + $0x9d8] sm:$0xff]
        %v2840 = vld [vmem:[#allocation11 + $0x9e0] sm:$0xff]
        %v2841 = vld [vmem:[#allocation11 + $0x9e8] sm:$0xff]
        %v2842 = vld [vmem:[#allocation11 + $0x9f0] sm:$0xff]
        %v2843 = vld [vmem:[#allocation11 + $0x9f8] sm:$0xff]
        %v2844 = vld [vmem:[#allocation11 + $0xa00] sm:$0xff]
        %v2845 = vld [vmem:[#allocation11 + $0xa08] sm:$0xff]
        %v2846 = vld [vmem:[#allocation11 + $0xa10] sm:$0xff]
        %v2847 = vld [vmem:[#allocation11 + $0xa18] sm:$0xff]
        %v2848 = vld [vmem:[#allocation11 + $0xa20] sm:$0xff]
        %v2849 = vld [vmem:[#allocation11 + $0xa28] sm:$0xff]
        %v2850 = vld [vmem:[#allocation11 + $0xa30] sm:$0xff]
        %v2851 = vld [vmem:[#allocation11 + $0xa38] sm:$0xff]
        %v2852 = vld [vmem:[#allocation11 + $0xa40] sm:$0xff]
        %v2853 = vld [vmem:[#allocation11 + $0xa48] sm:$0xff]
        %v2854 = vld [vmem:[#allocation11 + $0xa50] sm:$0xff]
        %v2855 = vld [vmem:[#allocation11 + $0xa58] sm:$0xff]
        %v2856 = vld [vmem:[#allocation11 + $0xa60] sm:$0xff]
        %v2857 = vld [vmem:[#allocation11 + $0xa68] sm:$0xff]
        %v2858 = vld [vmem:[#allocation11 + $0xa70] sm:$0xff]
        %v2859 = vld [vmem:[#allocation11 + $0xa78] sm:$0xff]
        %v2860 = vld [vmem:[#allocation11 + $0xa80] sm:$0xff]
        %v2861 = vld [vmem:[#allocation11 + $0xa88] sm:$0xff]
        %v2862 = vld [vmem:[#allocation11 + $0xa90] sm:$0xff]
        %v2863 = vld [vmem:[#allocation11 + $0xa98] sm:$0xff]
        %v2864 = vld [vmem:[#allocation11 + $0xaa0] sm:$0xff]
        %v2865 = vld [vmem:[#allocation11 + $0xaa8] sm:$0xff]
        %v2866 = vld [vmem:[#allocation11 + $0xab0] sm:$0xff]
        %v2867 = vld [vmem:[#allocation11 + $0xab8] sm:$0xff]
        %v2868 = vld [vmem:[#allocation11 + $0xac0] sm:$0xff]
        %v2869 = vld [vmem:[#allocation11 + $0xac8] sm:$0xff]
        %v2870 = vld [vmem:[#allocation11 + $0xad0] sm:$0xff]
        %v2871 = vld [vmem:[#allocation11 + $0xad8] sm:$0xff]
        %v2872 = vld [vmem:[#allocation11 + $0xae0] sm:$0xff]
        %v2873 = vld [vmem:[#allocation11 + $0xae8] sm:$0xff]
        %v2874 = vld [vmem:[#allocation11 + $0xaf0] sm:$0xff]
        %v2875 = vld [vmem:[#allocation11 + $0xaf8] sm:$0xff]
        %v2876 = vld [vmem:[#allocation11 + $0xb00] sm:$0xff]
        %v2877 = vld [vmem:[#allocation11 + $0xb08] sm:$0xff]
        %v2878 = vld [vmem:[#allocation11 + $0xb10] sm:$0xff]
        %v2879 = vld [vmem:[#allocation11 + $0xb18] sm:$0xff]
        %v2880 = vld [vmem:[#allocation11 + $0xb20] sm:$0xff]
        %v2881 = vld [vmem:[#allocation11 + $0xb28] sm:$0xff]
        %v2882 = vld [vmem:[#allocation11 + $0xb30] sm:$0xff]
        %v2883 = vld [vmem:[#allocation11 + $0xb38] sm:$0xff]
        %v2884 = vld [vmem:[#allocation11 + $0xb40] sm:$0xff]
        %v2885 = vld [vmem:[#allocation11 + $0xb48] sm:$0xff]
        %v2886 = vld [vmem:[#allocation11 + $0xb50] sm:$0xff]
        %v2887 = vld [vmem:[#allocation11 + $0xb58] sm:$0xff]
        %v2888 = vld [vmem:[#allocation11 + $0xb60] sm:$0xff]
        %v2889 = vld [vmem:[#allocation11 + $0xb68] sm:$0xff]
        %v2890 = vld [vmem:[#allocation11 + $0xb70] sm:$0xff]
        %v2891 = vld [vmem:[#allocation11 + $0xb78] sm:$0xff]
        %v2892 = vld [vmem:[#allocation11 + $0xb80] sm:$0xff]
        %v2893 = vld [vmem:[#allocation11 + $0xb88] sm:$0xff]
        %v2894 = vld [vmem:[#allocation11 + $0xb90] sm:$0xff]
        %v2895 = vld [vmem:[#allocation11 + $0xb98] sm:$0xff]
        %v2896 = vld [vmem:[#allocation11 + $0xba0] sm:$0xff]
        %v2897 = vld [vmem:[#allocation11 + $0xba8] sm:$0xff]
        %v2898 = vld [vmem:[#allocation11 + $0xbb0] sm:$0xff]
        %v2899 = vld [vmem:[#allocation11 + $0xbb8] sm:$0xff]
        %v2900 = vld [vmem:[#allocation11 + $0xbc0] sm:$0xff]
        %v2901 = vld [vmem:[#allocation11 + $0xbc8] sm:$0xff]
        %v2902 = vld [vmem:[#allocation11 + $0xbd0] sm:$0xff]
        %v2903 = vld [vmem:[#allocation11 + $0xbd8] sm:$0xff]
        %v2904 = vld [vmem:[#allocation11 + $0xbe0] sm:$0xff]
        %v2905 = vld [vmem:[#allocation11 + $0xbe8] sm:$0xff]
        %v2906 = vld [vmem:[#allocation11 + $0xbf0] sm:$0xff]
        %v2907 = vld [vmem:[#allocation11 + $0xbf8] sm:$0xff]
        %v2908 = vld [vmem:[#allocation11 + $0xc00] sm:$0xff]
        %v2909 = vld [vmem:[#allocation11 + $0xc08] sm:$0xff]
        %v2910 = vld [vmem:[#allocation11 + $0xc10] sm:$0xff]
        %v2911 = vld [vmem:[#allocation11 + $0xc18] sm:$0xff]
        %v2912 = vld [vmem:[#allocation11 + $0xc20] sm:$0xff]
        %v2913 = vld [vmem:[#allocation11 + $0xc28] sm:$0xff]
        %v2914 = vld [vmem:[#allocation11 + $0xc30] sm:$0xff]
        %v2915 = vld [vmem:[#allocation11 + $0xc38] sm:$0xff]
        %v2916 = vld [vmem:[#allocation11 + $0xc40] sm:$0xff]
        %v2917 = vld [vmem:[#allocation11 + $0xc48] sm:$0xff]
        %v2918 = vld [vmem:[#allocation11 + $0xc50] sm:$0xff]
        %v2919 = vld [vmem:[#allocation11 + $0xc58] sm:$0xff]
        %v2920 = vld [vmem:[#allocation11 + $0xc60] sm:$0xff]
        %v2921 = vld [vmem:[#allocation11 + $0xc68] sm:$0xff]
        %v2922 = vld [vmem:[#allocation11 + $0xc70] sm:$0xff]
        %v2923 = vld [vmem:[#allocation11 + $0xc78] sm:$0xff]
        %v2924 = vld [vmem:[#allocation11 + $0xc80] sm:$0xff]
        %v2925 = vld [vmem:[#allocation11 + $0xc88] sm:$0xff]
        %v2926 = vld [vmem:[#allocation11 + $0xc90] sm:$0xff]
        %v2927 = vld [vmem:[#allocation11 + $0xc98] sm:$0xff]
        %v2928 = vld [vmem:[#allocation11 + $0xca0] sm:$0xff]
        %v2929 = vld [vmem:[#allocation11 + $0xca8] sm:$0xff]
        %v2930 = vld [vmem:[#allocation11 + $0xcb0] sm:$0xff]
        %v2931 = vld [vmem:[#allocation11 + $0xcb8] sm:$0xff]
        %v2932 = vld [vmem:[#allocation11 + $0xcc0] sm:$0xff]
        %v2933 = vld [vmem:[#allocation11 + $0xcc8] sm:$0xff]
        %v2934 = vld [vmem:[#allocation11 + $0xcd0] sm:$0xff]
        %v2935 = vld [vmem:[#allocation11 + $0xcd8] sm:$0xff]
        %v2936 = vld [vmem:[#allocation11 + $0xce0] sm:$0xff]
        %v2937 = vld [vmem:[#allocation11 + $0xce8] sm:$0xff]
        %v2938 = vld [vmem:[#allocation11 + $0xcf0] sm:$0xff]
        %v2939 = vld [vmem:[#allocation11 + $0xcf8] sm:$0xff]
        %v2940 = vld [vmem:[#allocation11 + $0xd00] sm:$0xff]
        %v2941 = vld [vmem:[#allocation11 + $0xd08] sm:$0xff]
        %v2942 = vld [vmem:[#allocation11 + $0xd10] sm:$0xff]
        %v2943 = vld [vmem:[#allocation11 + $0xd18] sm:$0xff]
        %v2944 = vld [vmem:[#allocation11 + $0xd20] sm:$0xff]
        %v2945 = vld [vmem:[#allocation11 + $0xd28] sm:$0xff]
        %v2946 = vld [vmem:[#allocation11 + $0xd30] sm:$0xff]
        %v2947 = vld [vmem:[#allocation11 + $0xd38] sm:$0xff]
        %v2948 = vld [vmem:[#allocation11 + $0xd40] sm:$0xff]
        %v2949 = vld [vmem:[#allocation11 + $0xd48] sm:$0xff]
        %v2950 = vld [vmem:[#allocation11 + $0xd50] sm:$0xff]
        %v2951 = vld [vmem:[#allocation11 + $0xd58] sm:$0xff]
        %v2952 = vld [vmem:[#allocation11 + $0xd60] sm:$0xff]
        %v2953 = vld [vmem:[#allocation11 + $0xd68] sm:$0xff]
        %v2954 = vld [vmem:[#allocation11 + $0xd70] sm:$0xff]
        %v2955 = vld [vmem:[#allocation11 + $0xd78] sm:$0xff]
        %v2956 = vld [vmem:[#allocation11 + $0xd80] sm:$0xff]
        %v2957 = vld [vmem:[#allocation11 + $0xd88] sm:$0xff]
        %v2958 = vld [vmem:[#allocation11 + $0xd90] sm:$0xff]
        %v2959 = vld [vmem:[#allocation11 + $0xd98] sm:$0xff]
        %v2960 = vld [vmem:[#allocation11 + $0xda0] sm:$0xff]
        %v2961 = vld [vmem:[#allocation11 + $0xda8] sm:$0xff]
        %v2962 = vld [vmem:[#allocation11 + $0xdb0] sm:$0xff]
        %v2963 = vld [vmem:[#allocation11 + $0xdb8] sm:$0xff]
        %v2964 = vld [vmem:[#allocation11 + $0xdc0] sm:$0xff]
        %v2965 = vld [vmem:[#allocation11 + $0xdc8] sm:$0xff]
        %v2966 = vld [vmem:[#allocation11 + $0xdd0] sm:$0xff]
        %v2967 = vld [vmem:[#allocation11 + $0xdd8] sm:$0xff]
        %v2968 = vld [vmem:[#allocation11 + $0xde0] sm:$0xff]
        %v2969 = vld [vmem:[#allocation11 + $0xde8] sm:$0xff]
        %v2970 = vld [vmem:[#allocation11 + $0xdf0] sm:$0xff]
        %v2971 = vld [vmem:[#allocation11 + $0xdf8] sm:$0xff]
        %v2972 = vld [vmem:[#allocation11 + $0xe00] sm:$0xff]
        %v2973 = vld [vmem:[#allocation11 + $0xe08] sm:$0xff]
        %v2974 = vld [vmem:[#allocation11 + $0xe10] sm:$0xff]
        %v2975 = vld [vmem:[#allocation11 + $0xe18] sm:$0xff]
        %v2976 = vld [vmem:[#allocation11 + $0xe20] sm:$0xff]
        %v2977 = vld [vmem:[#allocation11 + $0xe28] sm:$0xff]
        %v2978 = vld [vmem:[#allocation11 + $0xe30] sm:$0xff]
        %v2979 = vld [vmem:[#allocation11 + $0xe38] sm:$0xff]
        %v2980 = vld [vmem:[#allocation11 + $0xe40] sm:$0xff]
        %v2981 = vld [vmem:[#allocation11 + $0xe48] sm:$0xff]
        %v2982 = vld [vmem:[#allocation11 + $0xe50] sm:$0xff]
        %v2983 = vld [vmem:[#allocation11 + $0xe58] sm:$0xff]
        %v2984 = vld [vmem:[#allocation11 + $0xe60] sm:$0xff]
        %v2985 = vld [vmem:[#allocation11 + $0xe68] sm:$0xff]
        %v2986 = vld [vmem:[#allocation11 + $0xe70] sm:$0xff]
        %v2987 = vld [vmem:[#allocation11 + $0xe78] sm:$0xff]
        %v2988 = vld [vmem:[#allocation11 + $0xe80] sm:$0xff]
        %v2989 = vld [vmem:[#allocation11 + $0xe88] sm:$0xff]
        %v2990 = vld [vmem:[#allocation11 + $0xe90] sm:$0xff]
        %v2991 = vld [vmem:[#allocation11 + $0xe98] sm:$0xff]
        %v2992 = vld [vmem:[#allocation11 + $0xea0] sm:$0xff]
        %v2993 = vld [vmem:[#allocation11 + $0xea8] sm:$0xff]
        %v2994 = vld [vmem:[#allocation11 + $0xeb0] sm:$0xff]
        %v2995 = vld [vmem:[#allocation11 + $0xeb8] sm:$0xff]
        %v2996 = vld [vmem:[#allocation11 + $0xec0] sm:$0xff]
        %v2997 = vld [vmem:[#allocation11 + $0xec8] sm:$0xff]
        %v2998 = vld [vmem:[#allocation11 + $0xed0] sm:$0xff]
        %v2999 = vld [vmem:[#allocation11 + $0xed8] sm:$0xff]
        %v3000 = vld [vmem:[#allocation11 + $0xee0] sm:$0xff]
        %v3001 = vld [vmem:[#allocation11 + $0xee8] sm:$0xff]
        %v3002 = vld [vmem:[#allocation11 + $0xef0] sm:$0xff]
        %v3003 = vld [vmem:[#allocation11 + $0xef8] sm:$0xff]
        %v3004 = vld [vmem:[#allocation11 + $0xf00] sm:$0xff]
        %v3005 = vld [vmem:[#allocation11 + $0xf08] sm:$0xff]
        %v3006 = vld [vmem:[#allocation11 + $0xf10] sm:$0xff]
        %v3007 = vld [vmem:[#allocation11 + $0xf18] sm:$0xff]
        %v3008 = vld [vmem:[#allocation11 + $0xf20] sm:$0xff]
        %v3009 = vld [vmem:[#allocation11 + $0xf28] sm:$0xff]
        %v3010 = vld [vmem:[#allocation11 + $0xf30] sm:$0xff]
        %v3011 = vld [vmem:[#allocation11 + $0xf38] sm:$0xff]
        %v3012 = vld [vmem:[#allocation11 + $0xf40] sm:$0xff]
        %v3013 = vld [vmem:[#allocation11 + $0xf48] sm:$0xff]
        %v3014 = vld [vmem:[#allocation11 + $0xf50] sm:$0xff]
        %v3015 = vld [vmem:[#allocation11 + $0xf58] sm:$0xff]
        %v3016 = vld [vmem:[#allocation11 + $0xf60] sm:$0xff]
        %v3017 = vld [vmem:[#allocation11 + $0xf68] sm:$0xff]
        %v3018 = vld [vmem:[#allocation11 + $0xf70] sm:$0xff]
        %v3019 = vld [vmem:[#allocation11 + $0xf78] sm:$0xff]
        %v3020 = vld [vmem:[#allocation11 + $0xf80] sm:$0xff]
        %v3021 = vld [vmem:[#allocation11 + $0xf88] sm:$0xff]
        %v3022 = vld [vmem:[#allocation11 + $0xf90] sm:$0xff]
        %v3023 = vld [vmem:[#allocation11 + $0xf98] sm:$0xff]
        %v3024 = vld [vmem:[#allocation11 + $0xfa0] sm:$0xff]
        %v3025 = vld [vmem:[#allocation11 + $0xfa8] sm:$0xff]
        %v3026 = vld [vmem:[#allocation11 + $0xfb0] sm:$0xff]
        %v3027 = vld [vmem:[#allocation11 + $0xfb8] sm:$0xff]
        %v3028 = vld [vmem:[#allocation11 + $0xfc0] sm:$0xff]
        %v3029 = vld [vmem:[#allocation11 + $0xfc8] sm:$0xff]
        %v3030 = vld [vmem:[#allocation11 + $0xfd0] sm:$0xff]
        %v3031 = vld [vmem:[#allocation11 + $0xfd8] sm:$0xff]
        %v3032 = vld [vmem:[#allocation11 + $0xfe0] sm:$0xff]
        %v3033 = vld [vmem:[#allocation11 + $0xfe8] sm:$0xff]
        %v3034 = vld [vmem:[#allocation11 + $0xff0] sm:$0xff]
        %v3035 = vld [vmem:[#allocation11 + $0xff8] sm:$0xff]
        %v3036 = vld [vmem:[#allocation13] sm:$0xff]
        %v3038 = vlaneseq
        %v3039 = vshrl.u32 %v3038, 7
        %v3040 = vsub.s32 0, %v3039
        %v3041 = vrot.slane %v3036, %v3040
        %v3042 = vlaneseq
        %v3043 = vshrl.u32 %v3042, 7
        %v3044 = vsub.s32 1, %v3043
        %v3045 = vrot.slane %v3036, %v3044
        %v3046 = vlaneseq
        %v3047 = vshrl.u32 %v3046, 7
        %v3048 = vsub.s32 2, %v3047
        %v3049 = vrot.slane %v3036, %v3048
        %v3050 = vlaneseq
        %v3051 = vshrl.u32 %v3050, 7
        %v3052 = vsub.s32 3, %v3051
        %v3053 = vrot.slane %v3036, %v3052
        %v3054 = vlaneseq
        %v3055 = vshrl.u32 %v3054, 7
        %v3056 = vsub.s32 4, %v3055
        %v3057 = vrot.slane %v3036, %v3056
        %v3058 = vlaneseq
        %v3059 = vshrl.u32 %v3058, 7
        %v3060 = vsub.s32 5, %v3059
        %v3061 = vrot.slane %v3036, %v3060
        %v3062 = vlaneseq
        %v3063 = vshrl.u32 %v3062, 7
        %v3064 = vsub.s32 6, %v3063
        %v3065 = vrot.slane %v3036, %v3064
        %v3066 = vlaneseq
        %v3067 = vshrl.u32 %v3066, 7
        %v3068 = vsub.s32 7, %v3067
        %v3069 = vrot.slane %v3036, %v3068
        %v3590 = vunpack.c.l.b16 %v2524
        %v3591 = vunpack.c.h.b16 %v2524
        %v3592 = vunpack.c.l.b16 %v2525
        %v3593 = vunpack.c.h.b16 %v2525
        %v3594 = vunpack.c.l.b16 %v2526
        %v3595 = vunpack.c.h.b16 %v2526
        %v3596 = vunpack.c.l.b16 %v2527
        %v3597 = vunpack.c.h.b16 %v2527
        %v3598 = vunpack.c.l.b16 %v2528
        %v3599 = vunpack.c.h.b16 %v2528
        %v3600 = vunpack.c.l.b16 %v2529
        %v3601 = vunpack.c.h.b16 %v2529
        %v3602 = vunpack.c.l.b16 %v2530
        %v3603 = vunpack.c.h.b16 %v2530
        %v3604 = vunpack.c.l.b16 %v2531
        %v3605 = vunpack.c.h.b16 %v2531
        %v3606 = vunpack.c.l.b16 %v2532
        %v3607 = vunpack.c.h.b16 %v2532
        %v3608 = vunpack.c.l.b16 %v2533
        %v3609 = vunpack.c.h.b16 %v2533
        %v3610 = vunpack.c.l.b16 %v2534
        %v3611 = vunpack.c.h.b16 %v2534
        %v3612 = vunpack.c.l.b16 %v2535
        %v3613 = vunpack.c.h.b16 %v2535
        %v3614 = vunpack.c.l.b16 %v2536
        %v3615 = vunpack.c.h.b16 %v2536
        %v3616 = vunpack.c.l.b16 %v2537
        %v3617 = vunpack.c.h.b16 %v2537
        %v3618 = vunpack.c.l.b16 %v2538
        %v3619 = vunpack.c.h.b16 %v2538
        %v3620 = vunpack.c.l.b16 %v2539
        %v3621 = vunpack.c.h.b16 %v2539
        %v3622 = vunpack.c.l.b16 %v2540
        %v3623 = vunpack.c.h.b16 %v2540
        %v3624 = vunpack.c.l.b16 %v2541
        %v3625 = vunpack.c.h.b16 %v2541
        %v3626 = vunpack.c.l.b16 %v2542
        %v3627 = vunpack.c.h.b16 %v2542
        %v3628 = vunpack.c.l.b16 %v2543
        %v3629 = vunpack.c.h.b16 %v2543
        %v3630 = vunpack.c.l.b16 %v2544
        %v3631 = vunpack.c.h.b16 %v2544
        %v3632 = vunpack.c.l.b16 %v2545
        %v3633 = vunpack.c.h.b16 %v2545
        %v3634 = vunpack.c.l.b16 %v2546
        %v3635 = vunpack.c.h.b16 %v2546
        %v3636 = vunpack.c.l.b16 %v2547
        %v3637 = vunpack.c.h.b16 %v2547
        %v3638 = vunpack.c.l.b16 %v2548
        %v3639 = vunpack.c.h.b16 %v2548
        %v3640 = vunpack.c.l.b16 %v2549
        %v3641 = vunpack.c.h.b16 %v2549
        %v3642 = vunpack.c.l.b16 %v2550
        %v3643 = vunpack.c.h.b16 %v2550
        %v3644 = vunpack.c.l.b16 %v2551
        %v3645 = vunpack.c.h.b16 %v2551
        %v3646 = vunpack.c.l.b16 %v2552
        %v3647 = vunpack.c.h.b16 %v2552
        %v3648 = vunpack.c.l.b16 %v2553
        %v3649 = vunpack.c.h.b16 %v2553
        %v3650 = vunpack.c.l.b16 %v2554
        %v3651 = vunpack.c.h.b16 %v2554
        %v3652 = vunpack.c.l.b16 %v2555
        %v3653 = vunpack.c.h.b16 %v2555
        %v3654 = vunpack.c.l.b16 %v2556
        %v3655 = vunpack.c.h.b16 %v2556
        %v3656 = vunpack.c.l.b16 %v2557
        %v3657 = vunpack.c.h.b16 %v2557
        %v3658 = vunpack.c.l.b16 %v2558
        %v3659 = vunpack.c.h.b16 %v2558
        %v3660 = vunpack.c.l.b16 %v2559
        %v3661 = vunpack.c.h.b16 %v2559
        %v3662 = vunpack.c.l.b16 %v2560
        %v3663 = vunpack.c.h.b16 %v2560
        %v3664 = vunpack.c.l.b16 %v2561
        %v3665 = vunpack.c.h.b16 %v2561
        %v3666 = vunpack.c.l.b16 %v2562
        %v3667 = vunpack.c.h.b16 %v2562
        %v3668 = vunpack.c.l.b16 %v2563
        %v3669 = vunpack.c.h.b16 %v2563
        %v3670 = vunpack.c.l.b16 %v2564
        %v3671 = vunpack.c.h.b16 %v2564
        %v3672 = vunpack.c.l.b16 %v2565
        %v3673 = vunpack.c.h.b16 %v2565
        %v3674 = vunpack.c.l.b16 %v2566
        %v3675 = vunpack.c.h.b16 %v2566
        %v3676 = vunpack.c.l.b16 %v2567
        %v3677 = vunpack.c.h.b16 %v2567
        %v3678 = vunpack.c.l.b16 %v2568
        %v3679 = vunpack.c.h.b16 %v2568
        %v3680 = vunpack.c.l.b16 %v2569
        %v3681 = vunpack.c.h.b16 %v2569
        %v3682 = vunpack.c.l.b16 %v2570
        %v3683 = vunpack.c.h.b16 %v2570
        %v3684 = vunpack.c.l.b16 %v2571
        %v3685 = vunpack.c.h.b16 %v2571
        %v3686 = vunpack.c.l.b16 %v2572
        %v3687 = vunpack.c.h.b16 %v2572
        %v3688 = vunpack.c.l.b16 %v2573
        %v3689 = vunpack.c.h.b16 %v2573
        %v3690 = vunpack.c.l.b16 %v2574
        %v3691 = vunpack.c.h.b16 %v2574
        %v3692 = vunpack.c.l.b16 %v2575
        %v3693 = vunpack.c.h.b16 %v2575
        %v3694 = vunpack.c.l.b16 %v2576
        %v3695 = vunpack.c.h.b16 %v2576
        %v3696 = vunpack.c.l.b16 %v2577
        %v3697 = vunpack.c.h.b16 %v2577
        %v3698 = vunpack.c.l.b16 %v2578
        %v3699 = vunpack.c.h.b16 %v2578
        %v3700 = vunpack.c.l.b16 %v2579
        %v3701 = vunpack.c.h.b16 %v2579
        %v3702 = vunpack.c.l.b16 %v2580
        %v3703 = vunpack.c.h.b16 %v2580
        %v3704 = vunpack.c.l.b16 %v2581
        %v3705 = vunpack.c.h.b16 %v2581
        %v3706 = vunpack.c.l.b16 %v2582
        %v3707 = vunpack.c.h.b16 %v2582
        %v3708 = vunpack.c.l.b16 %v2583
        %v3709 = vunpack.c.h.b16 %v2583
        %v3710 = vunpack.c.l.b16 %v2584
        %v3711 = vunpack.c.h.b16 %v2584
        %v3712 = vunpack.c.l.b16 %v2585
        %v3713 = vunpack.c.h.b16 %v2585
        %v3714 = vunpack.c.l.b16 %v2586
        %v3715 = vunpack.c.h.b16 %v2586
        %v3716 = vunpack.c.l.b16 %v2587
        %v3717 = vunpack.c.h.b16 %v2587
        %v3718 = vunpack.c.l.b16 %v2588
        %v3719 = vunpack.c.h.b16 %v2588
        %v3720 = vunpack.c.l.b16 %v2589
        %v3721 = vunpack.c.h.b16 %v2589
        %v3722 = vunpack.c.l.b16 %v2590
        %v3723 = vunpack.c.h.b16 %v2590
        %v3724 = vunpack.c.l.b16 %v2591
        %v3725 = vunpack.c.h.b16 %v2591
        %v3726 = vunpack.c.l.b16 %v2592
        %v3727 = vunpack.c.h.b16 %v2592
        %v3728 = vunpack.c.l.b16 %v2593
        %v3729 = vunpack.c.h.b16 %v2593
        %v3730 = vunpack.c.l.b16 %v2594
        %v3731 = vunpack.c.h.b16 %v2594
        %v3732 = vunpack.c.l.b16 %v2595
        %v3733 = vunpack.c.h.b16 %v2595
        %v3734 = vunpack.c.l.b16 %v2596
        %v3735 = vunpack.c.h.b16 %v2596
        %v3736 = vunpack.c.l.b16 %v2597
        %v3737 = vunpack.c.h.b16 %v2597
        %v3738 = vunpack.c.l.b16 %v2598
        %v3739 = vunpack.c.h.b16 %v2598
        %v3740 = vunpack.c.l.b16 %v2599
        %v3741 = vunpack.c.h.b16 %v2599
        %v3742 = vunpack.c.l.b16 %v2600
        %v3743 = vunpack.c.h.b16 %v2600
        %v3744 = vunpack.c.l.b16 %v2601
        %v3745 = vunpack.c.h.b16 %v2601
        %v3746 = vunpack.c.l.b16 %v2602
        %v3747 = vunpack.c.h.b16 %v2602
        %v3748 = vunpack.c.l.b16 %v2603
        %v3749 = vunpack.c.h.b16 %v2603
        %v3750 = vunpack.c.l.b16 %v2604
        %v3751 = vunpack.c.h.b16 %v2604
        %v3752 = vunpack.c.l.b16 %v2605
        %v3753 = vunpack.c.h.b16 %v2605
        %v3754 = vunpack.c.l.b16 %v2606
        %v3755 = vunpack.c.h.b16 %v2606
        %v3756 = vunpack.c.l.b16 %v2607
        %v3757 = vunpack.c.h.b16 %v2607
        %v3758 = vunpack.c.l.b16 %v2608
        %v3759 = vunpack.c.h.b16 %v2608
        %v3760 = vunpack.c.l.b16 %v2609
        %v3761 = vunpack.c.h.b16 %v2609
        %v3762 = vunpack.c.l.b16 %v2610
        %v3763 = vunpack.c.h.b16 %v2610
        %v3764 = vunpack.c.l.b16 %v2611
        %v3765 = vunpack.c.h.b16 %v2611
        %v3766 = vunpack.c.l.b16 %v2612
        %v3767 = vunpack.c.h.b16 %v2612
        %v3768 = vunpack.c.l.b16 %v2613
        %v3769 = vunpack.c.h.b16 %v2613
        %v3770 = vunpack.c.l.b16 %v2614
        %v3771 = vunpack.c.h.b16 %v2614
        %v3772 = vunpack.c.l.b16 %v2615
        %v3773 = vunpack.c.h.b16 %v2615
        %v3774 = vunpack.c.l.b16 %v2616
        %v3775 = vunpack.c.h.b16 %v2616
        %v3776 = vunpack.c.l.b16 %v2617
        %v3777 = vunpack.c.h.b16 %v2617
        %v3778 = vunpack.c.l.b16 %v2618
        %v3779 = vunpack.c.h.b16 %v2618
        %v3780 = vunpack.c.l.b16 %v2619
        %v3781 = vunpack.c.h.b16 %v2619
        %v3782 = vunpack.c.l.b16 %v2620
        %v3783 = vunpack.c.h.b16 %v2620
        %v3784 = vunpack.c.l.b16 %v2621
        %v3785 = vunpack.c.h.b16 %v2621
        %v3786 = vunpack.c.l.b16 %v2622
        %v3787 = vunpack.c.h.b16 %v2622
        %v3788 = vunpack.c.l.b16 %v2623
        %v3789 = vunpack.c.h.b16 %v2623
        %v3790 = vunpack.c.l.b16 %v2624
        %v3791 = vunpack.c.h.b16 %v2624
        %v3792 = vunpack.c.l.b16 %v2625
        %v3793 = vunpack.c.h.b16 %v2625
        %v3794 = vunpack.c.l.b16 %v2626
        %v3795 = vunpack.c.h.b16 %v2626
        %v3796 = vunpack.c.l.b16 %v2627
        %v3797 = vunpack.c.h.b16 %v2627
        %v3798 = vunpack.c.l.b16 %v2628
        %v3799 = vunpack.c.h.b16 %v2628
        %v3800 = vunpack.c.l.b16 %v2629
        %v3801 = vunpack.c.h.b16 %v2629
        %v3802 = vunpack.c.l.b16 %v2630
        %v3803 = vunpack.c.h.b16 %v2630
        %v3804 = vunpack.c.l.b16 %v2631
        %v3805 = vunpack.c.h.b16 %v2631
        %v3806 = vunpack.c.l.b16 %v2632
        %v3807 = vunpack.c.h.b16 %v2632
        %v3808 = vunpack.c.l.b16 %v2633
        %v3809 = vunpack.c.h.b16 %v2633
        %v3810 = vunpack.c.l.b16 %v2634
        %v3811 = vunpack.c.h.b16 %v2634
        %v3812 = vunpack.c.l.b16 %v2635
        %v3813 = vunpack.c.h.b16 %v2635
        %v3814 = vunpack.c.l.b16 %v2636
        %v3815 = vunpack.c.h.b16 %v2636
        %v3816 = vunpack.c.l.b16 %v2637
        %v3817 = vunpack.c.h.b16 %v2637
        %v3818 = vunpack.c.l.b16 %v2638
        %v3819 = vunpack.c.h.b16 %v2638
        %v3820 = vunpack.c.l.b16 %v2639
        %v3821 = vunpack.c.h.b16 %v2639
        %v3822 = vunpack.c.l.b16 %v2640
        %v3823 = vunpack.c.h.b16 %v2640
        %v3824 = vunpack.c.l.b16 %v2641
        %v3825 = vunpack.c.h.b16 %v2641
        %v3826 = vunpack.c.l.b16 %v2642
        %v3827 = vunpack.c.h.b16 %v2642
        %v3828 = vunpack.c.l.b16 %v2643
        %v3829 = vunpack.c.h.b16 %v2643
        %v3830 = vunpack.c.l.b16 %v2644
        %v3831 = vunpack.c.h.b16 %v2644
        %v3832 = vunpack.c.l.b16 %v2645
        %v3833 = vunpack.c.h.b16 %v2645
        %v3834 = vunpack.c.l.b16 %v2646
        %v3835 = vunpack.c.h.b16 %v2646
        %v3836 = vunpack.c.l.b16 %v2647
        %v3837 = vunpack.c.h.b16 %v2647
        %v3838 = vunpack.c.l.b16 %v2648
        %v3839 = vunpack.c.h.b16 %v2648
        %v3840 = vunpack.c.l.b16 %v2649
        %v3841 = vunpack.c.h.b16 %v2649
        %v3842 = vunpack.c.l.b16 %v2650
        %v3843 = vunpack.c.h.b16 %v2650
        %v3844 = vunpack.c.l.b16 %v2651
        %v3845 = vunpack.c.h.b16 %v2651
        %v3846 = vunpack.c.l.b16 %v2652
        %v3847 = vunpack.c.h.b16 %v2652
        %v3848 = vunpack.c.l.b16 %v2653
        %v3849 = vunpack.c.h.b16 %v2653
        %v3850 = vunpack.c.l.b16 %v2654
        %v3851 = vunpack.c.h.b16 %v2654
        %v3852 = vunpack.c.l.b16 %v2655
        %v3853 = vunpack.c.h.b16 %v2655
        %v3854 = vunpack.c.l.b16 %v2656
        %v3855 = vunpack.c.h.b16 %v2656
        %v3856 = vunpack.c.l.b16 %v2657
        %v3857 = vunpack.c.h.b16 %v2657
        %v3858 = vunpack.c.l.b16 %v2658
        %v3859 = vunpack.c.h.b16 %v2658
        %v3860 = vunpack.c.l.b16 %v2659
        %v3861 = vunpack.c.h.b16 %v2659
        %v3862 = vunpack.c.l.b16 %v2660
        %v3863 = vunpack.c.h.b16 %v2660
        %v3864 = vunpack.c.l.b16 %v2661
        %v3865 = vunpack.c.h.b16 %v2661
        %v3866 = vunpack.c.l.b16 %v2662
        %v3867 = vunpack.c.h.b16 %v2662
        %v3868 = vunpack.c.l.b16 %v2663
        %v3869 = vunpack.c.h.b16 %v2663
        %v3870 = vunpack.c.l.b16 %v2664
        %v3871 = vunpack.c.h.b16 %v2664
        %v3872 = vunpack.c.l.b16 %v2665
        %v3873 = vunpack.c.h.b16 %v2665
        %v3874 = vunpack.c.l.b16 %v2666
        %v3875 = vunpack.c.h.b16 %v2666
        %v3876 = vunpack.c.l.b16 %v2667
        %v3877 = vunpack.c.h.b16 %v2667
        %v3878 = vunpack.c.l.b16 %v2668
        %v3879 = vunpack.c.h.b16 %v2668
        %v3880 = vunpack.c.l.b16 %v2669
        %v3881 = vunpack.c.h.b16 %v2669
        %v3882 = vunpack.c.l.b16 %v2670
        %v3883 = vunpack.c.h.b16 %v2670
        %v3884 = vunpack.c.l.b16 %v2671
        %v3885 = vunpack.c.h.b16 %v2671
        %v3886 = vunpack.c.l.b16 %v2672
        %v3887 = vunpack.c.h.b16 %v2672
        %v3888 = vunpack.c.l.b16 %v2673
        %v3889 = vunpack.c.h.b16 %v2673
        %v3890 = vunpack.c.l.b16 %v2674
        %v3891 = vunpack.c.h.b16 %v2674
        %v3892 = vunpack.c.l.b16 %v2675
        %v3893 = vunpack.c.h.b16 %v2675
        %v3894 = vunpack.c.l.b16 %v2676
        %v3895 = vunpack.c.h.b16 %v2676
        %v3896 = vunpack.c.l.b16 %v2677
        %v3897 = vunpack.c.h.b16 %v2677
        %v3898 = vunpack.c.l.b16 %v2678
        %v3899 = vunpack.c.h.b16 %v2678
        %v3900 = vunpack.c.l.b16 %v2679
        %v3901 = vunpack.c.h.b16 %v2679
        %v3902 = vunpack.c.l.b16 %v2680
        %v3903 = vunpack.c.h.b16 %v2680
        %v3904 = vunpack.c.l.b16 %v2681
        %v3905 = vunpack.c.h.b16 %v2681
        %v3906 = vunpack.c.l.b16 %v2682
        %v3907 = vunpack.c.h.b16 %v2682
        %v3908 = vunpack.c.l.b16 %v2683
        %v3909 = vunpack.c.h.b16 %v2683
        %v3910 = vunpack.c.l.b16 %v2684
        %v3911 = vunpack.c.h.b16 %v2684
        %v3912 = vunpack.c.l.b16 %v2685
        %v3913 = vunpack.c.h.b16 %v2685
        %v3914 = vunpack.c.l.b16 %v2686
        %v3915 = vunpack.c.h.b16 %v2686
        %v3916 = vunpack.c.l.b16 %v2687
        %v3917 = vunpack.c.h.b16 %v2687
        %v3918 = vunpack.c.l.b16 %v2688
        %v3919 = vunpack.c.h.b16 %v2688
        %v3920 = vunpack.c.l.b16 %v2689
        %v3921 = vunpack.c.h.b16 %v2689
        %v3922 = vunpack.c.l.b16 %v2690
        %v3923 = vunpack.c.h.b16 %v2690
        %v3924 = vunpack.c.l.b16 %v2691
        %v3925 = vunpack.c.h.b16 %v2691
        %v3926 = vunpack.c.l.b16 %v2692
        %v3927 = vunpack.c.h.b16 %v2692
        %v3928 = vunpack.c.l.b16 %v2693
        %v3929 = vunpack.c.h.b16 %v2693
        %v3930 = vunpack.c.l.b16 %v2694
        %v3931 = vunpack.c.h.b16 %v2694
        %v3932 = vunpack.c.l.b16 %v2695
        %v3933 = vunpack.c.h.b16 %v2695
        %v3934 = vunpack.c.l.b16 %v2696
        %v3935 = vunpack.c.h.b16 %v2696
        %v3936 = vunpack.c.l.b16 %v2697
        %v3937 = vunpack.c.h.b16 %v2697
        %v3938 = vunpack.c.l.b16 %v2698
        %v3939 = vunpack.c.h.b16 %v2698
        %v3940 = vunpack.c.l.b16 %v2699
        %v3941 = vunpack.c.h.b16 %v2699
        %v3942 = vunpack.c.l.b16 %v2700
        %v3943 = vunpack.c.h.b16 %v2700
        %v3944 = vunpack.c.l.b16 %v2701
        %v3945 = vunpack.c.h.b16 %v2701
        %v3946 = vunpack.c.l.b16 %v2702
        %v3947 = vunpack.c.h.b16 %v2702
        %v3948 = vunpack.c.l.b16 %v2703
        %v3949 = vunpack.c.h.b16 %v2703
        %v3950 = vunpack.c.l.b16 %v2704
        %v3951 = vunpack.c.h.b16 %v2704
        %v3952 = vunpack.c.l.b16 %v2705
        %v3953 = vunpack.c.h.b16 %v2705
        %v3954 = vunpack.c.l.b16 %v2706
        %v3955 = vunpack.c.h.b16 %v2706
        %v3956 = vunpack.c.l.b16 %v2707
        %v3957 = vunpack.c.h.b16 %v2707
        %v3958 = vunpack.c.l.b16 %v2708
        %v3959 = vunpack.c.h.b16 %v2708
        %v3960 = vunpack.c.l.b16 %v2709
        %v3961 = vunpack.c.h.b16 %v2709
        %v3962 = vunpack.c.l.b16 %v2710
        %v3963 = vunpack.c.h.b16 %v2710
        %v3964 = vunpack.c.l.b16 %v2711
        %v3965 = vunpack.c.h.b16 %v2711
        %v3966 = vunpack.c.l.b16 %v2712
        %v3967 = vunpack.c.h.b16 %v2712
        %v3968 = vunpack.c.l.b16 %v2713
        %v3969 = vunpack.c.h.b16 %v2713
        %v3970 = vunpack.c.l.b16 %v2714
        %v3971 = vunpack.c.h.b16 %v2714
        %v3972 = vunpack.c.l.b16 %v2715
        %v3973 = vunpack.c.h.b16 %v2715
        %v3974 = vunpack.c.l.b16 %v2716
        %v3975 = vunpack.c.h.b16 %v2716
        %v3976 = vunpack.c.l.b16 %v2717
        %v3977 = vunpack.c.h.b16 %v2717
        %v3978 = vunpack.c.l.b16 %v2718
        %v3979 = vunpack.c.h.b16 %v2718
        %v3980 = vunpack.c.l.b16 %v2719
        %v3981 = vunpack.c.h.b16 %v2719
        %v3982 = vunpack.c.l.b16 %v2720
        %v3983 = vunpack.c.h.b16 %v2720
        %v3984 = vunpack.c.l.b16 %v2721
        %v3985 = vunpack.c.h.b16 %v2721
        %v3986 = vunpack.c.l.b16 %v2722
        %v3987 = vunpack.c.h.b16 %v2722
        %v3988 = vunpack.c.l.b16 %v2723
        %v3989 = vunpack.c.h.b16 %v2723
        %v3990 = vunpack.c.l.b16 %v2724
        %v3991 = vunpack.c.h.b16 %v2724
        %v3992 = vunpack.c.l.b16 %v2725
        %v3993 = vunpack.c.h.b16 %v2725
        %v3994 = vunpack.c.l.b16 %v2726
        %v3995 = vunpack.c.h.b16 %v2726
        %v3996 = vunpack.c.l.b16 %v2727
        %v3997 = vunpack.c.h.b16 %v2727
        %v3998 = vunpack.c.l.b16 %v2728
        %v3999 = vunpack.c.h.b16 %v2728
        %v4000 = vunpack.c.l.b16 %v2729
        %v4001 = vunpack.c.h.b16 %v2729
        %v4002 = vunpack.c.l.b16 %v2730
        %v4003 = vunpack.c.h.b16 %v2730
        %v4004 = vunpack.c.l.b16 %v2731
        %v4005 = vunpack.c.h.b16 %v2731
        %v4006 = vunpack.c.l.b16 %v2732
        %v4007 = vunpack.c.h.b16 %v2732
        %v4008 = vunpack.c.l.b16 %v2733
        %v4009 = vunpack.c.h.b16 %v2733
        %v4010 = vunpack.c.l.b16 %v2734
        %v4011 = vunpack.c.h.b16 %v2734
        %v4012 = vunpack.c.l.b16 %v2735
        %v4013 = vunpack.c.h.b16 %v2735
        %v4014 = vunpack.c.l.b16 %v2736
        %v4015 = vunpack.c.h.b16 %v2736
        %v4016 = vunpack.c.l.b16 %v2737
        %v4017 = vunpack.c.h.b16 %v2737
        %v4018 = vunpack.c.l.b16 %v2738
        %v4019 = vunpack.c.h.b16 %v2738
        %v4020 = vunpack.c.l.b16 %v2739
        %v4021 = vunpack.c.h.b16 %v2739
        %v4022 = vunpack.c.l.b16 %v2740
        %v4023 = vunpack.c.h.b16 %v2740
        %v4024 = vunpack.c.l.b16 %v2741
        %v4025 = vunpack.c.h.b16 %v2741
        %v4026 = vunpack.c.l.b16 %v2742
        %v4027 = vunpack.c.h.b16 %v2742
        %v4028 = vunpack.c.l.b16 %v2743
        %v4029 = vunpack.c.h.b16 %v2743
        %v4030 = vunpack.c.l.b16 %v2744
        %v4031 = vunpack.c.h.b16 %v2744
        %v4032 = vunpack.c.l.b16 %v2745
        %v4033 = vunpack.c.h.b16 %v2745
        %v4034 = vunpack.c.l.b16 %v2746
        %v4035 = vunpack.c.h.b16 %v2746
        %v4036 = vunpack.c.l.b16 %v2747
        %v4037 = vunpack.c.h.b16 %v2747
        %v4038 = vunpack.c.l.b16 %v2748
        %v4039 = vunpack.c.h.b16 %v2748
        %v4040 = vunpack.c.l.b16 %v2749
        %v4041 = vunpack.c.h.b16 %v2749
        %v4042 = vunpack.c.l.b16 %v2750
        %v4043 = vunpack.c.h.b16 %v2750
        %v4044 = vunpack.c.l.b16 %v2751
        %v4045 = vunpack.c.h.b16 %v2751
        %v4046 = vunpack.c.l.b16 %v2752
        %v4047 = vunpack.c.h.b16 %v2752
        %v4048 = vunpack.c.l.b16 %v2753
        %v4049 = vunpack.c.h.b16 %v2753
        %v4050 = vunpack.c.l.b16 %v2754
        %v4051 = vunpack.c.h.b16 %v2754
        %v4052 = vunpack.c.l.b16 %v2755
        %v4053 = vunpack.c.h.b16 %v2755
        %v4054 = vunpack.c.l.b16 %v2756
        %v4055 = vunpack.c.h.b16 %v2756
        %v4056 = vunpack.c.l.b16 %v2757
        %v4057 = vunpack.c.h.b16 %v2757
        %v4058 = vunpack.c.l.b16 %v2758
        %v4059 = vunpack.c.h.b16 %v2758
        %v4060 = vunpack.c.l.b16 %v2759
        %v4061 = vunpack.c.h.b16 %v2759
        %v4062 = vunpack.c.l.b16 %v2760
        %v4063 = vunpack.c.h.b16 %v2760
        %v4064 = vunpack.c.l.b16 %v2761
        %v4065 = vunpack.c.h.b16 %v2761
        %v4066 = vunpack.c.l.b16 %v2762
        %v4067 = vunpack.c.h.b16 %v2762
        %v4068 = vunpack.c.l.b16 %v2763
        %v4069 = vunpack.c.h.b16 %v2763
        %v4070 = vunpack.c.l.b16 %v2764
        %v4071 = vunpack.c.h.b16 %v2764
        %v4072 = vunpack.c.l.b16 %v2765
        %v4073 = vunpack.c.h.b16 %v2765
        %v4074 = vunpack.c.l.b16 %v2766
        %v4075 = vunpack.c.h.b16 %v2766
        %v4076 = vunpack.c.l.b16 %v2767
        %v4077 = vunpack.c.h.b16 %v2767
        %v4078 = vunpack.c.l.b16 %v2768
        %v4079 = vunpack.c.h.b16 %v2768
        %v4080 = vunpack.c.l.b16 %v2769
        %v4081 = vunpack.c.h.b16 %v2769
        %v4082 = vunpack.c.l.b16 %v2770
        %v4083 = vunpack.c.h.b16 %v2770
        %v4084 = vunpack.c.l.b16 %v2771
        %v4085 = vunpack.c.h.b16 %v2771
        %v4086 = vunpack.c.l.b16 %v2772
        %v4087 = vunpack.c.h.b16 %v2772
        %v4088 = vunpack.c.l.b16 %v2773
        %v4089 = vunpack.c.h.b16 %v2773
        %v4090 = vunpack.c.l.b16 %v2774
        %v4091 = vunpack.c.h.b16 %v2774
        %v4092 = vunpack.c.l.b16 %v2775
        %v4093 = vunpack.c.h.b16 %v2775
        %v4094 = vunpack.c.l.b16 %v2776
        %v4095 = vunpack.c.h.b16 %v2776
        %v4096 = vunpack.c.l.b16 %v2777
        %v4097 = vunpack.c.h.b16 %v2777
        %v4098 = vunpack.c.l.b16 %v2778
        %v4099 = vunpack.c.h.b16 %v2778
        %v4100 = vunpack.c.l.b16 %v2779
        %v4101 = vunpack.c.h.b16 %v2779
        %v4102 = vunpack.c.l.b16 %v2780
        %v4103 = vunpack.c.h.b16 %v2780
        %v4104 = vunpack.c.l.b16 %v2781
        %v4105 = vunpack.c.h.b16 %v2781
        %v4106 = vunpack.c.l.b16 %v2782
        %v4107 = vunpack.c.h.b16 %v2782
        %v4108 = vunpack.c.l.b16 %v2783
        %v4109 = vunpack.c.h.b16 %v2783
        %v4110 = vunpack.c.l.b16 %v2784
        %v4111 = vunpack.c.h.b16 %v2784
        %v4112 = vunpack.c.l.b16 %v2785
        %v4113 = vunpack.c.h.b16 %v2785
        %v4114 = vunpack.c.l.b16 %v2786
        %v4115 = vunpack.c.h.b16 %v2786
        %v4116 = vunpack.c.l.b16 %v2787
        %v4117 = vunpack.c.h.b16 %v2787
        %v4118 = vunpack.c.l.b16 %v2788
        %v4119 = vunpack.c.h.b16 %v2788
        %v4120 = vunpack.c.l.b16 %v2789
        %v4121 = vunpack.c.h.b16 %v2789
        %v4122 = vunpack.c.l.b16 %v2790
        %v4123 = vunpack.c.h.b16 %v2790
        %v4124 = vunpack.c.l.b16 %v2791
        %v4125 = vunpack.c.h.b16 %v2791
        %v4126 = vunpack.c.l.b16 %v2792
        %v4127 = vunpack.c.h.b16 %v2792
        %v4128 = vunpack.c.l.b16 %v2793
        %v4129 = vunpack.c.h.b16 %v2793
        %v4130 = vunpack.c.l.b16 %v2794
        %v4131 = vunpack.c.h.b16 %v2794
        %v4132 = vunpack.c.l.b16 %v2795
        %v4133 = vunpack.c.h.b16 %v2795
        %v4134 = vunpack.c.l.b16 %v2796
        %v4135 = vunpack.c.h.b16 %v2796
        %v4136 = vunpack.c.l.b16 %v2797
        %v4137 = vunpack.c.h.b16 %v2797
        %v4138 = vunpack.c.l.b16 %v2798
        %v4139 = vunpack.c.h.b16 %v2798
        %v4140 = vunpack.c.l.b16 %v2799
        %v4141 = vunpack.c.h.b16 %v2799
        %v4142 = vunpack.c.l.b16 %v2800
        %v4143 = vunpack.c.h.b16 %v2800
        %v4144 = vunpack.c.l.b16 %v2801
        %v4145 = vunpack.c.h.b16 %v2801
        %v4146 = vunpack.c.l.b16 %v2802
        %v4147 = vunpack.c.h.b16 %v2802
        %v4148 = vunpack.c.l.b16 %v2803
        %v4149 = vunpack.c.h.b16 %v2803
        %v4150 = vunpack.c.l.b16 %v2804
        %v4151 = vunpack.c.h.b16 %v2804
        %v4152 = vunpack.c.l.b16 %v2805
        %v4153 = vunpack.c.h.b16 %v2805
        %v4154 = vunpack.c.l.b16 %v2806
        %v4155 = vunpack.c.h.b16 %v2806
        %v4156 = vunpack.c.l.b16 %v2807
        %v4157 = vunpack.c.h.b16 %v2807
        %v4158 = vunpack.c.l.b16 %v2808
        %v4159 = vunpack.c.h.b16 %v2808
        %v4160 = vunpack.c.l.b16 %v2809
        %v4161 = vunpack.c.h.b16 %v2809
        %v4162 = vunpack.c.l.b16 %v2810
        %v4163 = vunpack.c.h.b16 %v2810
        %v4164 = vunpack.c.l.b16 %v2811
        %v4165 = vunpack.c.h.b16 %v2811
        %v4166 = vunpack.c.l.b16 %v2812
        %v4167 = vunpack.c.h.b16 %v2812
        %v4168 = vunpack.c.l.b16 %v2813
        %v4169 = vunpack.c.h.b16 %v2813
        %v4170 = vunpack.c.l.b16 %v2814
        %v4171 = vunpack.c.h.b16 %v2814
        %v4172 = vunpack.c.l.b16 %v2815
        %v4173 = vunpack.c.h.b16 %v2815
        %v4174 = vunpack.c.l.b16 %v2816
        %v4175 = vunpack.c.h.b16 %v2816
        %v4176 = vunpack.c.l.b16 %v2817
        %v4177 = vunpack.c.h.b16 %v2817
        %v4178 = vunpack.c.l.b16 %v2818
        %v4179 = vunpack.c.h.b16 %v2818
        %v4180 = vunpack.c.l.b16 %v2819
        %v4181 = vunpack.c.h.b16 %v2819
        %v4182 = vunpack.c.l.b16 %v2820
        %v4183 = vunpack.c.h.b16 %v2820
        %v4184 = vunpack.c.l.b16 %v2821
        %v4185 = vunpack.c.h.b16 %v2821
        %v4186 = vunpack.c.l.b16 %v2822
        %v4187 = vunpack.c.h.b16 %v2822
        %v4188 = vunpack.c.l.b16 %v2823
        %v4189 = vunpack.c.h.b16 %v2823
        %v4190 = vunpack.c.l.b16 %v2824
        %v4191 = vunpack.c.h.b16 %v2824
        %v4192 = vunpack.c.l.b16 %v2825
        %v4193 = vunpack.c.h.b16 %v2825
        %v4194 = vunpack.c.l.b16 %v2826
        %v4195 = vunpack.c.h.b16 %v2826
        %v4196 = vunpack.c.l.b16 %v2827
        %v4197 = vunpack.c.h.b16 %v2827
        %v4198 = vunpack.c.l.b16 %v2828
        %v4199 = vunpack.c.h.b16 %v2828
        %v4200 = vunpack.c.l.b16 %v2829
        %v4201 = vunpack.c.h.b16 %v2829
        %v4202 = vunpack.c.l.b16 %v2830
        %v4203 = vunpack.c.h.b16 %v2830
        %v4204 = vunpack.c.l.b16 %v2831
        %v4205 = vunpack.c.h.b16 %v2831
        %v4206 = vunpack.c.l.b16 %v2832
        %v4207 = vunpack.c.h.b16 %v2832
        %v4208 = vunpack.c.l.b16 %v2833
        %v4209 = vunpack.c.h.b16 %v2833
        %v4210 = vunpack.c.l.b16 %v2834
        %v4211 = vunpack.c.h.b16 %v2834
        %v4212 = vunpack.c.l.b16 %v2835
        %v4213 = vunpack.c.h.b16 %v2835
        %v4214 = vunpack.c.l.b16 %v2836
        %v4215 = vunpack.c.h.b16 %v2836
        %v4216 = vunpack.c.l.b16 %v2837
        %v4217 = vunpack.c.h.b16 %v2837
        %v4218 = vunpack.c.l.b16 %v2838
        %v4219 = vunpack.c.h.b16 %v2838
        %v4220 = vunpack.c.l.b16 %v2839
        %v4221 = vunpack.c.h.b16 %v2839
        %v4222 = vunpack.c.l.b16 %v2840
        %v4223 = vunpack.c.h.b16 %v2840
        %v4224 = vunpack.c.l.b16 %v2841
        %v4225 = vunpack.c.h.b16 %v2841
        %v4226 = vunpack.c.l.b16 %v2842
        %v4227 = vunpack.c.h.b16 %v2842
        %v4228 = vunpack.c.l.b16 %v2843
        %v4229 = vunpack.c.h.b16 %v2843
        %v4230 = vunpack.c.l.b16 %v2844
        %v4231 = vunpack.c.h.b16 %v2844
        %v4232 = vunpack.c.l.b16 %v2845
        %v4233 = vunpack.c.h.b16 %v2845
        %v4234 = vunpack.c.l.b16 %v2846
        %v4235 = vunpack.c.h.b16 %v2846
        %v4236 = vunpack.c.l.b16 %v2847
        %v4237 = vunpack.c.h.b16 %v2847
        %v4238 = vunpack.c.l.b16 %v2848
        %v4239 = vunpack.c.h.b16 %v2848
        %v4240 = vunpack.c.l.b16 %v2849
        %v4241 = vunpack.c.h.b16 %v2849
        %v4242 = vunpack.c.l.b16 %v2850
        %v4243 = vunpack.c.h.b16 %v2850
        %v4244 = vunpack.c.l.b16 %v2851
        %v4245 = vunpack.c.h.b16 %v2851
        %v4246 = vunpack.c.l.b16 %v2852
        %v4247 = vunpack.c.h.b16 %v2852
        %v4248 = vunpack.c.l.b16 %v2853
        %v4249 = vunpack.c.h.b16 %v2853
        %v4250 = vunpack.c.l.b16 %v2854
        %v4251 = vunpack.c.h.b16 %v2854
        %v4252 = vunpack.c.l.b16 %v2855
        %v4253 = vunpack.c.h.b16 %v2855
        %v4254 = vunpack.c.l.b16 %v2856
        %v4255 = vunpack.c.h.b16 %v2856
        %v4256 = vunpack.c.l.b16 %v2857
        %v4257 = vunpack.c.h.b16 %v2857
        %v4258 = vunpack.c.l.b16 %v2858
        %v4259 = vunpack.c.h.b16 %v2858
        %v4260 = vunpack.c.l.b16 %v2859
        %v4261 = vunpack.c.h.b16 %v2859
        %v4262 = vunpack.c.l.b16 %v2860
        %v4263 = vunpack.c.h.b16 %v2860
        %v4264 = vunpack.c.l.b16 %v2861
        %v4265 = vunpack.c.h.b16 %v2861
        %v4266 = vunpack.c.l.b16 %v2862
        %v4267 = vunpack.c.h.b16 %v2862
        %v4268 = vunpack.c.l.b16 %v2863
        %v4269 = vunpack.c.h.b16 %v2863
        %v4270 = vunpack.c.l.b16 %v2864
        %v4271 = vunpack.c.h.b16 %v2864
        %v4272 = vunpack.c.l.b16 %v2865
        %v4273 = vunpack.c.h.b16 %v2865
        %v4274 = vunpack.c.l.b16 %v2866
        %v4275 = vunpack.c.h.b16 %v2866
        %v4276 = vunpack.c.l.b16 %v2867
        %v4277 = vunpack.c.h.b16 %v2867
        %v4278 = vunpack.c.l.b16 %v2868
        %v4279 = vunpack.c.h.b16 %v2868
        %v4280 = vunpack.c.l.b16 %v2869
        %v4281 = vunpack.c.h.b16 %v2869
        %v4282 = vunpack.c.l.b16 %v2870
        %v4283 = vunpack.c.h.b16 %v2870
        %v4284 = vunpack.c.l.b16 %v2871
        %v4285 = vunpack.c.h.b16 %v2871
        %v4286 = vunpack.c.l.b16 %v2872
        %v4287 = vunpack.c.h.b16 %v2872
        %v4288 = vunpack.c.l.b16 %v2873
        %v4289 = vunpack.c.h.b16 %v2873
        %v4290 = vunpack.c.l.b16 %v2874
        %v4291 = vunpack.c.h.b16 %v2874
        %v4292 = vunpack.c.l.b16 %v2875
        %v4293 = vunpack.c.h.b16 %v2875
        %v4294 = vunpack.c.l.b16 %v2876
        %v4295 = vunpack.c.h.b16 %v2876
        %v4296 = vunpack.c.l.b16 %v2877
        %v4297 = vunpack.c.h.b16 %v2877
        %v4298 = vunpack.c.l.b16 %v2878
        %v4299 = vunpack.c.h.b16 %v2878
        %v4300 = vunpack.c.l.b16 %v2879
        %v4301 = vunpack.c.h.b16 %v2879
        %v4302 = vunpack.c.l.b16 %v2880
        %v4303 = vunpack.c.h.b16 %v2880
        %v4304 = vunpack.c.l.b16 %v2881
        %v4305 = vunpack.c.h.b16 %v2881
        %v4306 = vunpack.c.l.b16 %v2882
        %v4307 = vunpack.c.h.b16 %v2882
        %v4308 = vunpack.c.l.b16 %v2883
        %v4309 = vunpack.c.h.b16 %v2883
        %v4310 = vunpack.c.l.b16 %v2884
        %v4311 = vunpack.c.h.b16 %v2884
        %v4312 = vunpack.c.l.b16 %v2885
        %v4313 = vunpack.c.h.b16 %v2885
        %v4314 = vunpack.c.l.b16 %v2886
        %v4315 = vunpack.c.h.b16 %v2886
        %v4316 = vunpack.c.l.b16 %v2887
        %v4317 = vunpack.c.h.b16 %v2887
        %v4318 = vunpack.c.l.b16 %v2888
        %v4319 = vunpack.c.h.b16 %v2888
        %v4320 = vunpack.c.l.b16 %v2889
        %v4321 = vunpack.c.h.b16 %v2889
        %v4322 = vunpack.c.l.b16 %v2890
        %v4323 = vunpack.c.h.b16 %v2890
        %v4324 = vunpack.c.l.b16 %v2891
        %v4325 = vunpack.c.h.b16 %v2891
        %v4326 = vunpack.c.l.b16 %v2892
        %v4327 = vunpack.c.h.b16 %v2892
        %v4328 = vunpack.c.l.b16 %v2893
        %v4329 = vunpack.c.h.b16 %v2893
        %v4330 = vunpack.c.l.b16 %v2894
        %v4331 = vunpack.c.h.b16 %v2894
        %v4332 = vunpack.c.l.b16 %v2895
        %v4333 = vunpack.c.h.b16 %v2895
        %v4334 = vunpack.c.l.b16 %v2896
        %v4335 = vunpack.c.h.b16 %v2896
        %v4336 = vunpack.c.l.b16 %v2897
        %v4337 = vunpack.c.h.b16 %v2897
        %v4338 = vunpack.c.l.b16 %v2898
        %v4339 = vunpack.c.h.b16 %v2898
        %v4340 = vunpack.c.l.b16 %v2899
        %v4341 = vunpack.c.h.b16 %v2899
        %v4342 = vunpack.c.l.b16 %v2900
        %v4343 = vunpack.c.h.b16 %v2900
        %v4344 = vunpack.c.l.b16 %v2901
        %v4345 = vunpack.c.h.b16 %v2901
        %v4346 = vunpack.c.l.b16 %v2902
        %v4347 = vunpack.c.h.b16 %v2902
        %v4348 = vunpack.c.l.b16 %v2903
        %v4349 = vunpack.c.h.b16 %v2903
        %v4350 = vunpack.c.l.b16 %v2904
        %v4351 = vunpack.c.h.b16 %v2904
        %v4352 = vunpack.c.l.b16 %v2905
        %v4353 = vunpack.c.h.b16 %v2905
        %v4354 = vunpack.c.l.b16 %v2906
        %v4355 = vunpack.c.h.b16 %v2906
        %v4356 = vunpack.c.l.b16 %v2907
        %v4357 = vunpack.c.h.b16 %v2907
        %v4358 = vunpack.c.l.b16 %v2908
        %v4359 = vunpack.c.h.b16 %v2908
        %v4360 = vunpack.c.l.b16 %v2909
        %v4361 = vunpack.c.h.b16 %v2909
        %v4362 = vunpack.c.l.b16 %v2910
        %v4363 = vunpack.c.h.b16 %v2910
        %v4364 = vunpack.c.l.b16 %v2911
        %v4365 = vunpack.c.h.b16 %v2911
        %v4366 = vunpack.c.l.b16 %v2912
        %v4367 = vunpack.c.h.b16 %v2912
        %v4368 = vunpack.c.l.b16 %v2913
        %v4369 = vunpack.c.h.b16 %v2913
        %v4370 = vunpack.c.l.b16 %v2914
        %v4371 = vunpack.c.h.b16 %v2914
        %v4372 = vunpack.c.l.b16 %v2915
        %v4373 = vunpack.c.h.b16 %v2915
        %v4374 = vunpack.c.l.b16 %v2916
        %v4375 = vunpack.c.h.b16 %v2916
        %v4376 = vunpack.c.l.b16 %v2917
        %v4377 = vunpack.c.h.b16 %v2917
        %v4378 = vunpack.c.l.b16 %v2918
        %v4379 = vunpack.c.h.b16 %v2918
        %v4380 = vunpack.c.l.b16 %v2919
        %v4381 = vunpack.c.h.b16 %v2919
        %v4382 = vunpack.c.l.b16 %v2920
        %v4383 = vunpack.c.h.b16 %v2920
        %v4384 = vunpack.c.l.b16 %v2921
        %v4385 = vunpack.c.h.b16 %v2921
        %v4386 = vunpack.c.l.b16 %v2922
        %v4387 = vunpack.c.h.b16 %v2922
        %v4388 = vunpack.c.l.b16 %v2923
        %v4389 = vunpack.c.h.b16 %v2923
        %v4390 = vunpack.c.l.b16 %v2924
        %v4391 = vunpack.c.h.b16 %v2924
        %v4392 = vunpack.c.l.b16 %v2925
        %v4393 = vunpack.c.h.b16 %v2925
        %v4394 = vunpack.c.l.b16 %v2926
        %v4395 = vunpack.c.h.b16 %v2926
        %v4396 = vunpack.c.l.b16 %v2927
        %v4397 = vunpack.c.h.b16 %v2927
        %v4398 = vunpack.c.l.b16 %v2928
        %v4399 = vunpack.c.h.b16 %v2928
        %v4400 = vunpack.c.l.b16 %v2929
        %v4401 = vunpack.c.h.b16 %v2929
        %v4402 = vunpack.c.l.b16 %v2930
        %v4403 = vunpack.c.h.b16 %v2930
        %v4404 = vunpack.c.l.b16 %v2931
        %v4405 = vunpack.c.h.b16 %v2931
        %v4406 = vunpack.c.l.b16 %v2932
        %v4407 = vunpack.c.h.b16 %v2932
        %v4408 = vunpack.c.l.b16 %v2933
        %v4409 = vunpack.c.h.b16 %v2933
        %v4410 = vunpack.c.l.b16 %v2934
        %v4411 = vunpack.c.h.b16 %v2934
        %v4412 = vunpack.c.l.b16 %v2935
        %v4413 = vunpack.c.h.b16 %v2935
        %v4414 = vunpack.c.l.b16 %v2936
        %v4415 = vunpack.c.h.b16 %v2936
        %v4416 = vunpack.c.l.b16 %v2937
        %v4417 = vunpack.c.h.b16 %v2937
        %v4418 = vunpack.c.l.b16 %v2938
        %v4419 = vunpack.c.h.b16 %v2938
        %v4420 = vunpack.c.l.b16 %v2939
        %v4421 = vunpack.c.h.b16 %v2939
        %v4422 = vunpack.c.l.b16 %v2940
        %v4423 = vunpack.c.h.b16 %v2940
        %v4424 = vunpack.c.l.b16 %v2941
        %v4425 = vunpack.c.h.b16 %v2941
        %v4426 = vunpack.c.l.b16 %v2942
        %v4427 = vunpack.c.h.b16 %v2942
        %v4428 = vunpack.c.l.b16 %v2943
        %v4429 = vunpack.c.h.b16 %v2943
        %v4430 = vunpack.c.l.b16 %v2944
        %v4431 = vunpack.c.h.b16 %v2944
        %v4432 = vunpack.c.l.b16 %v2945
        %v4433 = vunpack.c.h.b16 %v2945
        %v4434 = vunpack.c.l.b16 %v2946
        %v4435 = vunpack.c.h.b16 %v2946
        %v4436 = vunpack.c.l.b16 %v2947
        %v4437 = vunpack.c.h.b16 %v2947
        %v4438 = vunpack.c.l.b16 %v2948
        %v4439 = vunpack.c.h.b16 %v2948
        %v4440 = vunpack.c.l.b16 %v2949
        %v4441 = vunpack.c.h.b16 %v2949
        %v4442 = vunpack.c.l.b16 %v2950
        %v4443 = vunpack.c.h.b16 %v2950
        %v4444 = vunpack.c.l.b16 %v2951
        %v4445 = vunpack.c.h.b16 %v2951
        %v4446 = vunpack.c.l.b16 %v2952
        %v4447 = vunpack.c.h.b16 %v2952
        %v4448 = vunpack.c.l.b16 %v2953
        %v4449 = vunpack.c.h.b16 %v2953
        %v4450 = vunpack.c.l.b16 %v2954
        %v4451 = vunpack.c.h.b16 %v2954
        %v4452 = vunpack.c.l.b16 %v2955
        %v4453 = vunpack.c.h.b16 %v2955
        %v4454 = vunpack.c.l.b16 %v2956
        %v4455 = vunpack.c.h.b16 %v2956
        %v4456 = vunpack.c.l.b16 %v2957
        %v4457 = vunpack.c.h.b16 %v2957
        %v4458 = vunpack.c.l.b16 %v2958
        %v4459 = vunpack.c.h.b16 %v2958
        %v4460 = vunpack.c.l.b16 %v2959
        %v4461 = vunpack.c.h.b16 %v2959
        %v4462 = vunpack.c.l.b16 %v2960
        %v4463 = vunpack.c.h.b16 %v2960
        %v4464 = vunpack.c.l.b16 %v2961
        %v4465 = vunpack.c.h.b16 %v2961
        %v4466 = vunpack.c.l.b16 %v2962
        %v4467 = vunpack.c.h.b16 %v2962
        %v4468 = vunpack.c.l.b16 %v2963
        %v4469 = vunpack.c.h.b16 %v2963
        %v4470 = vunpack.c.l.b16 %v2964
        %v4471 = vunpack.c.h.b16 %v2964
        %v4472 = vunpack.c.l.b16 %v2965
        %v4473 = vunpack.c.h.b16 %v2965
        %v4474 = vunpack.c.l.b16 %v2966
        %v4475 = vunpack.c.h.b16 %v2966
        %v4476 = vunpack.c.l.b16 %v2967
        %v4477 = vunpack.c.h.b16 %v2967
        %v4478 = vunpack.c.l.b16 %v2968
        %v4479 = vunpack.c.h.b16 %v2968
        %v4480 = vunpack.c.l.b16 %v2969
        %v4481 = vunpack.c.h.b16 %v2969
        %v4482 = vunpack.c.l.b16 %v2970
        %v4483 = vunpack.c.h.b16 %v2970
        %v4484 = vunpack.c.l.b16 %v2971
        %v4485 = vunpack.c.h.b16 %v2971
        %v4486 = vunpack.c.l.b16 %v2972
        %v4487 = vunpack.c.h.b16 %v2972
        %v4488 = vunpack.c.l.b16 %v2973
        %v4489 = vunpack.c.h.b16 %v2973
        %v4490 = vunpack.c.l.b16 %v2974
        %v4491 = vunpack.c.h.b16 %v2974
        %v4492 = vunpack.c.l.b16 %v2975
        %v4493 = vunpack.c.h.b16 %v2975
        %v4494 = vunpack.c.l.b16 %v2976
        %v4495 = vunpack.c.h.b16 %v2976
        %v4496 = vunpack.c.l.b16 %v2977
        %v4497 = vunpack.c.h.b16 %v2977
        %v4498 = vunpack.c.l.b16 %v2978
        %v4499 = vunpack.c.h.b16 %v2978
        %v4500 = vunpack.c.l.b16 %v2979
        %v4501 = vunpack.c.h.b16 %v2979
        %v4502 = vunpack.c.l.b16 %v2980
        %v4503 = vunpack.c.h.b16 %v2980
        %v4504 = vunpack.c.l.b16 %v2981
        %v4505 = vunpack.c.h.b16 %v2981
        %v4506 = vunpack.c.l.b16 %v2982
        %v4507 = vunpack.c.h.b16 %v2982
        %v4508 = vunpack.c.l.b16 %v2983
        %v4509 = vunpack.c.h.b16 %v2983
        %v4510 = vunpack.c.l.b16 %v2984
        %v4511 = vunpack.c.h.b16 %v2984
        %v4512 = vunpack.c.l.b16 %v2985
        %v4513 = vunpack.c.h.b16 %v2985
        %v4514 = vunpack.c.l.b16 %v2986
        %v4515 = vunpack.c.h.b16 %v2986
        %v4516 = vunpack.c.l.b16 %v2987
        %v4517 = vunpack.c.h.b16 %v2987
        %v4518 = vunpack.c.l.b16 %v2988
        %v4519 = vunpack.c.h.b16 %v2988
        %v4520 = vunpack.c.l.b16 %v2989
        %v4521 = vunpack.c.h.b16 %v2989
        %v4522 = vunpack.c.l.b16 %v2990
        %v4523 = vunpack.c.h.b16 %v2990
        %v4524 = vunpack.c.l.b16 %v2991
        %v4525 = vunpack.c.h.b16 %v2991
        %v4526 = vunpack.c.l.b16 %v2992
        %v4527 = vunpack.c.h.b16 %v2992
        %v4528 = vunpack.c.l.b16 %v2993
        %v4529 = vunpack.c.h.b16 %v2993
        %v4530 = vunpack.c.l.b16 %v2994
        %v4531 = vunpack.c.h.b16 %v2994
        %v4532 = vunpack.c.l.b16 %v2995
        %v4533 = vunpack.c.h.b16 %v2995
        %v4534 = vunpack.c.l.b16 %v2996
        %v4535 = vunpack.c.h.b16 %v2996
        %v4536 = vunpack.c.l.b16 %v2997
        %v4537 = vunpack.c.h.b16 %v2997
        %v4538 = vunpack.c.l.b16 %v2998
        %v4539 = vunpack.c.h.b16 %v2998
        %v4540 = vunpack.c.l.b16 %v2999
        %v4541 = vunpack.c.h.b16 %v2999
        %v4542 = vunpack.c.l.b16 %v3000
        %v4543 = vunpack.c.h.b16 %v3000
        %v4544 = vunpack.c.l.b16 %v3001
        %v4545 = vunpack.c.h.b16 %v3001
        %v4546 = vunpack.c.l.b16 %v3002
        %v4547 = vunpack.c.h.b16 %v3002
        %v4548 = vunpack.c.l.b16 %v3003
        %v4549 = vunpack.c.h.b16 %v3003
        %v4550 = vunpack.c.l.b16 %v3004
        %v4551 = vunpack.c.h.b16 %v3004
        %v4552 = vunpack.c.l.b16 %v3005
        %v4553 = vunpack.c.h.b16 %v3005
        %v4554 = vunpack.c.l.b16 %v3006
        %v4555 = vunpack.c.h.b16 %v3006
        %v4556 = vunpack.c.l.b16 %v3007
        %v4557 = vunpack.c.h.b16 %v3007
        %v4558 = vunpack.c.l.b16 %v3008
        %v4559 = vunpack.c.h.b16 %v3008
        %v4560 = vunpack.c.l.b16 %v3009
        %v4561 = vunpack.c.h.b16 %v3009
        %v4562 = vunpack.c.l.b16 %v3010
        %v4563 = vunpack.c.h.b16 %v3010
        %v4564 = vunpack.c.l.b16 %v3011
        %v4565 = vunpack.c.h.b16 %v3011
        %v4566 = vunpack.c.l.b16 %v3012
        %v4567 = vunpack.c.h.b16 %v3012
        %v4568 = vunpack.c.l.b16 %v3013
        %v4569 = vunpack.c.h.b16 %v3013
        %v4570 = vunpack.c.l.b16 %v3014
        %v4571 = vunpack.c.h.b16 %v3014
        %v4572 = vunpack.c.l.b16 %v3015
        %v4573 = vunpack.c.h.b16 %v3015
        %v4574 = vunpack.c.l.b16 %v3016
        %v4575 = vunpack.c.h.b16 %v3016
        %v4576 = vunpack.c.l.b16 %v3017
        %v4577 = vunpack.c.h.b16 %v3017
        %v4578 = vunpack.c.l.b16 %v3018
        %v4579 = vunpack.c.h.b16 %v3018
        %v4580 = vunpack.c.l.b16 %v3019
        %v4581 = vunpack.c.h.b16 %v3019
        %v4582 = vunpack.c.l.b16 %v3020
        %v4583 = vunpack.c.h.b16 %v3020
        %v4584 = vunpack.c.l.b16 %v3021
        %v4585 = vunpack.c.h.b16 %v3021
        %v4586 = vunpack.c.l.b16 %v3022
        %v4587 = vunpack.c.h.b16 %v3022
        %v4588 = vunpack.c.l.b16 %v3023
        %v4589 = vunpack.c.h.b16 %v3023
        %v4590 = vunpack.c.l.b16 %v3024
        %v4591 = vunpack.c.h.b16 %v3024
        %v4592 = vunpack.c.l.b16 %v3025
        %v4593 = vunpack.c.h.b16 %v3025
        %v4594 = vunpack.c.l.b16 %v3026
        %v4595 = vunpack.c.h.b16 %v3026
        %v4596 = vunpack.c.l.b16 %v3027
        %v4597 = vunpack.c.h.b16 %v3027
        %v4598 = vunpack.c.l.b16 %v3028
        %v4599 = vunpack.c.h.b16 %v3028
        %v4600 = vunpack.c.l.b16 %v3029
        %v4601 = vunpack.c.h.b16 %v3029
        %v4602 = vunpack.c.l.b16 %v3030
        %v4603 = vunpack.c.h.b16 %v3030
        %v4604 = vunpack.c.l.b16 %v3031
        %v4605 = vunpack.c.h.b16 %v3031
        %v4606 = vunpack.c.l.b16 %v3032
        %v4607 = vunpack.c.h.b16 %v3032
        %v4608 = vunpack.c.l.b16 %v3033
        %v4609 = vunpack.c.h.b16 %v3033
        %v4610 = vunpack.c.l.b16 %v3034
        %v4611 = vunpack.c.h.b16 %v3034
        %v4612 = vunpack.c.l.b16 %v3035
        %v4613 = vunpack.c.h.b16 %v3035
        %v4614 = vpack.c.b16 %v3598, %v3590
        %v4615 = vpack.c.b16 %v3599, %v3591
        %v4616 = vpack.c.b16 %v3600, %v3592
        %v4617 = vpack.c.b16 %v3601, %v3593
        %v4618 = vpack.c.b16 %v3602, %v3594
        %v4619 = vpack.c.b16 %v3603, %v3595
        %v4620 = vpack.c.b16 %v3604, %v3596
        %v4621 = vpack.c.b16 %v3605, %v3597
        %v4622 = vpack.c.b16 %v3614, %v3606
        %v4623 = vpack.c.b16 %v3615, %v3607
        %v4624 = vpack.c.b16 %v3616, %v3608
        %v4625 = vpack.c.b16 %v3617, %v3609
        %v4626 = vpack.c.b16 %v3618, %v3610
        %v4627 = vpack.c.b16 %v3619, %v3611
        %v4628 = vpack.c.b16 %v3620, %v3612
        %v4629 = vpack.c.b16 %v3621, %v3613
        %v4630 = vpack.c.b16 %v3630, %v3622
        %v4631 = vpack.c.b16 %v3631, %v3623
        %v4632 = vpack.c.b16 %v3632, %v3624
        %v4633 = vpack.c.b16 %v3633, %v3625
        %v4634 = vpack.c.b16 %v3634, %v3626
        %v4635 = vpack.c.b16 %v3635, %v3627
        %v4636 = vpack.c.b16 %v3636, %v3628
        %v4637 = vpack.c.b16 %v3637, %v3629
        %v4638 = vpack.c.b16 %v3646, %v3638
        %v4639 = vpack.c.b16 %v3647, %v3639
        %v4640 = vpack.c.b16 %v3648, %v3640
        %v4641 = vpack.c.b16 %v3649, %v3641
        %v4642 = vpack.c.b16 %v3650, %v3642
        %v4643 = vpack.c.b16 %v3651, %v3643
        %v4644 = vpack.c.b16 %v3652, %v3644
        %v4645 = vpack.c.b16 %v3653, %v3645
        %v4646 = vpack.c.b16 %v3662, %v3654
        %v4647 = vpack.c.b16 %v3663, %v3655
        %v4648 = vpack.c.b16 %v3664, %v3656
        %v4649 = vpack.c.b16 %v3665, %v3657
        %v4650 = vpack.c.b16 %v3666, %v3658
        %v4651 = vpack.c.b16 %v3667, %v3659
        %v4652 = vpack.c.b16 %v3668, %v3660
        %v4653 = vpack.c.b16 %v3669, %v3661
        %v4654 = vpack.c.b16 %v3678, %v3670
        %v4655 = vpack.c.b16 %v3679, %v3671
        %v4656 = vpack.c.b16 %v3680, %v3672
        %v4657 = vpack.c.b16 %v3681, %v3673
        %v4658 = vpack.c.b16 %v3682, %v3674
        %v4659 = vpack.c.b16 %v3683, %v3675
        %v4660 = vpack.c.b16 %v3684, %v3676
        %v4661 = vpack.c.b16 %v3685, %v3677
        %v4662 = vpack.c.b16 %v3694, %v3686
        %v4663 = vpack.c.b16 %v3695, %v3687
        %v4664 = vpack.c.b16 %v3696, %v3688
        %v4665 = vpack.c.b16 %v3697, %v3689
        %v4666 = vpack.c.b16 %v3698, %v3690
        %v4667 = vpack.c.b16 %v3699, %v3691
        %v4668 = vpack.c.b16 %v3700, %v3692
        %v4669 = vpack.c.b16 %v3701, %v3693
        %v4670 = vpack.c.b16 %v3710, %v3702
        %v4671 = vpack.c.b16 %v3711, %v3703
        %v4672 = vpack.c.b16 %v3712, %v3704
        %v4673 = vpack.c.b16 %v3713, %v3705
        %v4674 = vpack.c.b16 %v3714, %v3706
        %v4675 = vpack.c.b16 %v3715, %v3707
        %v4676 = vpack.c.b16 %v3716, %v3708
        %v4677 = vpack.c.b16 %v3717, %v3709
        %v4678 = vpack.c.b16 %v3726, %v3718
        %v4679 = vpack.c.b16 %v3727, %v3719
        %v4680 = vpack.c.b16 %v3728, %v3720
        %v4681 = vpack.c.b16 %v3729, %v3721
        %v4682 = vpack.c.b16 %v3730, %v3722
        %v4683 = vpack.c.b16 %v3731, %v3723
        %v4684 = vpack.c.b16 %v3732, %v3724
        %v4685 = vpack.c.b16 %v3733, %v3725
        %v4686 = vpack.c.b16 %v3742, %v3734
        %v4687 = vpack.c.b16 %v3743, %v3735
        %v4688 = vpack.c.b16 %v3744, %v3736
        %v4689 = vpack.c.b16 %v3745, %v3737
        %v4690 = vpack.c.b16 %v3746, %v3738
        %v4691 = vpack.c.b16 %v3747, %v3739
        %v4692 = vpack.c.b16 %v3748, %v3740
        %v4693 = vpack.c.b16 %v3749, %v3741
        %v4694 = vpack.c.b16 %v3758, %v3750
        %v4695 = vpack.c.b16 %v3759, %v3751
        %v4696 = vpack.c.b16 %v3760, %v3752
        %v4697 = vpack.c.b16 %v3761, %v3753
        %v4698 = vpack.c.b16 %v3762, %v3754
        %v4699 = vpack.c.b16 %v3763, %v3755
        %v4700 = vpack.c.b16 %v3764, %v3756
        %v4701 = vpack.c.b16 %v3765, %v3757
        %v4702 = vpack.c.b16 %v3774, %v3766
        %v4703 = vpack.c.b16 %v3775, %v3767
        %v4704 = vpack.c.b16 %v3776, %v3768
        %v4705 = vpack.c.b16 %v3777, %v3769
        %v4706 = vpack.c.b16 %v3778, %v3770
        %v4707 = vpack.c.b16 %v3779, %v3771
        %v4708 = vpack.c.b16 %v3780, %v3772
        %v4709 = vpack.c.b16 %v3781, %v3773
        %v4710 = vpack.c.b16 %v3790, %v3782
        %v4711 = vpack.c.b16 %v3791, %v3783
        %v4712 = vpack.c.b16 %v3792, %v3784
        %v4713 = vpack.c.b16 %v3793, %v3785
        %v4714 = vpack.c.b16 %v3794, %v3786
        %v4715 = vpack.c.b16 %v3795, %v3787
        %v4716 = vpack.c.b16 %v3796, %v3788
        %v4717 = vpack.c.b16 %v3797, %v3789
        %v4718 = vpack.c.b16 %v3806, %v3798
        %v4719 = vpack.c.b16 %v3807, %v3799
        %v4720 = vpack.c.b16 %v3808, %v3800
        %v4721 = vpack.c.b16 %v3809, %v3801
        %v4722 = vpack.c.b16 %v3810, %v3802
        %v4723 = vpack.c.b16 %v3811, %v3803
        %v4724 = vpack.c.b16 %v3812, %v3804
        %v4725 = vpack.c.b16 %v3813, %v3805
        %v4726 = vpack.c.b16 %v3822, %v3814
        %v4727 = vpack.c.b16 %v3823, %v3815
        %v4728 = vpack.c.b16 %v3824, %v3816
        %v4729 = vpack.c.b16 %v3825, %v3817
        %v4730 = vpack.c.b16 %v3826, %v3818
        %v4731 = vpack.c.b16 %v3827, %v3819
        %v4732 = vpack.c.b16 %v3828, %v3820
        %v4733 = vpack.c.b16 %v3829, %v3821
        %v4734 = vpack.c.b16 %v3838, %v3830
        %v4735 = vpack.c.b16 %v3839, %v3831
        %v4736 = vpack.c.b16 %v3840, %v3832
        %v4737 = vpack.c.b16 %v3841, %v3833
        %v4738 = vpack.c.b16 %v3842, %v3834
        %v4739 = vpack.c.b16 %v3843, %v3835
        %v4740 = vpack.c.b16 %v3844, %v3836
        %v4741 = vpack.c.b16 %v3845, %v3837
        %v4742 = vpack.c.b16 %v3854, %v3846
        %v4743 = vpack.c.b16 %v3855, %v3847
        %v4744 = vpack.c.b16 %v3856, %v3848
        %v4745 = vpack.c.b16 %v3857, %v3849
        %v4746 = vpack.c.b16 %v3858, %v3850
        %v4747 = vpack.c.b16 %v3859, %v3851
        %v4748 = vpack.c.b16 %v3860, %v3852
        %v4749 = vpack.c.b16 %v3861, %v3853
        %v4750 = vpack.c.b16 %v3870, %v3862
        %v4751 = vpack.c.b16 %v3871, %v3863
        %v4752 = vpack.c.b16 %v3872, %v3864
        %v4753 = vpack.c.b16 %v3873, %v3865
        %v4754 = vpack.c.b16 %v3874, %v3866
        %v4755 = vpack.c.b16 %v3875, %v3867
        %v4756 = vpack.c.b16 %v3876, %v3868
        %v4757 = vpack.c.b16 %v3877, %v3869
        %v4758 = vpack.c.b16 %v3886, %v3878
        %v4759 = vpack.c.b16 %v3887, %v3879
        %v4760 = vpack.c.b16 %v3888, %v3880
        %v4761 = vpack.c.b16 %v3889, %v3881
        %v4762 = vpack.c.b16 %v3890, %v3882
        %v4763 = vpack.c.b16 %v3891, %v3883
        %v4764 = vpack.c.b16 %v3892, %v3884
        %v4765 = vpack.c.b16 %v3893, %v3885
        %v4766 = vpack.c.b16 %v3902, %v3894
        %v4767 = vpack.c.b16 %v3903, %v3895
        %v4768 = vpack.c.b16 %v3904, %v3896
        %v4769 = vpack.c.b16 %v3905, %v3897
        %v4770 = vpack.c.b16 %v3906, %v3898
        %v4771 = vpack.c.b16 %v3907, %v3899
        %v4772 = vpack.c.b16 %v3908, %v3900
        %v4773 = vpack.c.b16 %v3909, %v3901
        %v4774 = vpack.c.b16 %v3918, %v3910
        %v4775 = vpack.c.b16 %v3919, %v3911
        %v4776 = vpack.c.b16 %v3920, %v3912
        %v4777 = vpack.c.b16 %v3921, %v3913
        %v4778 = vpack.c.b16 %v3922, %v3914
        %v4779 = vpack.c.b16 %v3923, %v3915
        %v4780 = vpack.c.b16 %v3924, %v3916
        %v4781 = vpack.c.b16 %v3925, %v3917
        %v4782 = vpack.c.b16 %v3934, %v3926
        %v4783 = vpack.c.b16 %v3935, %v3927
        %v4784 = vpack.c.b16 %v3936, %v3928
        %v4785 = vpack.c.b16 %v3937, %v3929
        %v4786 = vpack.c.b16 %v3938, %v3930
        %v4787 = vpack.c.b16 %v3939, %v3931
        %v4788 = vpack.c.b16 %v3940, %v3932
        %v4789 = vpack.c.b16 %v3941, %v3933
        %v4790 = vpack.c.b16 %v3950, %v3942
        %v4791 = vpack.c.b16 %v3951, %v3943
        %v4792 = vpack.c.b16 %v3952, %v3944
        %v4793 = vpack.c.b16 %v3953, %v3945
        %v4794 = vpack.c.b16 %v3954, %v3946
        %v4795 = vpack.c.b16 %v3955, %v3947
        %v4796 = vpack.c.b16 %v3956, %v3948
        %v4797 = vpack.c.b16 %v3957, %v3949
        %v4798 = vpack.c.b16 %v3966, %v3958
        %v4799 = vpack.c.b16 %v3967, %v3959
        %v4800 = vpack.c.b16 %v3968, %v3960
        %v4801 = vpack.c.b16 %v3969, %v3961
        %v4802 = vpack.c.b16 %v3970, %v3962
        %v4803 = vpack.c.b16 %v3971, %v3963
        %v4804 = vpack.c.b16 %v3972, %v3964
        %v4805 = vpack.c.b16 %v3973, %v3965
        %v4806 = vpack.c.b16 %v3982, %v3974
        %v4807 = vpack.c.b16 %v3983, %v3975
        %v4808 = vpack.c.b16 %v3984, %v3976
        %v4809 = vpack.c.b16 %v3985, %v3977
        %v4810 = vpack.c.b16 %v3986, %v3978
        %v4811 = vpack.c.b16 %v3987, %v3979
        %v4812 = vpack.c.b16 %v3988, %v3980
        %v4813 = vpack.c.b16 %v3989, %v3981
        %v4814 = vpack.c.b16 %v3998, %v3990
        %v4815 = vpack.c.b16 %v3999, %v3991
        %v4816 = vpack.c.b16 %v4000, %v3992
        %v4817 = vpack.c.b16 %v4001, %v3993
        %v4818 = vpack.c.b16 %v4002, %v3994
        %v4819 = vpack.c.b16 %v4003, %v3995
        %v4820 = vpack.c.b16 %v4004, %v3996
        %v4821 = vpack.c.b16 %v4005, %v3997
        %v4822 = vpack.c.b16 %v4014, %v4006
        %v4823 = vpack.c.b16 %v4015, %v4007
        %v4824 = vpack.c.b16 %v4016, %v4008
        %v4825 = vpack.c.b16 %v4017, %v4009
        %v4826 = vpack.c.b16 %v4018, %v4010
        %v4827 = vpack.c.b16 %v4019, %v4011
        %v4828 = vpack.c.b16 %v4020, %v4012
        %v4829 = vpack.c.b16 %v4021, %v4013
        %v4830 = vpack.c.b16 %v4030, %v4022
        %v4831 = vpack.c.b16 %v4031, %v4023
        %v4832 = vpack.c.b16 %v4032, %v4024
        %v4833 = vpack.c.b16 %v4033, %v4025
        %v4834 = vpack.c.b16 %v4034, %v4026
        %v4835 = vpack.c.b16 %v4035, %v4027
        %v4836 = vpack.c.b16 %v4036, %v4028
        %v4837 = vpack.c.b16 %v4037, %v4029
        %v4838 = vpack.c.b16 %v4046, %v4038
        %v4839 = vpack.c.b16 %v4047, %v4039
        %v4840 = vpack.c.b16 %v4048, %v4040
        %v4841 = vpack.c.b16 %v4049, %v4041
        %v4842 = vpack.c.b16 %v4050, %v4042
        %v4843 = vpack.c.b16 %v4051, %v4043
        %v4844 = vpack.c.b16 %v4052, %v4044
        %v4845 = vpack.c.b16 %v4053, %v4045
        %v4846 = vpack.c.b16 %v4062, %v4054
        %v4847 = vpack.c.b16 %v4063, %v4055
        %v4848 = vpack.c.b16 %v4064, %v4056
        %v4849 = vpack.c.b16 %v4065, %v4057
        %v4850 = vpack.c.b16 %v4066, %v4058
        %v4851 = vpack.c.b16 %v4067, %v4059
        %v4852 = vpack.c.b16 %v4068, %v4060
        %v4853 = vpack.c.b16 %v4069, %v4061
        %v4854 = vpack.c.b16 %v4078, %v4070
        %v4855 = vpack.c.b16 %v4079, %v4071
        %v4856 = vpack.c.b16 %v4080, %v4072
        %v4857 = vpack.c.b16 %v4081, %v4073
        %v4858 = vpack.c.b16 %v4082, %v4074
        %v4859 = vpack.c.b16 %v4083, %v4075
        %v4860 = vpack.c.b16 %v4084, %v4076
        %v4861 = vpack.c.b16 %v4085, %v4077
        %v4862 = vpack.c.b16 %v4094, %v4086
        %v4863 = vpack.c.b16 %v4095, %v4087
        %v4864 = vpack.c.b16 %v4096, %v4088
        %v4865 = vpack.c.b16 %v4097, %v4089
        %v4866 = vpack.c.b16 %v4098, %v4090
        %v4867 = vpack.c.b16 %v4099, %v4091
        %v4868 = vpack.c.b16 %v4100, %v4092
        %v4869 = vpack.c.b16 %v4101, %v4093
        %v4870 = vpack.c.b16 %v4110, %v4102
        %v4871 = vpack.c.b16 %v4111, %v4103
        %v4872 = vpack.c.b16 %v4112, %v4104
        %v4873 = vpack.c.b16 %v4113, %v4105
        %v4874 = vpack.c.b16 %v4114, %v4106
        %v4875 = vpack.c.b16 %v4115, %v4107
        %v4876 = vpack.c.b16 %v4116, %v4108
        %v4877 = vpack.c.b16 %v4117, %v4109
        %v4878 = vpack.c.b16 %v4126, %v4118
        %v4879 = vpack.c.b16 %v4127, %v4119
        %v4880 = vpack.c.b16 %v4128, %v4120
        %v4881 = vpack.c.b16 %v4129, %v4121
        %v4882 = vpack.c.b16 %v4130, %v4122
        %v4883 = vpack.c.b16 %v4131, %v4123
        %v4884 = vpack.c.b16 %v4132, %v4124
        %v4885 = vpack.c.b16 %v4133, %v4125
        %v4886 = vpack.c.b16 %v4142, %v4134
        %v4887 = vpack.c.b16 %v4143, %v4135
        %v4888 = vpack.c.b16 %v4144, %v4136
        %v4889 = vpack.c.b16 %v4145, %v4137
        %v4890 = vpack.c.b16 %v4146, %v4138
        %v4891 = vpack.c.b16 %v4147, %v4139
        %v4892 = vpack.c.b16 %v4148, %v4140
        %v4893 = vpack.c.b16 %v4149, %v4141
        %v4894 = vpack.c.b16 %v4158, %v4150
        %v4895 = vpack.c.b16 %v4159, %v4151
        %v4896 = vpack.c.b16 %v4160, %v4152
        %v4897 = vpack.c.b16 %v4161, %v4153
        %v4898 = vpack.c.b16 %v4162, %v4154
        %v4899 = vpack.c.b16 %v4163, %v4155
        %v4900 = vpack.c.b16 %v4164, %v4156
        %v4901 = vpack.c.b16 %v4165, %v4157
        %v4902 = vpack.c.b16 %v4174, %v4166
        %v4903 = vpack.c.b16 %v4175, %v4167
        %v4904 = vpack.c.b16 %v4176, %v4168
        %v4905 = vpack.c.b16 %v4177, %v4169
        %v4906 = vpack.c.b16 %v4178, %v4170
        %v4907 = vpack.c.b16 %v4179, %v4171
        %v4908 = vpack.c.b16 %v4180, %v4172
        %v4909 = vpack.c.b16 %v4181, %v4173
        %v4910 = vpack.c.b16 %v4190, %v4182
        %v4911 = vpack.c.b16 %v4191, %v4183
        %v4912 = vpack.c.b16 %v4192, %v4184
        %v4913 = vpack.c.b16 %v4193, %v4185
        %v4914 = vpack.c.b16 %v4194, %v4186
        %v4915 = vpack.c.b16 %v4195, %v4187
        %v4916 = vpack.c.b16 %v4196, %v4188
        %v4917 = vpack.c.b16 %v4197, %v4189
        %v4918 = vpack.c.b16 %v4206, %v4198
        %v4919 = vpack.c.b16 %v4207, %v4199
        %v4920 = vpack.c.b16 %v4208, %v4200
        %v4921 = vpack.c.b16 %v4209, %v4201
        %v4922 = vpack.c.b16 %v4210, %v4202
        %v4923 = vpack.c.b16 %v4211, %v4203
        %v4924 = vpack.c.b16 %v4212, %v4204
        %v4925 = vpack.c.b16 %v4213, %v4205
        %v4926 = vpack.c.b16 %v4222, %v4214
        %v4927 = vpack.c.b16 %v4223, %v4215
        %v4928 = vpack.c.b16 %v4224, %v4216
        %v4929 = vpack.c.b16 %v4225, %v4217
        %v4930 = vpack.c.b16 %v4226, %v4218
        %v4931 = vpack.c.b16 %v4227, %v4219
        %v4932 = vpack.c.b16 %v4228, %v4220
        %v4933 = vpack.c.b16 %v4229, %v4221
        %v4934 = vpack.c.b16 %v4238, %v4230
        %v4935 = vpack.c.b16 %v4239, %v4231
        %v4936 = vpack.c.b16 %v4240, %v4232
        %v4937 = vpack.c.b16 %v4241, %v4233
        %v4938 = vpack.c.b16 %v4242, %v4234
        %v4939 = vpack.c.b16 %v4243, %v4235
        %v4940 = vpack.c.b16 %v4244, %v4236
        %v4941 = vpack.c.b16 %v4245, %v4237
        %v4942 = vpack.c.b16 %v4254, %v4246
        %v4943 = vpack.c.b16 %v4255, %v4247
        %v4944 = vpack.c.b16 %v4256, %v4248
        %v4945 = vpack.c.b16 %v4257, %v4249
        %v4946 = vpack.c.b16 %v4258, %v4250
        %v4947 = vpack.c.b16 %v4259, %v4251
        %v4948 = vpack.c.b16 %v4260, %v4252
        %v4949 = vpack.c.b16 %v4261, %v4253
        %v4950 = vpack.c.b16 %v4270, %v4262
        %v4951 = vpack.c.b16 %v4271, %v4263
        %v4952 = vpack.c.b16 %v4272, %v4264
        %v4953 = vpack.c.b16 %v4273, %v4265
        %v4954 = vpack.c.b16 %v4274, %v4266
        %v4955 = vpack.c.b16 %v4275, %v4267
        %v4956 = vpack.c.b16 %v4276, %v4268
        %v4957 = vpack.c.b16 %v4277, %v4269
        %v4958 = vpack.c.b16 %v4286, %v4278
        %v4959 = vpack.c.b16 %v4287, %v4279
        %v4960 = vpack.c.b16 %v4288, %v4280
        %v4961 = vpack.c.b16 %v4289, %v4281
        %v4962 = vpack.c.b16 %v4290, %v4282
        %v4963 = vpack.c.b16 %v4291, %v4283
        %v4964 = vpack.c.b16 %v4292, %v4284
        %v4965 = vpack.c.b16 %v4293, %v4285
        %v4966 = vpack.c.b16 %v4302, %v4294
        %v4967 = vpack.c.b16 %v4303, %v4295
        %v4968 = vpack.c.b16 %v4304, %v4296
        %v4969 = vpack.c.b16 %v4305, %v4297
        %v4970 = vpack.c.b16 %v4306, %v4298
        %v4971 = vpack.c.b16 %v4307, %v4299
        %v4972 = vpack.c.b16 %v4308, %v4300
        %v4973 = vpack.c.b16 %v4309, %v4301
        %v4974 = vpack.c.b16 %v4318, %v4310
        %v4975 = vpack.c.b16 %v4319, %v4311
        %v4976 = vpack.c.b16 %v4320, %v4312
        %v4977 = vpack.c.b16 %v4321, %v4313
        %v4978 = vpack.c.b16 %v4322, %v4314
        %v4979 = vpack.c.b16 %v4323, %v4315
        %v4980 = vpack.c.b16 %v4324, %v4316
        %v4981 = vpack.c.b16 %v4325, %v4317
        %v4982 = vpack.c.b16 %v4334, %v4326
        %v4983 = vpack.c.b16 %v4335, %v4327
        %v4984 = vpack.c.b16 %v4336, %v4328
        %v4985 = vpack.c.b16 %v4337, %v4329
        %v4986 = vpack.c.b16 %v4338, %v4330
        %v4987 = vpack.c.b16 %v4339, %v4331
        %v4988 = vpack.c.b16 %v4340, %v4332
        %v4989 = vpack.c.b16 %v4341, %v4333
        %v4990 = vpack.c.b16 %v4350, %v4342
        %v4991 = vpack.c.b16 %v4351, %v4343
        %v4992 = vpack.c.b16 %v4352, %v4344
        %v4993 = vpack.c.b16 %v4353, %v4345
        %v4994 = vpack.c.b16 %v4354, %v4346
        %v4995 = vpack.c.b16 %v4355, %v4347
        %v4996 = vpack.c.b16 %v4356, %v4348
        %v4997 = vpack.c.b16 %v4357, %v4349
        %v4998 = vpack.c.b16 %v4366, %v4358
        %v4999 = vpack.c.b16 %v4367, %v4359
        %v5000 = vpack.c.b16 %v4368, %v4360
        %v5001 = vpack.c.b16 %v4369, %v4361
        %v5002 = vpack.c.b16 %v4370, %v4362
        %v5003 = vpack.c.b16 %v4371, %v4363
        %v5004 = vpack.c.b16 %v4372, %v4364
        %v5005 = vpack.c.b16 %v4373, %v4365
        %v5006 = vpack.c.b16 %v4382, %v4374
        %v5007 = vpack.c.b16 %v4383, %v4375
        %v5008 = vpack.c.b16 %v4384, %v4376
        %v5009 = vpack.c.b16 %v4385, %v4377
        %v5010 = vpack.c.b16 %v4386, %v4378
        %v5011 = vpack.c.b16 %v4387, %v4379
        %v5012 = vpack.c.b16 %v4388, %v4380
        %v5013 = vpack.c.b16 %v4389, %v4381
        %v5014 = vpack.c.b16 %v4398, %v4390
        %v5015 = vpack.c.b16 %v4399, %v4391
        %v5016 = vpack.c.b16 %v4400, %v4392
        %v5017 = vpack.c.b16 %v4401, %v4393
        %v5018 = vpack.c.b16 %v4402, %v4394
        %v5019 = vpack.c.b16 %v4403, %v4395
        %v5020 = vpack.c.b16 %v4404, %v4396
        %v5021 = vpack.c.b16 %v4405, %v4397
        %v5022 = vpack.c.b16 %v4414, %v4406
        %v5023 = vpack.c.b16 %v4415, %v4407
        %v5024 = vpack.c.b16 %v4416, %v4408
        %v5025 = vpack.c.b16 %v4417, %v4409
        %v5026 = vpack.c.b16 %v4418, %v4410
        %v5027 = vpack.c.b16 %v4419, %v4411
        %v5028 = vpack.c.b16 %v4420, %v4412
        %v5029 = vpack.c.b16 %v4421, %v4413
        %v5030 = vpack.c.b16 %v4430, %v4422
        %v5031 = vpack.c.b16 %v4431, %v4423
        %v5032 = vpack.c.b16 %v4432, %v4424
        %v5033 = vpack.c.b16 %v4433, %v4425
        %v5034 = vpack.c.b16 %v4434, %v4426
        %v5035 = vpack.c.b16 %v4435, %v4427
        %v5036 = vpack.c.b16 %v4436, %v4428
        %v5037 = vpack.c.b16 %v4437, %v4429
        %v5038 = vpack.c.b16 %v4446, %v4438
        %v5039 = vpack.c.b16 %v4447, %v4439
        %v5040 = vpack.c.b16 %v4448, %v4440
        %v5041 = vpack.c.b16 %v4449, %v4441
        %v5042 = vpack.c.b16 %v4450, %v4442
        %v5043 = vpack.c.b16 %v4451, %v4443
        %v5044 = vpack.c.b16 %v4452, %v4444
        %v5045 = vpack.c.b16 %v4453, %v4445
        %v5046 = vpack.c.b16 %v4462, %v4454
        %v5047 = vpack.c.b16 %v4463, %v4455
        %v5048 = vpack.c.b16 %v4464, %v4456
        %v5049 = vpack.c.b16 %v4465, %v4457
        %v5050 = vpack.c.b16 %v4466, %v4458
        %v5051 = vpack.c.b16 %v4467, %v4459
        %v5052 = vpack.c.b16 %v4468, %v4460
        %v5053 = vpack.c.b16 %v4469, %v4461
        %v5054 = vpack.c.b16 %v4478, %v4470
        %v5055 = vpack.c.b16 %v4479, %v4471
        %v5056 = vpack.c.b16 %v4480, %v4472
        %v5057 = vpack.c.b16 %v4481, %v4473
        %v5058 = vpack.c.b16 %v4482, %v4474
        %v5059 = vpack.c.b16 %v4483, %v4475
        %v5060 = vpack.c.b16 %v4484, %v4476
        %v5061 = vpack.c.b16 %v4485, %v4477
        %v5062 = vpack.c.b16 %v4494, %v4486
        %v5063 = vpack.c.b16 %v4495, %v4487
        %v5064 = vpack.c.b16 %v4496, %v4488
        %v5065 = vpack.c.b16 %v4497, %v4489
        %v5066 = vpack.c.b16 %v4498, %v4490
        %v5067 = vpack.c.b16 %v4499, %v4491
        %v5068 = vpack.c.b16 %v4500, %v4492
        %v5069 = vpack.c.b16 %v4501, %v4493
        %v5070 = vpack.c.b16 %v4510, %v4502
        %v5071 = vpack.c.b16 %v4511, %v4503
        %v5072 = vpack.c.b16 %v4512, %v4504
        %v5073 = vpack.c.b16 %v4513, %v4505
        %v5074 = vpack.c.b16 %v4514, %v4506
        %v5075 = vpack.c.b16 %v4515, %v4507
        %v5076 = vpack.c.b16 %v4516, %v4508
        %v5077 = vpack.c.b16 %v4517, %v4509
        %v5078 = vpack.c.b16 %v4526, %v4518
        %v5079 = vpack.c.b16 %v4527, %v4519
        %v5080 = vpack.c.b16 %v4528, %v4520
        %v5081 = vpack.c.b16 %v4529, %v4521
        %v5082 = vpack.c.b16 %v4530, %v4522
        %v5083 = vpack.c.b16 %v4531, %v4523
        %v5084 = vpack.c.b16 %v4532, %v4524
        %v5085 = vpack.c.b16 %v4533, %v4525
        %v5086 = vpack.c.b16 %v4542, %v4534
        %v5087 = vpack.c.b16 %v4543, %v4535
        %v5088 = vpack.c.b16 %v4544, %v4536
        %v5089 = vpack.c.b16 %v4545, %v4537
        %v5090 = vpack.c.b16 %v4546, %v4538
        %v5091 = vpack.c.b16 %v4547, %v4539
        %v5092 = vpack.c.b16 %v4548, %v4540
        %v5093 = vpack.c.b16 %v4549, %v4541
        %v5094 = vpack.c.b16 %v4558, %v4550
        %v5095 = vpack.c.b16 %v4559, %v4551
        %v5096 = vpack.c.b16 %v4560, %v4552
        %v5097 = vpack.c.b16 %v4561, %v4553
        %v5098 = vpack.c.b16 %v4562, %v4554
        %v5099 = vpack.c.b16 %v4563, %v4555
        %v5100 = vpack.c.b16 %v4564, %v4556
        %v5101 = vpack.c.b16 %v4565, %v4557
        %v5102 = vpack.c.b16 %v4574, %v4566
        %v5103 = vpack.c.b16 %v4575, %v4567
        %v5104 = vpack.c.b16 %v4576, %v4568
        %v5105 = vpack.c.b16 %v4577, %v4569
        %v5106 = vpack.c.b16 %v4578, %v4570
        %v5107 = vpack.c.b16 %v4579, %v4571
        %v5108 = vpack.c.b16 %v4580, %v4572
        %v5109 = vpack.c.b16 %v4581, %v4573
        %v5110 = vpack.c.b16 %v4590, %v4582
        %v5111 = vpack.c.b16 %v4591, %v4583
        %v5112 = vpack.c.b16 %v4592, %v4584
        %v5113 = vpack.c.b16 %v4593, %v4585
        %v5114 = vpack.c.b16 %v4594, %v4586
        %v5115 = vpack.c.b16 %v4595, %v4587
        %v5116 = vpack.c.b16 %v4596, %v4588
        %v5117 = vpack.c.b16 %v4597, %v4589
        %v5118 = vpack.c.b16 %v4606, %v4598
        %v5119 = vpack.c.b16 %v4607, %v4599
        %v5120 = vpack.c.b16 %v4608, %v4600
        %v5121 = vpack.c.b16 %v4609, %v4601
        %v5122 = vpack.c.b16 %v4610, %v4602
        %v5123 = vpack.c.b16 %v4611, %v4603
        %v5124 = vpack.c.b16 %v4612, %v4604
        %v5125 = vpack.c.b16 %v4613, %v4605
        %5638 = vmatprep.subr.bf16.mxu0 %v4615
        %5639 = vmatpush1.bf16.msra.mxu0 %v4614
        %5640 = vmatprep.subr.bf16.mxu0 %v4623
        %5641 = vmatpush1.bf16.msra.mxu0 %v4622
        %5642 = vmatprep.subr.bf16.mxu0 %v4631
        %5643 = vmatpush1.bf16.msra.mxu0 %v4630
        %5644 = vmatprep.subr.bf16.mxu0 %v4639
        %5645 = vmatpush1.bf16.msra.mxu0 %v4638
        %5646 = vmatprep.subr.bf16.mxu0 %v4647
        %5647 = vmatpush1.bf16.msra.mxu0 %v4646
        %5648 = vmatprep.subr.bf16.mxu0 %v4655
        %5649 = vmatpush1.bf16.msra.mxu0 %v4654
        %5650 = vmatprep.subr.bf16.mxu0 %v4663
        %5651 = vmatpush1.bf16.msra.mxu0 %v4662
        %5652 = vmatprep.subr.bf16.mxu0 %v4671
        %5653 = vmatpush1.bf16.msra.mxu0 %v4670
        %5654 = vmatprep.subr.bf16.mxu0 %v4679
        %5655 = vmatpush1.bf16.msra.mxu0 %v4678
        %5656 = vmatprep.subr.bf16.mxu0 %v4687
        %5657 = vmatpush1.bf16.msra.mxu0 %v4686
        %5658 = vmatprep.subr.bf16.mxu0 %v4695
        %5659 = vmatpush1.bf16.msra.mxu0 %v4694
        %5660 = vmatprep.subr.bf16.mxu0 %v4703
        %5661 = vmatpush1.bf16.msra.mxu0 %v4702
        %5662 = vmatprep.subr.bf16.mxu0 %v4711
        %5663 = vmatpush1.bf16.msra.mxu0 %v4710
        %5664 = vmatprep.subr.bf16.mxu0 %v4719
        %5665 = vmatpush1.bf16.msra.mxu0 %v4718
        %5666 = vmatprep.subr.bf16.mxu0 %v4727
        %5667 = vmatpush1.bf16.msra.mxu0 %v4726
        %5668 = vmatprep.subr.bf16.mxu0 %v4735
        %5669 = vmatpush1.bf16.msra.mxu0 %v4734
        %5670 = vmatprep.mubr.bf16.mxu0 %v2517
        %5671 = vmatmul.mubr.bf16.gmra.mrb[0].mxu0 %v2516
        %v5672 = vpop.f32.mrb[0].mxu0
        %v5673 = vadd.f32 %v3041, %v5672
        %v5674 = vpop.f32.mrb[0].mxu0
        %v5675 = vadd.f32 %v3045, %v5674
        %v5676 = vpop.f32.mrb[0].mxu0
        %v5677 = vpop.f32.mrb[0].mxu0
        %5678 = vdwg.mxu0
        %5679 = vmatprep.subr.bf16.mxu0 %v4743
        %5680 = vmatpush1.bf16.msra.mxu0 %v4742
        %5681 = vmatprep.subr.bf16.mxu0 %v4751
        %5682 = vmatpush1.bf16.msra.mxu0 %v4750
        %5683 = vmatprep.subr.bf16.mxu0 %v4759
        %5684 = vmatpush1.bf16.msra.mxu0 %v4758
        %5685 = vmatprep.subr.bf16.mxu0 %v4767
        %5686 = vmatpush1.bf16.msra.mxu0 %v4766
        %5687 = vmatprep.subr.bf16.mxu0 %v4775
        %5688 = vmatpush1.bf16.msra.mxu0 %v4774
        %5689 = vmatprep.subr.bf16.mxu0 %v4783
        %5690 = vmatpush1.bf16.msra.mxu0 %v4782
        %5691 = vmatprep.subr.bf16.mxu0 %v4791
        %5692 = vmatpush1.bf16.msra.mxu0 %v4790
        %5693 = vmatprep.subr.bf16.mxu0 %v4799
        %5694 = vmatpush1.bf16.msra.mxu0 %v4798
        %5695 = vmatprep.subr.bf16.mxu0 %v4807
        %5696 = vmatpush1.bf16.msra.mxu0 %v4806
        %5697 = vmatprep.subr.bf16.mxu0 %v4815
        %5698 = vmatpush1.bf16.msra.mxu0 %v4814
        %5699 = vmatprep.subr.bf16.mxu0 %v4823
        %5700 = vmatpush1.bf16.msra.mxu0 %v4822
        %5701 = vmatprep.subr.bf16.mxu0 %v4831
        %5702 = vmatpush1.bf16.msra.mxu0 %v4830
        %5703 = vmatprep.subr.bf16.mxu0 %v4839
        %5704 = vmatpush1.bf16.msra.mxu0 %v4838
        %5705 = vmatprep.subr.bf16.mxu0 %v4847
        %5706 = vmatpush1.bf16.msra.mxu0 %v4846
        %5707 = vmatprep.subr.bf16.mxu0 %v4855
        %5708 = vmatpush1.bf16.msra.mxu0 %v4854
        %5709 = vmatprep.subr.bf16.mxu0 %v4863
        %5710 = vmatpush1.bf16.msra.mxu0 %v4862
        %5711 = vmatprep.mubr.bf16.mxu0 %v2519
        %5712 = vmatmul.mubr.bf16.gmra.mrb[0].mxu0 %v2518
        %v5713 = vpop.f32.mrb[0].mxu0
        %v5714 = vadd.f32 %v5673, %v5713
        %v5715 = vpop.f32.mrb[0].mxu0
        %v5716 = vadd.f32 %v5675, %v5715
        %v5717 = vpop.f32.mrb[0].mxu0
        %v5718 = vpop.f32.mrb[0].mxu0
        %5719 = vdwg.mxu0
        %5720 = vmatprep.subr.bf16.mxu0 %v4871
        %5721 = vmatpush1.bf16.msra.mxu0 %v4870
        %5722 = vmatprep.subr.bf16.mxu0 %v4879
        %5723 = vmatpush1.bf16.msra.mxu0 %v4878
        %5724 = vmatprep.subr.bf16.mxu0 %v4887
        %5725 = vmatpush1.bf16.msra.mxu0 %v4886
        %5726 = vmatprep.subr.bf16.mxu0 %v4895
        %5727 = vmatpush1.bf16.msra.mxu0 %v4894
        %5728 = vmatprep.subr.bf16.mxu0 %v4903
        %5729 = vmatpush1.bf16.msra.mxu0 %v4902
        %5730 = vmatprep.subr.bf16.mxu0 %v4911
        %5731 = vmatpush1.bf16.msra.mxu0 %v4910
        %5732 = vmatprep.subr.bf16.mxu0 %v4919
        %5733 = vmatpush1.bf16.msra.mxu0 %v4918
        %5734 = vmatprep.subr.bf16.mxu0 %v4927
        %5735 = vmatpush1.bf16.msra.mxu0 %v4926
        %5736 = vmatprep.subr.bf16.mxu0 %v4935
        %5737 = vmatpush1.bf16.msra.mxu0 %v4934
        %5738 = vmatprep.subr.bf16.mxu0 %v4943
        %5739 = vmatpush1.bf16.msra.mxu0 %v4942
        %5740 = vmatprep.subr.bf16.mxu0 %v4951
        %5741 = vmatpush1.bf16.msra.mxu0 %v4950
        %5742 = vmatprep.subr.bf16.mxu0 %v4959
        %5743 = vmatpush1.bf16.msra.mxu0 %v4958
        %5744 = vmatprep.subr.bf16.mxu0 %v4967
        %5745 = vmatpush1.bf16.msra.mxu0 %v4966
        %5746 = vmatprep.subr.bf16.mxu0 %v4975
        %5747 = vmatpush1.bf16.msra.mxu0 %v4974
        %5748 = vmatprep.subr.bf16.mxu0 %v4983
        %5749 = vmatpush1.bf16.msra.mxu0 %v4982
        %5750 = vmatprep.subr.bf16.mxu0 %v4991
        %5751 = vmatpush1.bf16.msra.mxu0 %v4990
        %5752 = vmatprep.mubr.bf16.mxu0 %v2521
        %5753 = vmatmul.mubr.bf16.gmra.mrb[0].mxu0 %v2520
        %v5754 = vpop.f32.mrb[0].mxu0
        %v5755 = vadd.f32 %v5714, %v5754
        %v5756 = vpop.f32.mrb[0].mxu0
        %v5757 = vadd.f32 %v5716, %v5756
        %v5758 = vpop.f32.mrb[0].mxu0
        %v5759 = vpop.f32.mrb[0].mxu0
        %5760 = vdwg.mxu0
        %5761 = vmatprep.subr.bf16.mxu0 %v4999
        %5762 = vmatpush1.bf16.msra.mxu0 %v4998
        %5763 = vmatprep.subr.bf16.mxu0 %v5007
        %5764 = vmatpush1.bf16.msra.mxu0 %v5006
        %5765 = vmatprep.subr.bf16.mxu0 %v5015
        %5766 = vmatpush1.bf16.msra.mxu0 %v5014
        %5767 = vmatprep.subr.bf16.mxu0 %v5023
        %5768 = vmatpush1.bf16.msra.mxu0 %v5022
        %5769 = vmatprep.subr.bf16.mxu0 %v5031
        %5770 = vmatpush1.bf16.msra.mxu0 %v5030
        %5771 = vmatprep.subr.bf16.mxu0 %v5039
        %5772 = vmatpush1.bf16.msra.mxu0 %v5038
        %5773 = vmatprep.subr.bf16.mxu0 %v5047
        %5774 = vmatpush1.bf16.msra.mxu0 %v5046
        %5775 = vmatprep.subr.bf16.mxu0 %v5055
        %5776 = vmatpush1.bf16.msra.mxu0 %v5054
        %5777 = vmatprep.subr.bf16.mxu0 %v5063
        %5778 = vmatpush1.bf16.msra.mxu0 %v5062
        %5779 = vmatprep.subr.bf16.mxu0 %v5071
        %5780 = vmatpush1.bf16.msra.mxu0 %v5070
        %5781 = vmatprep.subr.bf16.mxu0 %v5079
        %5782 = vmatpush1.bf16.msra.mxu0 %v5078
        %5783 = vmatprep.subr.bf16.mxu0 %v5087
        %5784 = vmatpush1.bf16.msra.mxu0 %v5086
        %5785 = vmatprep.subr.bf16.mxu0 %v5095
        %5786 = vmatpush1.bf16.msra.mxu0 %v5094
        %5787 = vmatprep.subr.bf16.mxu0 %v5103
        %5788 = vmatpush1.bf16.msra.mxu0 %v5102
        %5789 = vmatprep.subr.bf16.mxu0 %v5111
        %5790 = vmatpush1.bf16.msra.mxu0 %v5110
        %5791 = vmatprep.subr.bf16.mxu0 %v5119
        %5792 = vmatpush1.bf16.msra.mxu0 %v5118
        %5793 = vmatprep.mubr.bf16.mxu0 %v2523
        %5794 = vmatmul.mubr.bf16.gmra.mrb[0].mxu0 %v2522
        %v5795 = vpop.f32.mrb[0].mxu0
        %v5796 = vadd.f32 %v5755, %v5795
        %v5797 = vpop.f32.mrb[0].mxu0
        %v5798 = vadd.f32 %v5757, %v5797
        %v5799 = vpop.f32.mrb[0].mxu0
        %v5800 = vpop.f32.mrb[0].mxu0
        %5801 = vdwg.mxu0
        %5802 = vmatprep.subr.bf16.mxu0 %v4617
        %5803 = vmatpush1.bf16.msra.mxu0 %v4616
        %5804 = vmatprep.subr.bf16.mxu0 %v4625
        %5805 = vmatpush1.bf16.msra.mxu0 %v4624
        %5806 = vmatprep.subr.bf16.mxu0 %v4633
        %5807 = vmatpush1.bf16.msra.mxu0 %v4632
        %5808 = vmatprep.subr.bf16.mxu0 %v4641
        %5809 = vmatpush1.bf16.msra.mxu0 %v4640
        %5810 = vmatprep.subr.bf16.mxu0 %v4649
        %5811 = vmatpush1.bf16.msra.mxu0 %v4648
        %5812 = vmatprep.subr.bf16.mxu0 %v4657
        %5813 = vmatpush1.bf16.msra.mxu0 %v4656
        %5814 = vmatprep.subr.bf16.mxu0 %v4665
        %5815 = vmatpush1.bf16.msra.mxu0 %v4664
        %5816 = vmatprep.subr.bf16.mxu0 %v4673
        %5817 = vmatpush1.bf16.msra.mxu0 %v4672
        %5818 = vmatprep.subr.bf16.mxu0 %v4681
        %5819 = vmatpush1.bf16.msra.mxu0 %v4680
        %5820 = vmatprep.subr.bf16.mxu0 %v4689
        %5821 = vmatpush1.bf16.msra.mxu0 %v4688
        %5822 = vmatprep.subr.bf16.mxu0 %v4697
        %5823 = vmatpush1.bf16.msra.mxu0 %v4696
        %5824 = vmatprep.subr.bf16.mxu0 %v4705
        %5825 = vmatpush1.bf16.msra.mxu0 %v4704
        %5826 = vmatprep.subr.bf16.mxu0 %v4713
        %5827 = vmatpush1.bf16.msra.mxu0 %v4712
        %5828 = vmatprep.subr.bf16.mxu0 %v4721
        %5829 = vmatpush1.bf16.msra.mxu0 %v4720
        %5830 = vmatprep.subr.bf16.mxu0 %v4729
        %5831 = vmatpush1.bf16.msra.mxu0 %v4728
        %5832 = vmatprep.subr.bf16.mxu0 %v4737
        %5833 = vmatpush1.bf16.msra.mxu0 %v4736
        %5834 = vmatprep.mubr.bf16.mxu0 %v2517
        %5835 = vmatmul.mubr.bf16.gmra.mrb[0].mxu0 %v2516
        %v5836 = vpop.f32.mrb[0].mxu0
        %v5837 = vadd.f32 %v3049, %v5836
        %v5838 = vpop.f32.mrb[0].mxu0
        %v5839 = vadd.f32 %v3053, %v5838
        %v5840 = vpop.f32.mrb[0].mxu0
        %v5841 = vpop.f32.mrb[0].mxu0
        %5842 = vdwg.mxu0
        %5843 = vmatprep.subr.bf16.mxu0 %v4745
        %5844 = vmatpush1.bf16.msra.mxu0 %v4744
        %5845 = vmatprep.subr.bf16.mxu0 %v4753
        %5846 = vmatpush1.bf16.msra.mxu0 %v4752
        %5847 = vmatprep.subr.bf16.mxu0 %v4761
        %5848 = vmatpush1.bf16.msra.mxu0 %v4760
        %5849 = vmatprep.subr.bf16.mxu0 %v4769
        %5850 = vmatpush1.bf16.msra.mxu0 %v4768
        %5851 = vmatprep.subr.bf16.mxu0 %v4777
        %5852 = vmatpush1.bf16.msra.mxu0 %v4776
        %5853 = vmatprep.subr.bf16.mxu0 %v4785
        %5854 = vmatpush1.bf16.msra.mxu0 %v4784
        %5855 = vmatprep.subr.bf16.mxu0 %v4793
        %5856 = vmatpush1.bf16.msra.mxu0 %v4792
        %5857 = vmatprep.subr.bf16.mxu0 %v4801
        %5858 = vmatpush1.bf16.msra.mxu0 %v4800
        %5859 = vmatprep.subr.bf16.mxu0 %v4809
        %5860 = vmatpush1.bf16.msra.mxu0 %v4808
        %5861 = vmatprep.subr.bf16.mxu0 %v4817
        %5862 = vmatpush1.bf16.msra.mxu0 %v4816
        %5863 = vmatprep.subr.bf16.mxu0 %v4825
        %5864 = vmatpush1.bf16.msra.mxu0 %v4824
        %5865 = vmatprep.subr.bf16.mxu0 %v4833
        %5866 = vmatpush1.bf16.msra.mxu0 %v4832
        %5867 = vmatprep.subr.bf16.mxu0 %v4841
        %5868 = vmatpush1.bf16.msra.mxu0 %v4840
        %5869 = vmatprep.subr.bf16.mxu0 %v4849
        %5870 = vmatpush1.bf16.msra.mxu0 %v4848
        %5871 = vmatprep.subr.bf16.mxu0 %v4857
        %5872 = vmatpush1.bf16.msra.mxu0 %v4856
        %5873 = vmatprep.subr.bf16.mxu0 %v4865
        %5874 = vmatpush1.bf16.msra.mxu0 %v4864
        %5875 = vmatprep.mubr.bf16.mxu0 %v2519
        %5876 = vmatmul.mubr.bf16.gmra.mrb[0].mxu0 %v2518
        %v5877 = vpop.f32.mrb[0].mxu0
        %v5878 = vadd.f32 %v5837, %v5877
        %v5879 = vpop.f32.mrb[0].mxu0
        %v5880 = vadd.f32 %v5839, %v5879
        %v5881 = vpop.f32.mrb[0].mxu0
        %v5882 = vpop.f32.mrb[0].mxu0
        %5883 = vdwg.mxu0
        %5884 = vmatprep.subr.bf16.mxu0 %v4873
        %5885 = vmatpush1.bf16.msra.mxu0 %v4872
        %5886 = vmatprep.subr.bf16.mxu0 %v4881
        %5887 = vmatpush1.bf16.msra.mxu0 %v4880
        %5888 = vmatprep.subr.bf16.mxu0 %v4889
        %5889 = vmatpush1.bf16.msra.mxu0 %v4888
        %5890 = vmatprep.subr.bf16.mxu0 %v4897
        %5891 = vmatpush1.bf16.msra.mxu0 %v4896
        %5892 = vmatprep.subr.bf16.mxu0 %v4905
        %5893 = vmatpush1.bf16.msra.mxu0 %v4904
        %5894 = vmatprep.subr.bf16.mxu0 %v4913
        %5895 = vmatpush1.bf16.msra.mxu0 %v4912
        %5896 = vmatprep.subr.bf16.mxu0 %v4921
        %5897 = vmatpush1.bf16.msra.mxu0 %v4920
        %5898 = vmatprep.subr.bf16.mxu0 %v4929
        %5899 = vmatpush1.bf16.msra.mxu0 %v4928
        %5900 = vmatprep.subr.bf16.mxu0 %v4937
        %5901 = vmatpush1.bf16.msra.mxu0 %v4936
        %5902 = vmatprep.subr.bf16.mxu0 %v4945
        %5903 = vmatpush1.bf16.msra.mxu0 %v4944
        %5904 = vmatprep.subr.bf16.mxu0 %v4953
        %5905 = vmatpush1.bf16.msra.mxu0 %v4952
        %5906 = vmatprep.subr.bf16.mxu0 %v4961
        %5907 = vmatpush1.bf16.msra.mxu0 %v4960
        %5908 = vmatprep.subr.bf16.mxu0 %v4969
        %5909 = vmatpush1.bf16.msra.mxu0 %v4968
        %5910 = vmatprep.subr.bf16.mxu0 %v4977
        %5911 = vmatpush1.bf16.msra.mxu0 %v4976
        %5912 = vmatprep.subr.bf16.mxu0 %v4985
        %5913 = vmatpush1.bf16.msra.mxu0 %v4984
        %5914 = vmatprep.subr.bf16.mxu0 %v4993
        %5915 = vmatpush1.bf16.msra.mxu0 %v4992
        %5916 = vmatprep.mubr.bf16.mxu0 %v2521
        %5917 = vmatmul.mubr.bf16.gmra.mrb[0].mxu0 %v2520
        %v5918 = vpop.f32.mrb[0].mxu0
        %v5919 = vadd.f32 %v5878, %v5918
        %v5920 = vpop.f32.mrb[0].mxu0
        %v5921 = vadd.f32 %v5880, %v5920
        %v5922 = vpop.f32.mrb[0].mxu0
        %v5923 = vpop.f32.mrb[0].mxu0
        %5924 = vdwg.mxu0
        %5925 = vmatprep.subr.bf16.mxu0 %v5001
        %5926 = vmatpush1.bf16.msra.mxu0 %v5000
        %5927 = vmatprep.subr.bf16.mxu0 %v5009
        %5928 = vmatpush1.bf16.msra.mxu0 %v5008
        %5929 = vmatprep.subr.bf16.mxu0 %v5017
        %5930 = vmatpush1.bf16.msra.mxu0 %v5016
        %5931 = vmatprep.subr.bf16.mxu0 %v5025
        %5932 = vmatpush1.bf16.msra.mxu0 %v5024
        %5933 = vmatprep.subr.bf16.mxu0 %v5033
        %5934 = vmatpush1.bf16.msra.mxu0 %v5032
        %5935 = vmatprep.subr.bf16.mxu0 %v5041
        %5936 = vmatpush1.bf16.msra.mxu0 %v5040
        %5937 = vmatprep.subr.bf16.mxu0 %v5049
        %5938 = vmatpush1.bf16.msra.mxu0 %v5048
        %5939 = vmatprep.subr.bf16.mxu0 %v5057
        %5940 = vmatpush1.bf16.msra.mxu0 %v5056
        %5941 = vmatprep.subr.bf16.mxu0 %v5065
        %5942 = vmatpush1.bf16.msra.mxu0 %v5064
        %5943 = vmatprep.subr.bf16.mxu0 %v5073
        %5944 = vmatpush1.bf16.msra.mxu0 %v5072
        %5945 = vmatprep.subr.bf16.mxu0 %v5081
        %5946 = vmatpush1.bf16.msra.mxu0 %v5080
        %5947 = vmatprep.subr.bf16.mxu0 %v5089
        %5948 = vmatpush1.bf16.msra.mxu0 %v5088
        %5949 = vmatprep.subr.bf16.mxu0 %v5097
        %5950 = vmatpush1.bf16.msra.mxu0 %v5096
        %5951 = vmatprep.subr.bf16.mxu0 %v5105
        %5952 = vmatpush1.bf16.msra.mxu0 %v5104
        %5953 = vmatprep.subr.bf16.mxu0 %v5113
        %5954 = vmatpush1.bf16.msra.mxu0 %v5112
        %5955 = vmatprep.subr.bf16.mxu0 %v5121
        %5956 = vmatpush1.bf16.msra.mxu0 %v5120
        %5957 = vmatprep.mubr.bf16.mxu0 %v2523
        %5958 = vmatmul.mubr.bf16.gmra.mrb[0].mxu0 %v2522
        %v5959 = vpop.f32.mrb[0].mxu0
        %v5960 = vadd.f32 %v5919, %v5959
        %v5961 = vpop.f32.mrb[0].mxu0
        %v5962 = vadd.f32 %v5921, %v5961
        %v5963 = vpop.f32.mrb[0].mxu0
        %v5964 = vpop.f32.mrb[0].mxu0
        %5965 = vdwg.mxu0
        %5966 = vmatprep.subr.bf16.mxu0 %v4619
        %5967 = vmatpush1.bf16.msra.mxu0 %v4618
        %5968 = vmatprep.subr.bf16.mxu0 %v4627
        %5969 = vmatpush1.bf16.msra.mxu0 %v4626
        %5970 = vmatprep.subr.bf16.mxu0 %v4635
        %5971 = vmatpush1.bf16.msra.mxu0 %v4634
        %5972 = vmatprep.subr.bf16.mxu0 %v4643
        %5973 = vmatpush1.bf16.msra.mxu0 %v4642
        %5974 = vmatprep.subr.bf16.mxu0 %v4651
        %5975 = vmatpush1.bf16.msra.mxu0 %v4650
        %5976 = vmatprep.subr.bf16.mxu0 %v4659
        %5977 = vmatpush1.bf16.msra.mxu0 %v4658
        %5978 = vmatprep.subr.bf16.mxu0 %v4667
        %5979 = vmatpush1.bf16.msra.mxu0 %v4666
        %5980 = vmatprep.subr.bf16.mxu0 %v4675
        %5981 = vmatpush1.bf16.msra.mxu0 %v4674
        %5982 = vmatprep.subr.bf16.mxu0 %v4683
        %5983 = vmatpush1.bf16.msra.mxu0 %v4682
        %5984 = vmatprep.subr.bf16.mxu0 %v4691
        %5985 = vmatpush1.bf16.msra.mxu0 %v4690
        %5986 = vmatprep.subr.bf16.mxu0 %v4699
        %5987 = vmatpush1.bf16.msra.mxu0 %v4698
        %5988 = vmatprep.subr.bf16.mxu0 %v4707
        %5989 = vmatpush1.bf16.msra.mxu0 %v4706
        %5990 = vmatprep.subr.bf16.mxu0 %v4715
        %5991 = vmatpush1.bf16.msra.mxu0 %v4714
        %5992 = vmatprep.subr.bf16.mxu0 %v4723
        %5993 = vmatpush1.bf16.msra.mxu0 %v4722
        %5994 = vmatprep.subr.bf16.mxu0 %v4731
        %5995 = vmatpush1.bf16.msra.mxu0 %v4730
        %5996 = vmatprep.subr.bf16.mxu0 %v4739
        %5997 = vmatpush1.bf16.msra.mxu0 %v4738
        %5998 = vmatprep.mubr.bf16.mxu0 %v2517
        %5999 = vmatmul.mubr.bf16.gmra.mrb[0].mxu0 %v2516
        %v6000 = vpop.f32.mrb[0].mxu0
        %v6001 = vadd.f32 %v3057, %v6000
        %v6002 = vpop.f32.mrb[0].mxu0
        %v6003 = vadd.f32 %v3061, %v6002
        %v6004 = vpop.f32.mrb[0].mxu0
        %v6005 = vpop.f32.mrb[0].mxu0
        %6006 = vdwg.mxu0
        %6007 = vmatprep.subr.bf16.mxu0 %v4747
        %6008 = vmatpush1.bf16.msra.mxu0 %v4746
        %6009 = vmatprep.subr.bf16.mxu0 %v4755
        %6010 = vmatpush1.bf16.msra.mxu0 %v4754
        %6011 = vmatprep.subr.bf16.mxu0 %v4763
        %6012 = vmatpush1.bf16.msra.mxu0 %v4762
        %6013 = vmatprep.subr.bf16.mxu0 %v4771
        %6014 = vmatpush1.bf16.msra.mxu0 %v4770
        %6015 = vmatprep.subr.bf16.mxu0 %v4779
        %6016 = vmatpush1.bf16.msra.mxu0 %v4778
        %6017 = vmatprep.subr.bf16.mxu0 %v4787
        %6018 = vmatpush1.bf16.msra.mxu0 %v4786
        %6019 = vmatprep.subr.bf16.mxu0 %v4795
        %6020 = vmatpush1.bf16.msra.mxu0 %v4794
        %6021 = vmatprep.subr.bf16.mxu0 %v4803
        %6022 = vmatpush1.bf16.msra.mxu0 %v4802
        %6023 = vmatprep.subr.bf16.mxu0 %v4811
        %6024 = vmatpush1.bf16.msra.mxu0 %v4810
        %6025 = vmatprep.subr.bf16.mxu0 %v4819
        %6026 = vmatpush1.bf16.msra.mxu0 %v4818
        %6027 = vmatprep.subr.bf16.mxu0 %v4827
        %6028 = vmatpush1.bf16.msra.mxu0 %v4826
        %6029 = vmatprep.subr.bf16.mxu0 %v4835
        %6030 = vmatpush1.bf16.msra.mxu0 %v4834
        %6031 = vmatprep.subr.bf16.mxu0 %v4843
        %6032 = vmatpush1.bf16.msra.mxu0 %v4842
        %6033 = vmatprep.subr.bf16.mxu0 %v4851
        %6034 = vmatpush1.bf16.msra.mxu0 %v4850
        %6035 = vmatprep.subr.bf16.mxu0 %v4859
        %6036 = vmatpush1.bf16.msra.mxu0 %v4858
        %6037 = vmatprep.subr.bf16.mxu0 %v4867
        %6038 = vmatpush1.bf16.msra.mxu0 %v4866
        %6039 = vmatprep.mubr.bf16.mxu0 %v2519
        %6040 = vmatmul.mubr.bf16.gmra.mrb[0].mxu0 %v2518
        %v6041 = vpop.f32.mrb[0].mxu0
        %v6042 = vadd.f32 %v6001, %v6041
        %v6043 = vpop.f32.mrb[0].mxu0
        %v6044 = vadd.f32 %v6003, %v6043
        %v6045 = vpop.f32.mrb[0].mxu0
        %v6046 = vpop.f32.mrb[0].mxu0
        %6047 = vdwg.mxu0
        %6048 = vmatprep.subr.bf16.mxu0 %v4875
        %6049 = vmatpush1.bf16.msra.mxu0 %v4874
        %6050 = vmatprep.subr.bf16.mxu0 %v4883
        %6051 = vmatpush1.bf16.msra.mxu0 %v4882
        %6052 = vmatprep.subr.bf16.mxu0 %v4891
        %6053 = vmatpush1.bf16.msra.mxu0 %v4890
        %6054 = vmatprep.subr.bf16.mxu0 %v4899
        %6055 = vmatpush1.bf16.msra.mxu0 %v4898
        %6056 = vmatprep.subr.bf16.mxu0 %v4907
        %6057 = vmatpush1.bf16.msra.mxu0 %v4906
        %6058 = vmatprep.subr.bf16.mxu0 %v4915
        %6059 = vmatpush1.bf16.msra.mxu0 %v4914
        %6060 = vmatprep.subr.bf16.mxu0 %v4923
        %6061 = vmatpush1.bf16.msra.mxu0 %v4922
        %6062 = vmatprep.subr.bf16.mxu0 %v4931
        %6063 = vmatpush1.bf16.msra.mxu0 %v4930
        %6064 = vmatprep.subr.bf16.mxu0 %v4939
        %6065 = vmatpush1.bf16.msra.mxu0 %v4938
        %6066 = vmatprep.subr.bf16.mxu0 %v4947
        %6067 = vmatpush1.bf16.msra.mxu0 %v4946
        %6068 = vmatprep.subr.bf16.mxu0 %v4955
        %6069 = vmatpush1.bf16.msra.mxu0 %v4954
        %6070 = vmatprep.subr.bf16.mxu0 %v4963
        %6071 = vmatpush1.bf16.msra.mxu0 %v4962
        %6072 = vmatprep.subr.bf16.mxu0 %v4971
        %6073 = vmatpush1.bf16.msra.mxu0 %v4970
        %6074 = vmatprep.subr.bf16.mxu0 %v4979
        %6075 = vmatpush1.bf16.msra.mxu0 %v4978
        %6076 = vmatprep.subr.bf16.mxu0 %v4987
        %6077 = vmatpush1.bf16.msra.mxu0 %v4986
        %6078 = vmatprep.subr.bf16.mxu0 %v4995
        %6079 = vmatpush1.bf16.msra.mxu0 %v4994
        %6080 = vmatprep.mubr.bf16.mxu0 %v2521
        %6081 = vmatmul.mubr.bf16.gmra.mrb[0].mxu0 %v2520
        %v6082 = vpop.f32.mrb[0].mxu0
        %v6083 = vadd.f32 %v6042, %v6082
        %v6084 = vpop.f32.mrb[0].mxu0
        %v6085 = vadd.f32 %v6044, %v6084
        %v6086 = vpop.f32.mrb[0].mxu0
        %v6087 = vpop.f32.mrb[0].mxu0
        %6088 = vdwg.mxu0
        %6089 = vmatprep.subr.bf16.mxu0 %v5003
        %6090 = vmatpush1.bf16.msra.mxu0 %v5002
        %6091 = vmatprep.subr.bf16.mxu0 %v5011
        %6092 = vmatpush1.bf16.msra.mxu0 %v5010
        %6093 = vmatprep.subr.bf16.mxu0 %v5019
        %6094 = vmatpush1.bf16.msra.mxu0 %v5018
        %6095 = vmatprep.subr.bf16.mxu0 %v5027
        %6096 = vmatpush1.bf16.msra.mxu0 %v5026
        %6097 = vmatprep.subr.bf16.mxu0 %v5035
        %6098 = vmatpush1.bf16.msra.mxu0 %v5034
        %6099 = vmatprep.subr.bf16.mxu0 %v5043
        %6100 = vmatpush1.bf16.msra.mxu0 %v5042
        %6101 = vmatprep.subr.bf16.mxu0 %v5051
        %6102 = vmatpush1.bf16.msra.mxu0 %v5050
        %6103 = vmatprep.subr.bf16.mxu0 %v5059
        %6104 = vmatpush1.bf16.msra.mxu0 %v5058
        %6105 = vmatprep.subr.bf16.mxu0 %v5067
        %6106 = vmatpush1.bf16.msra.mxu0 %v5066
        %6107 = vmatprep.subr.bf16.mxu0 %v5075
        %6108 = vmatpush1.bf16.msra.mxu0 %v5074
        %6109 = vmatprep.subr.bf16.mxu0 %v5083
        %6110 = vmatpush1.bf16.msra.mxu0 %v5082
        %6111 = vmatprep.subr.bf16.mxu0 %v5091
        %6112 = vmatpush1.bf16.msra.mxu0 %v5090
        %6113 = vmatprep.subr.bf16.mxu0 %v5099
        %6114 = vmatpush1.bf16.msra.mxu0 %v5098
        %6115 = vmatprep.subr.bf16.mxu0 %v5107
        %6116 = vmatpush1.bf16.msra.mxu0 %v5106
        %6117 = vmatprep.subr.bf16.mxu0 %v5115
        %6118 = vmatpush1.bf16.msra.mxu0 %v5114
        %6119 = vmatprep.subr.bf16.mxu0 %v5123
        %6120 = vmatpush1.bf16.msra.mxu0 %v5122
        %6121 = vmatprep.mubr.bf16.mxu0 %v2523
        %6122 = vmatmul.mubr.bf16.gmra.mrb[0].mxu0 %v2522
        %v6123 = vpop.f32.mrb[0].mxu0
        %v6124 = vadd.f32 %v6083, %v6123
        %v6125 = vpop.f32.mrb[0].mxu0
        %v6126 = vadd.f32 %v6085, %v6125
        %v6127 = vpop.f32.mrb[0].mxu0
        %v6128 = vpop.f32.mrb[0].mxu0
        %6129 = vdwg.mxu0
        %6130 = vmatprep.subr.bf16.mxu0 %v4621
        %6131 = vmatpush1.bf16.msra.mxu0 %v4620
        %6132 = vmatprep.subr.bf16.mxu0 %v4629
        %6133 = vmatpush1.bf16.msra.mxu0 %v4628
        %6134 = vmatprep.subr.bf16.mxu0 %v4637
        %6135 = vmatpush1.bf16.msra.mxu0 %v4636
        %6136 = vmatprep.subr.bf16.mxu0 %v4645
        %6137 = vmatpush1.bf16.msra.mxu0 %v4644
        %6138 = vmatprep.subr.bf16.mxu0 %v4653
        %6139 = vmatpush1.bf16.msra.mxu0 %v4652
        %6140 = vmatprep.subr.bf16.mxu0 %v4661
        %6141 = vmatpush1.bf16.msra.mxu0 %v4660
        %6142 = vmatprep.subr.bf16.mxu0 %v4669
        %6143 = vmatpush1.bf16.msra.mxu0 %v4668
        %6144 = vmatprep.subr.bf16.mxu0 %v4677
        %6145 = vmatpush1.bf16.msra.mxu0 %v4676
        %6146 = vmatprep.subr.bf16.mxu0 %v4685
        %6147 = vmatpush1.bf16.msra.mxu0 %v4684
        %6148 = vmatprep.subr.bf16.mxu0 %v4693
        %6149 = vmatpush1.bf16.msra.mxu0 %v4692
        %6150 = vmatprep.subr.bf16.mxu0 %v4701
        %6151 = vmatpush1.bf16.msra.mxu0 %v4700
        %6152 = vmatprep.subr.bf16.mxu0 %v4709
        %6153 = vmatpush1.bf16.msra.mxu0 %v4708
        %6154 = vmatprep.subr.bf16.mxu0 %v4717
        %6155 = vmatpush1.bf16.msra.mxu0 %v4716
        %6156 = vmatprep.subr.bf16.mxu0 %v4725
        %6157 = vmatpush1.bf16.msra.mxu0 %v4724
        %6158 = vmatprep.subr.bf16.mxu0 %v4733
        %6159 = vmatpush1.bf16.msra.mxu0 %v4732
        %6160 = vmatprep.subr.bf16.mxu0 %v4741
        %6161 = vmatpush1.bf16.msra.mxu0 %v4740
        %6162 = vmatprep.mubr.bf16.mxu0 %v2517
        %6163 = vmatmul.mubr.bf16.gmra.mrb[0].mxu0 %v2516
        %v6164 = vpop.f32.mrb[0].mxu0
        %v6165 = vadd.f32 %v3065, %v6164
        %v6166 = vpop.f32.mrb[0].mxu0
        %v6167 = vadd.f32 %v3069, %v6166
        %v6168 = vpop.f32.mrb[0].mxu0
        %v6169 = vpop.f32.mrb[0].mxu0
        %6170 = vdwg.mxu0
        %6171 = vmatprep.subr.bf16.mxu0 %v4749
        %6172 = vmatpush1.bf16.msra.mxu0 %v4748
        %6173 = vmatprep.subr.bf16.mxu0 %v4757
        %6174 = vmatpush1.bf16.msra.mxu0 %v4756
        %6175 = vmatprep.subr.bf16.mxu0 %v4765
        %6176 = vmatpush1.bf16.msra.mxu0 %v4764
        %6177 = vmatprep.subr.bf16.mxu0 %v4773
        %6178 = vmatpush1.bf16.msra.mxu0 %v4772
        %6179 = vmatprep.subr.bf16.mxu0 %v4781
        %6180 = vmatpush1.bf16.msra.mxu0 %v4780
        %6181 = vmatprep.subr.bf16.mxu0 %v4789
        %6182 = vmatpush1.bf16.msra.mxu0 %v4788
        %6183 = vmatprep.subr.bf16.mxu0 %v4797
        %6184 = vmatpush1.bf16.msra.mxu0 %v4796
        %6185 = vmatprep.subr.bf16.mxu0 %v4805
        %6186 = vmatpush1.bf16.msra.mxu0 %v4804
        %6187 = vmatprep.subr.bf16.mxu0 %v4813
        %6188 = vmatpush1.bf16.msra.mxu0 %v4812
        %6189 = vmatprep.subr.bf16.mxu0 %v4821
        %6190 = vmatpush1.bf16.msra.mxu0 %v4820
        %6191 = vmatprep.subr.bf16.mxu0 %v4829
        %6192 = vmatpush1.bf16.msra.mxu0 %v4828
        %6193 = vmatprep.subr.bf16.mxu0 %v4837
        %6194 = vmatpush1.bf16.msra.mxu0 %v4836
        %6195 = vmatprep.subr.bf16.mxu0 %v4845
        %6196 = vmatpush1.bf16.msra.mxu0 %v4844
        %6197 = vmatprep.subr.bf16.mxu0 %v4853
        %6198 = vmatpush1.bf16.msra.mxu0 %v4852
        %6199 = vmatprep.subr.bf16.mxu0 %v4861
        %6200 = vmatpush1.bf16.msra.mxu0 %v4860
        %6201 = vmatprep.subr.bf16.mxu0 %v4869
        %6202 = vmatpush1.bf16.msra.mxu0 %v4868
        %6203 = vmatprep.mubr.bf16.mxu0 %v2519
        %6204 = vmatmul.mubr.bf16.gmra.mrb[0].mxu0 %v2518
        %v6205 = vpop.f32.mrb[0].mxu0
        %v6206 = vadd.f32 %v6165, %v6205
        %v6207 = vpop.f32.mrb[0].mxu0
        %v6208 = vadd.f32 %v6167, %v6207
        %v6209 = vpop.f32.mrb[0].mxu0
        %v6210 = vpop.f32.mrb[0].mxu0
        %6211 = vdwg.mxu0
        %6212 = vmatprep.subr.bf16.mxu0 %v4877
        %6213 = vmatpush1.bf16.msra.mxu0 %v4876
        %6214 = vmatprep.subr.bf16.mxu0 %v4885
        %6215 = vmatpush1.bf16.msra.mxu0 %v4884
        %6216 = vmatprep.subr.bf16.mxu0 %v4893
        %6217 = vmatpush1.bf16.msra.mxu0 %v4892
        %6218 = vmatprep.subr.bf16.mxu0 %v4901
        %6219 = vmatpush1.bf16.msra.mxu0 %v4900
        %6220 = vmatprep.subr.bf16.mxu0 %v4909
        %6221 = vmatpush1.bf16.msra.mxu0 %v4908
        %6222 = vmatprep.subr.bf16.mxu0 %v4917
        %6223 = vmatpush1.bf16.msra.mxu0 %v4916
        %6224 = vmatprep.subr.bf16.mxu0 %v4925
        %6225 = vmatpush1.bf16.msra.mxu0 %v4924
        %6226 = vmatprep.subr.bf16.mxu0 %v4933
        %6227 = vmatpush1.bf16.msra.mxu0 %v4932
        %6228 = vmatprep.subr.bf16.mxu0 %v4941
        %6229 = vmatpush1.bf16.msra.mxu0 %v4940
        %6230 = vmatprep.subr.bf16.mxu0 %v4949
        %6231 = vmatpush1.bf16.msra.mxu0 %v4948
        %6232 = vmatprep.subr.bf16.mxu0 %v4957
        %6233 = vmatpush1.bf16.msra.mxu0 %v4956
        %6234 = vmatprep.subr.bf16.mxu0 %v4965
        %6235 = vmatpush1.bf16.msra.mxu0 %v4964
        %6236 = vmatprep.subr.bf16.mxu0 %v4973
        %6237 = vmatpush1.bf16.msra.mxu0 %v4972
        %6238 = vmatprep.subr.bf16.mxu0 %v4981
        %6239 = vmatpush1.bf16.msra.mxu0 %v4980
        %6240 = vmatprep.subr.bf16.mxu0 %v4989
        %6241 = vmatpush1.bf16.msra.mxu0 %v4988
        %6242 = vmatprep.subr.bf16.mxu0 %v4997
        %6243 = vmatpush1.bf16.msra.mxu0 %v4996
        %6244 = vmatprep.mubr.bf16.mxu0 %v2521
        %6245 = vmatmul.mubr.bf16.gmra.mrb[0].mxu0 %v2520
        %v6246 = vpop.f32.mrb[0].mxu0
        %v6247 = vadd.f32 %v6206, %v6246
        %v6248 = vpop.f32.mrb[0].mxu0
        %v6249 = vadd.f32 %v6208, %v6248
        %v6250 = vpop.f32.mrb[0].mxu0
        %v6251 = vpop.f32.mrb[0].mxu0
        %6252 = vdwg.mxu0
        %6253 = vmatprep.subr.bf16.mxu0 %v5005
        %6254 = vmatpush1.bf16.msra.mxu0 %v5004
        %6255 = vmatprep.subr.bf16.mxu0 %v5013
        %6256 = vmatpush1.bf16.msra.mxu0 %v5012
        %6257 = vmatprep.subr.bf16.mxu0 %v5021
        %6258 = vmatpush1.bf16.msra.mxu0 %v5020
        %6259 = vmatprep.subr.bf16.mxu0 %v5029
        %6260 = vmatpush1.bf16.msra.mxu0 %v5028
        %6261 = vmatprep.subr.bf16.mxu0 %v5037
        %6262 = vmatpush1.bf16.msra.mxu0 %v5036
        %6263 = vmatprep.subr.bf16.mxu0 %v5045
        %6264 = vmatpush1.bf16.msra.mxu0 %v5044
        %6265 = vmatprep.subr.bf16.mxu0 %v5053
        %6266 = vmatpush1.bf16.msra.mxu0 %v5052
        %6267 = vmatprep.subr.bf16.mxu0 %v5061
        %6268 = vmatpush1.bf16.msra.mxu0 %v5060
        %6269 = vmatprep.subr.bf16.mxu0 %v5069
        %6270 = vmatpush1.bf16.msra.mxu0 %v5068
        %6271 = vmatprep.subr.bf16.mxu0 %v5077
        %6272 = vmatpush1.bf16.msra.mxu0 %v5076
        %6273 = vmatprep.subr.bf16.mxu0 %v5085
        %6274 = vmatpush1.bf16.msra.mxu0 %v5084
        %6275 = vmatprep.subr.bf16.mxu0 %v5093
        %6276 = vmatpush1.bf16.msra.mxu0 %v5092
        %6277 = vmatprep.subr.bf16.mxu0 %v5101
        %6278 = vmatpush1.bf16.msra.mxu0 %v5100
        %6279 = vmatprep.subr.bf16.mxu0 %v5109
        %6280 = vmatpush1.bf16.msra.mxu0 %v5108
        %6281 = vmatprep.subr.bf16.mxu0 %v5117
        %6282 = vmatpush1.bf16.msra.mxu0 %v5116
        %6283 = vmatprep.subr.bf16.mxu0 %v5125
        %6284 = vmatpush1.bf16.msra.mxu0 %v5124
        %6285 = vmatprep.mubr.bf16.mxu0 %v2523
        %6286 = vmatmul.mubr.bf16.gmra.mrb[0].mxu0 %v2522
        %v6287 = vpop.f32.mrb[0].mxu0
        %v6288 = vadd.f32 %v6247, %v6287
        %v6289 = vpop.f32.mrb[0].mxu0
        %v6290 = vadd.f32 %v6249, %v6289
        %v6291 = vpop.f32.mrb[0].mxu0
        %v6292 = vpop.f32.mrb[0].mxu0
        %6293 = vdwg.mxu0
        %v6294 = vmax.f32 %v5796, 0.0
        %v6295 = vmax.f32 %v5798, 0.0
        %v6296 = vmax.f32 %v5960, 0.0
        %v6297 = vmax.f32 %v5962, 0.0
        %v6298 = vmax.f32 %v6124, 0.0
        %v6299 = vmax.f32 %v6126, 0.0
        %v6300 = vmax.f32 %v6288, 0.0
        %v6301 = vmax.f32 %v6290, 0.0
        %v6302 = vpack.c.bf16 %v6294, %v6294
        %v6303 = vpack.c.bf16 %v6295, %v6295
        %v6304 = vpack.c.bf16 %v6296, %v6296
        %v6305 = vpack.c.bf16 %v6297, %v6297
        %v6306 = vpack.c.bf16 %v6298, %v6298
        %v6307 = vpack.c.bf16 %v6299, %v6299
        %v6308 = vpack.c.bf16 %v6300, %v6300
        %v6309 = vpack.c.bf16 %v6301, %v6301
        %v6310 = vld [vmem:[%s467] sm:$0xff]
        %v6311 = vld [vmem:[%s467 + $0x8] sm:$0xff]
        %v6312 = vld [vmem:[%s467 + $0x10] sm:$0xff]
        %v6313 = vld [vmem:[%s467 + $0x18] sm:$0xff]
        %v6314 = vld [vmem:[%s467 + $0x20] sm:$0xff]
        %v6315 = vld [vmem:[%s467 + $0x28] sm:$0xff]
        %v6316 = vld [vmem:[%s467 + $0x30] sm:$0xff]
        %v6317 = vld [vmem:[%s467 + $0x38] sm:$0xff]
        %v6318 = vld [vmem:[%s467 + $0x40] sm:$0xff]
        %v6319 = vld [vmem:[%s467 + $0x48] sm:$0xff]
        %v6320 = vld [vmem:[%s467 + $0x50] sm:$0xff]
        %v6321 = vld [vmem:[%s467 + $0x58] sm:$0xff]
        %v6322 = vld [vmem:[%s467 + $0x60] sm:$0xff]
        %v6323 = vld [vmem:[%s467 + $0x68] sm:$0xff]
        %v6324 = vld [vmem:[%s467 + $0x70] sm:$0xff]
        %v6325 = vld [vmem:[%s467 + $0x78] sm:$0xff]
        %v6326 = vld [vmem:[%s467 + $0x80] sm:$0xff]
        %v6327 = vld [vmem:[%s467 + $0x88] sm:$0xff]
        %v6328 = vld [vmem:[%s467 + $0x90] sm:$0xff]
        %v6329 = vld [vmem:[%s467 + $0x98] sm:$0xff]
        %v6330 = vld [vmem:[%s467 + $0xa0] sm:$0xff]
        %v6331 = vld [vmem:[%s467 + $0xa8] sm:$0xff]
        %v6332 = vld [vmem:[%s467 + $0xb0] sm:$0xff]
        %v6333 = vld [vmem:[%s467 + $0xb8] sm:$0xff]
        %v6334 = vld [vmem:[%s467 + $0xc0] sm:$0xff]
        %v6335 = vld [vmem:[%s467 + $0xc8] sm:$0xff]
        %v6336 = vld [vmem:[%s467 + $0xd0] sm:$0xff]
        %v6337 = vld [vmem:[%s467 + $0xd8] sm:$0xff]
        %v6338 = vld [vmem:[%s467 + $0xe0] sm:$0xff]
        %v6339 = vld [vmem:[%s467 + $0xe8] sm:$0xff]
        %v6340 = vld [vmem:[%s467 + $0xf0] sm:$0xff]
        %v6341 = vld [vmem:[%s467 + $0xf8] sm:$0xff]
        %v6342 = vld [vmem:[%s467 + $0x100] sm:$0xff]
        %v6343 = vld [vmem:[%s467 + $0x108] sm:$0xff]
        %v6344 = vld [vmem:[%s467 + $0x110] sm:$0xff]
        %v6345 = vld [vmem:[%s467 + $0x118] sm:$0xff]
        %v6346 = vld [vmem:[%s467 + $0x120] sm:$0xff]
        %v6347 = vld [vmem:[%s467 + $0x128] sm:$0xff]
        %v6348 = vld [vmem:[%s467 + $0x130] sm:$0xff]
        %v6349 = vld [vmem:[%s467 + $0x138] sm:$0xff]
        %v6350 = vld [vmem:[%s467 + $0x140] sm:$0xff]
        %v6351 = vld [vmem:[%s467 + $0x148] sm:$0xff]
        %v6352 = vld [vmem:[%s467 + $0x150] sm:$0xff]
        %v6353 = vld [vmem:[%s467 + $0x158] sm:$0xff]
        %v6354 = vld [vmem:[%s467 + $0x160] sm:$0xff]
        %v6355 = vld [vmem:[%s467 + $0x168] sm:$0xff]
        %v6356 = vld [vmem:[%s467 + $0x170] sm:$0xff]
        %v6357 = vld [vmem:[%s467 + $0x178] sm:$0xff]
        %v6358 = vld [vmem:[%s467 + $0x180] sm:$0xff]
        %v6359 = vld [vmem:[%s467 + $0x188] sm:$0xff]
        %v6360 = vld [vmem:[%s467 + $0x190] sm:$0xff]
        %v6361 = vld [vmem:[%s467 + $0x198] sm:$0xff]
        %v6362 = vld [vmem:[%s467 + $0x1a0] sm:$0xff]
        %v6363 = vld [vmem:[%s467 + $0x1a8] sm:$0xff]
        %v6364 = vld [vmem:[%s467 + $0x1b0] sm:$0xff]
        %v6365 = vld [vmem:[%s467 + $0x1b8] sm:$0xff]
        %v6366 = vld [vmem:[%s467 + $0x1c0] sm:$0xff]
        %v6367 = vld [vmem:[%s467 + $0x1c8] sm:$0xff]
        %v6368 = vld [vmem:[%s467 + $0x1d0] sm:$0xff]
        %v6369 = vld [vmem:[%s467 + $0x1d8] sm:$0xff]
        %v6370 = vld [vmem:[%s467 + $0x1e0] sm:$0xff]
        %v6371 = vld [vmem:[%s467 + $0x1e8] sm:$0xff]
        %v6372 = vld [vmem:[%s467 + $0x1f0] sm:$0xff]
        %v6373 = vld [vmem:[%s467 + $0x1f8] sm:$0xff]
        %v6374 = vld [vmem:[%s467 + $0x200] sm:$0xff]
        %v6375 = vld [vmem:[%s467 + $0x208] sm:$0xff]
        %v6376 = vld [vmem:[%s467 + $0x210] sm:$0xff]
        %v6377 = vld [vmem:[%s467 + $0x218] sm:$0xff]
        %v6378 = vld [vmem:[%s467 + $0x220] sm:$0xff]
        %v6379 = vld [vmem:[%s467 + $0x228] sm:$0xff]
        %v6380 = vld [vmem:[%s467 + $0x230] sm:$0xff]
        %v6381 = vld [vmem:[%s467 + $0x238] sm:$0xff]
        %v6382 = vld [vmem:[%s467 + $0x240] sm:$0xff]
        %v6383 = vld [vmem:[%s467 + $0x248] sm:$0xff]
        %v6384 = vld [vmem:[%s467 + $0x250] sm:$0xff]
        %v6385 = vld [vmem:[%s467 + $0x258] sm:$0xff]
        %v6386 = vld [vmem:[%s467 + $0x260] sm:$0xff]
        %v6387 = vld [vmem:[%s467 + $0x268] sm:$0xff]
        %v6388 = vld [vmem:[%s467 + $0x270] sm:$0xff]
        %v6389 = vld [vmem:[%s467 + $0x278] sm:$0xff]
        %v6390 = vld [vmem:[%s467 + $0x280] sm:$0xff]
        %v6391 = vld [vmem:[%s467 + $0x288] sm:$0xff]
        %v6392 = vld [vmem:[%s467 + $0x290] sm:$0xff]
        %v6393 = vld [vmem:[%s467 + $0x298] sm:$0xff]
        %v6394 = vld [vmem:[%s467 + $0x2a0] sm:$0xff]
        %v6395 = vld [vmem:[%s467 + $0x2a8] sm:$0xff]
        %v6396 = vld [vmem:[%s467 + $0x2b0] sm:$0xff]
        %v6397 = vld [vmem:[%s467 + $0x2b8] sm:$0xff]
        %v6398 = vld [vmem:[%s467 + $0x2c0] sm:$0xff]
        %v6399 = vld [vmem:[%s467 + $0x2c8] sm:$0xff]
        %v6400 = vld [vmem:[%s467 + $0x2d0] sm:$0xff]
        %v6401 = vld [vmem:[%s467 + $0x2d8] sm:$0xff]
        %v6402 = vld [vmem:[%s467 + $0x2e0] sm:$0xff]
        %v6403 = vld [vmem:[%s467 + $0x2e8] sm:$0xff]
        %v6404 = vld [vmem:[%s467 + $0x2f0] sm:$0xff]
        %v6405 = vld [vmem:[%s467 + $0x2f8] sm:$0xff]
        %v6406 = vld [vmem:[%s467 + $0x300] sm:$0xff]
        %v6407 = vld [vmem:[%s467 + $0x308] sm:$0xff]
        %v6408 = vld [vmem:[%s467 + $0x310] sm:$0xff]
        %v6409 = vld [vmem:[%s467 + $0x318] sm:$0xff]
        %v6410 = vld [vmem:[%s467 + $0x320] sm:$0xff]
        %v6411 = vld [vmem:[%s467 + $0x328] sm:$0xff]
        %v6412 = vld [vmem:[%s467 + $0x330] sm:$0xff]
        %v6413 = vld [vmem:[%s467 + $0x338] sm:$0xff]
        %v6414 = vld [vmem:[%s467 + $0x340] sm:$0xff]
        %v6415 = vld [vmem:[%s467 + $0x348] sm:$0xff]
        %v6416 = vld [vmem:[%s467 + $0x350] sm:$0xff]
        %v6417 = vld [vmem:[%s467 + $0x358] sm:$0xff]
        %v6418 = vld [vmem:[%s467 + $0x360] sm:$0xff]
        %v6419 = vld [vmem:[%s467 + $0x368] sm:$0xff]
        %v6420 = vld [vmem:[%s467 + $0x370] sm:$0xff]
        %v6421 = vld [vmem:[%s467 + $0x378] sm:$0xff]
        %v6422 = vld [vmem:[%s467 + $0x380] sm:$0xff]
        %v6423 = vld [vmem:[%s467 + $0x388] sm:$0xff]
        %v6424 = vld [vmem:[%s467 + $0x390] sm:$0xff]
        %v6425 = vld [vmem:[%s467 + $0x398] sm:$0xff]
        %v6426 = vld [vmem:[%s467 + $0x3a0] sm:$0xff]
        %v6427 = vld [vmem:[%s467 + $0x3a8] sm:$0xff]
        %v6428 = vld [vmem:[%s467 + $0x3b0] sm:$0xff]
        %v6429 = vld [vmem:[%s467 + $0x3b8] sm:$0xff]
        %v6430 = vld [vmem:[%s467 + $0x3c0] sm:$0xff]
        %v6431 = vld [vmem:[%s467 + $0x3c8] sm:$0xff]
        %v6432 = vld [vmem:[%s467 + $0x3d0] sm:$0xff]
        %v6433 = vld [vmem:[%s467 + $0x3d8] sm:$0xff]
        %v6434 = vld [vmem:[%s467 + $0x3e0] sm:$0xff]
        %v6435 = vld [vmem:[%s467 + $0x3e8] sm:$0xff]
        %v6436 = vld [vmem:[%s467 + $0x3f0] sm:$0xff]
        %v6437 = vld [vmem:[%s467 + $0x3f8] sm:$0xff]
        %v6438 = vld [vmem:[%s476] sm:$0x3]
        %v6440 = vlaneseq
        %v6441 = vshrl.u32 %v6440, 7
        %v6442 = vsub.s32 0, %v6441
        %v6443 = vrot.slane %v6438, %v6442
        %v6444 = vlaneseq
        %v6445 = vshrl.u32 %v6444, 7
        %v6446 = vsub.s32 1, %v6445
        %v6447 = vrot.slane %v6438, %v6446
        %v6578 = vunpack.c.l.b16 %v6310
        %v6579 = vunpack.c.h.b16 %v6310
        %v6580 = vunpack.c.l.b16 %v6311
        %v6581 = vunpack.c.h.b16 %v6311
        %v6582 = vunpack.c.l.b16 %v6312
        %v6583 = vunpack.c.h.b16 %v6312
        %v6584 = vunpack.c.l.b16 %v6313
        %v6585 = vunpack.c.h.b16 %v6313
        %v6586 = vunpack.c.l.b16 %v6314
        %v6587 = vunpack.c.h.b16 %v6314
        %v6588 = vunpack.c.l.b16 %v6315
        %v6589 = vunpack.c.h.b16 %v6315
        %v6590 = vunpack.c.l.b16 %v6316
        %v6591 = vunpack.c.h.b16 %v6316
        %v6592 = vunpack.c.l.b16 %v6317
        %v6593 = vunpack.c.h.b16 %v6317
        %v6594 = vunpack.c.l.b16 %v6318
        %v6595 = vunpack.c.h.b16 %v6318
        %v6596 = vunpack.c.l.b16 %v6319
        %v6597 = vunpack.c.h.b16 %v6319
        %v6598 = vunpack.c.l.b16 %v6320
        %v6599 = vunpack.c.h.b16 %v6320
        %v6600 = vunpack.c.l.b16 %v6321
        %v6601 = vunpack.c.h.b16 %v6321
        %v6602 = vunpack.c.l.b16 %v6322
        %v6603 = vunpack.c.h.b16 %v6322
        %v6604 = vunpack.c.l.b16 %v6323
        %v6605 = vunpack.c.h.b16 %v6323
        %v6606 = vunpack.c.l.b16 %v6324
        %v6607 = vunpack.c.h.b16 %v6324
        %v6608 = vunpack.c.l.b16 %v6325
        %v6609 = vunpack.c.h.b16 %v6325
        %v6610 = vunpack.c.l.b16 %v6326
        %v6611 = vunpack.c.h.b16 %v6326
        %v6612 = vunpack.c.l.b16 %v6327
        %v6613 = vunpack.c.h.b16 %v6327
        %v6614 = vunpack.c.l.b16 %v6328
        %v6615 = vunpack.c.h.b16 %v6328
        %v6616 = vunpack.c.l.b16 %v6329
        %v6617 = vunpack.c.h.b16 %v6329
        %v6618 = vunpack.c.l.b16 %v6330
        %v6619 = vunpack.c.h.b16 %v6330
        %v6620 = vunpack.c.l.b16 %v6331
        %v6621 = vunpack.c.h.b16 %v6331
        %v6622 = vunpack.c.l.b16 %v6332
        %v6623 = vunpack.c.h.b16 %v6332
        %v6624 = vunpack.c.l.b16 %v6333
        %v6625 = vunpack.c.h.b16 %v6333
        %v6626 = vunpack.c.l.b16 %v6334
        %v6627 = vunpack.c.h.b16 %v6334
        %v6628 = vunpack.c.l.b16 %v6335
        %v6629 = vunpack.c.h.b16 %v6335
        %v6630 = vunpack.c.l.b16 %v6336
        %v6631 = vunpack.c.h.b16 %v6336
        %v6632 = vunpack.c.l.b16 %v6337
        %v6633 = vunpack.c.h.b16 %v6337
        %v6634 = vunpack.c.l.b16 %v6338
        %v6635 = vunpack.c.h.b16 %v6338
        %v6636 = vunpack.c.l.b16 %v6339
        %v6637 = vunpack.c.h.b16 %v6339
        %v6638 = vunpack.c.l.b16 %v6340
        %v6639 = vunpack.c.h.b16 %v6340
        %v6640 = vunpack.c.l.b16 %v6341
        %v6641 = vunpack.c.h.b16 %v6341
        %v6642 = vunpack.c.l.b16 %v6342
        %v6643 = vunpack.c.h.b16 %v6342
        %v6644 = vunpack.c.l.b16 %v6343
        %v6645 = vunpack.c.h.b16 %v6343
        %v6646 = vunpack.c.l.b16 %v6344
        %v6647 = vunpack.c.h.b16 %v6344
        %v6648 = vunpack.c.l.b16 %v6345
        %v6649 = vunpack.c.h.b16 %v6345
        %v6650 = vunpack.c.l.b16 %v6346
        %v6651 = vunpack.c.h.b16 %v6346
        %v6652 = vunpack.c.l.b16 %v6347
        %v6653 = vunpack.c.h.b16 %v6347
        %v6654 = vunpack.c.l.b16 %v6348
        %v6655 = vunpack.c.h.b16 %v6348
        %v6656 = vunpack.c.l.b16 %v6349
        %v6657 = vunpack.c.h.b16 %v6349
        %v6658 = vunpack.c.l.b16 %v6350
        %v6659 = vunpack.c.h.b16 %v6350
        %v6660 = vunpack.c.l.b16 %v6351
        %v6661 = vunpack.c.h.b16 %v6351
        %v6662 = vunpack.c.l.b16 %v6352
        %v6663 = vunpack.c.h.b16 %v6352
        %v6664 = vunpack.c.l.b16 %v6353
        %v6665 = vunpack.c.h.b16 %v6353
        %v6666 = vunpack.c.l.b16 %v6354
        %v6667 = vunpack.c.h.b16 %v6354
        %v6668 = vunpack.c.l.b16 %v6355
        %v6669 = vunpack.c.h.b16 %v6355
        %v6670 = vunpack.c.l.b16 %v6356
        %v6671 = vunpack.c.h.b16 %v6356
        %v6672 = vunpack.c.l.b16 %v6357
        %v6673 = vunpack.c.h.b16 %v6357
        %v6674 = vunpack.c.l.b16 %v6358
        %v6675 = vunpack.c.h.b16 %v6358
        %v6676 = vunpack.c.l.b16 %v6359
        %v6677 = vunpack.c.h.b16 %v6359
        %v6678 = vunpack.c.l.b16 %v6360
        %v6679 = vunpack.c.h.b16 %v6360
        %v6680 = vunpack.c.l.b16 %v6361
        %v6681 = vunpack.c.h.b16 %v6361
        %v6682 = vunpack.c.l.b16 %v6362
        %v6683 = vunpack.c.h.b16 %v6362
        %v6684 = vunpack.c.l.b16 %v6363
        %v6685 = vunpack.c.h.b16 %v6363
        %v6686 = vunpack.c.l.b16 %v6364
        %v6687 = vunpack.c.h.b16 %v6364
        %v6688 = vunpack.c.l.b16 %v6365
        %v6689 = vunpack.c.h.b16 %v6365
        %v6690 = vunpack.c.l.b16 %v6366
        %v6691 = vunpack.c.h.b16 %v6366
        %v6692 = vunpack.c.l.b16 %v6367
        %v6693 = vunpack.c.h.b16 %v6367
        %v6694 = vunpack.c.l.b16 %v6368
        %v6695 = vunpack.c.h.b16 %v6368
        %v6696 = vunpack.c.l.b16 %v6369
        %v6697 = vunpack.c.h.b16 %v6369
        %v6698 = vunpack.c.l.b16 %v6370
        %v6699 = vunpack.c.h.b16 %v6370
        %v6700 = vunpack.c.l.b16 %v6371
        %v6701 = vunpack.c.h.b16 %v6371
        %v6702 = vunpack.c.l.b16 %v6372
        %v6703 = vunpack.c.h.b16 %v6372
        %v6704 = vunpack.c.l.b16 %v6373
        %v6705 = vunpack.c.h.b16 %v6373
        %v6706 = vunpack.c.l.b16 %v6374
        %v6707 = vunpack.c.h.b16 %v6374
        %v6708 = vunpack.c.l.b16 %v6375
        %v6709 = vunpack.c.h.b16 %v6375
        %v6710 = vunpack.c.l.b16 %v6376
        %v6711 = vunpack.c.h.b16 %v6376
        %v6712 = vunpack.c.l.b16 %v6377
        %v6713 = vunpack.c.h.b16 %v6377
        %v6714 = vunpack.c.l.b16 %v6378
        %v6715 = vunpack.c.h.b16 %v6378
        %v6716 = vunpack.c.l.b16 %v6379
        %v6717 = vunpack.c.h.b16 %v6379
        %v6718 = vunpack.c.l.b16 %v6380
        %v6719 = vunpack.c.h.b16 %v6380
        %v6720 = vunpack.c.l.b16 %v6381
        %v6721 = vunpack.c.h.b16 %v6381
        %v6722 = vunpack.c.l.b16 %v6382
        %v6723 = vunpack.c.h.b16 %v6382
        %v6724 = vunpack.c.l.b16 %v6383
        %v6725 = vunpack.c.h.b16 %v6383
        %v6726 = vunpack.c.l.b16 %v6384
        %v6727 = vunpack.c.h.b16 %v6384
        %v6728 = vunpack.c.l.b16 %v6385
        %v6729 = vunpack.c.h.b16 %v6385
        %v6730 = vunpack.c.l.b16 %v6386
        %v6731 = vunpack.c.h.b16 %v6386
        %v6732 = vunpack.c.l.b16 %v6387
        %v6733 = vunpack.c.h.b16 %v6387
        %v6734 = vunpack.c.l.b16 %v6388
        %v6735 = vunpack.c.h.b16 %v6388
        %v6736 = vunpack.c.l.b16 %v6389
        %v6737 = vunpack.c.h.b16 %v6389
        %v6738 = vunpack.c.l.b16 %v6390
        %v6739 = vunpack.c.h.b16 %v6390
        %v6740 = vunpack.c.l.b16 %v6391
        %v6741 = vunpack.c.h.b16 %v6391
        %v6742 = vunpack.c.l.b16 %v6392
        %v6743 = vunpack.c.h.b16 %v6392
        %v6744 = vunpack.c.l.b16 %v6393
        %v6745 = vunpack.c.h.b16 %v6393
        %v6746 = vunpack.c.l.b16 %v6394
        %v6747 = vunpack.c.h.b16 %v6394
        %v6748 = vunpack.c.l.b16 %v6395
        %v6749 = vunpack.c.h.b16 %v6395
        %v6750 = vunpack.c.l.b16 %v6396
        %v6751 = vunpack.c.h.b16 %v6396
        %v6752 = vunpack.c.l.b16 %v6397
        %v6753 = vunpack.c.h.b16 %v6397
        %v6754 = vunpack.c.l.b16 %v6398
        %v6755 = vunpack.c.h.b16 %v6398
        %v6756 = vunpack.c.l.b16 %v6399
        %v6757 = vunpack.c.h.b16 %v6399
        %v6758 = vunpack.c.l.b16 %v6400
        %v6759 = vunpack.c.h.b16 %v6400
        %v6760 = vunpack.c.l.b16 %v6401
        %v6761 = vunpack.c.h.b16 %v6401
        %v6762 = vunpack.c.l.b16 %v6402
        %v6763 = vunpack.c.h.b16 %v6402
        %v6764 = vunpack.c.l.b16 %v6403
        %v6765 = vunpack.c.h.b16 %v6403
        %v6766 = vunpack.c.l.b16 %v6404
        %v6767 = vunpack.c.h.b16 %v6404
        %v6768 = vunpack.c.l.b16 %v6405
        %v6769 = vunpack.c.h.b16 %v6405
        %v6770 = vunpack.c.l.b16 %v6406
        %v6771 = vunpack.c.h.b16 %v6406
        %v6772 = vunpack.c.l.b16 %v6407
        %v6773 = vunpack.c.h.b16 %v6407
        %v6774 = vunpack.c.l.b16 %v6408
        %v6775 = vunpack.c.h.b16 %v6408
        %v6776 = vunpack.c.l.b16 %v6409
        %v6777 = vunpack.c.h.b16 %v6409
        %v6778 = vunpack.c.l.b16 %v6410
        %v6779 = vunpack.c.h.b16 %v6410
        %v6780 = vunpack.c.l.b16 %v6411
        %v6781 = vunpack.c.h.b16 %v6411
        %v6782 = vunpack.c.l.b16 %v6412
        %v6783 = vunpack.c.h.b16 %v6412
        %v6784 = vunpack.c.l.b16 %v6413
        %v6785 = vunpack.c.h.b16 %v6413
        %v6786 = vunpack.c.l.b16 %v6414
        %v6787 = vunpack.c.h.b16 %v6414
        %v6788 = vunpack.c.l.b16 %v6415
        %v6789 = vunpack.c.h.b16 %v6415
        %v6790 = vunpack.c.l.b16 %v6416
        %v6791 = vunpack.c.h.b16 %v6416
        %v6792 = vunpack.c.l.b16 %v6417
        %v6793 = vunpack.c.h.b16 %v6417
        %v6794 = vunpack.c.l.b16 %v6418
        %v6795 = vunpack.c.h.b16 %v6418
        %v6796 = vunpack.c.l.b16 %v6419
        %v6797 = vunpack.c.h.b16 %v6419
        %v6798 = vunpack.c.l.b16 %v6420
        %v6799 = vunpack.c.h.b16 %v6420
        %v6800 = vunpack.c.l.b16 %v6421
        %v6801 = vunpack.c.h.b16 %v6421
        %v6802 = vunpack.c.l.b16 %v6422
        %v6803 = vunpack.c.h.b16 %v6422
        %v6804 = vunpack.c.l.b16 %v6423
        %v6805 = vunpack.c.h.b16 %v6423
        %v6806 = vunpack.c.l.b16 %v6424
        %v6807 = vunpack.c.h.b16 %v6424
        %v6808 = vunpack.c.l.b16 %v6425
        %v6809 = vunpack.c.h.b16 %v6425
        %v6810 = vunpack.c.l.b16 %v6426
        %v6811 = vunpack.c.h.b16 %v6426
        %v6812 = vunpack.c.l.b16 %v6427
        %v6813 = vunpack.c.h.b16 %v6427
        %v6814 = vunpack.c.l.b16 %v6428
        %v6815 = vunpack.c.h.b16 %v6428
        %v6816 = vunpack.c.l.b16 %v6429
        %v6817 = vunpack.c.h.b16 %v6429
        %v6818 = vunpack.c.l.b16 %v6430
        %v6819 = vunpack.c.h.b16 %v6430
        %v6820 = vunpack.c.l.b16 %v6431
        %v6821 = vunpack.c.h.b16 %v6431
        %v6822 = vunpack.c.l.b16 %v6432
        %v6823 = vunpack.c.h.b16 %v6432
        %v6824 = vunpack.c.l.b16 %v6433
        %v6825 = vunpack.c.h.b16 %v6433
        %v6826 = vunpack.c.l.b16 %v6434
        %v6827 = vunpack.c.h.b16 %v6434
        %v6828 = vunpack.c.l.b16 %v6435
        %v6829 = vunpack.c.h.b16 %v6435
        %v6830 = vunpack.c.l.b16 %v6436
        %v6831 = vunpack.c.h.b16 %v6436
        %v6832 = vunpack.c.l.b16 %v6437
        %v6833 = vunpack.c.h.b16 %v6437
        %v6834 = vpack.c.b16 %v6580, %v6578
        %v6835 = vpack.c.b16 %v6581, %v6579
        %v6836 = vpack.c.b16 %v6584, %v6582
        %v6837 = vpack.c.b16 %v6585, %v6583
        %v6838 = vpack.c.b16 %v6588, %v6586
        %v6839 = vpack.c.b16 %v6589, %v6587
        %v6840 = vpack.c.b16 %v6592, %v6590
        %v6841 = vpack.c.b16 %v6593, %v6591
        %v6842 = vpack.c.b16 %v6596, %v6594
        %v6843 = vpack.c.b16 %v6597, %v6595
        %v6844 = vpack.c.b16 %v6600, %v6598
        %v6845 = vpack.c.b16 %v6601, %v6599
        %v6846 = vpack.c.b16 %v6604, %v6602
        %v6847 = vpack.c.b16 %v6605, %v6603
        %v6848 = vpack.c.b16 %v6608, %v6606
        %v6849 = vpack.c.b16 %v6609, %v6607
        %v6850 = vpack.c.b16 %v6612, %v6610
        %v6851 = vpack.c.b16 %v6613, %v6611
        %v6852 = vpack.c.b16 %v6616, %v6614
        %v6853 = vpack.c.b16 %v6617, %v6615
        %v6854 = vpack.c.b16 %v6620, %v6618
        %v6855 = vpack.c.b16 %v6621, %v6619
        %v6856 = vpack.c.b16 %v6624, %v6622
        %v6857 = vpack.c.b16 %v6625, %v6623
        %v6858 = vpack.c.b16 %v6628, %v6626
        %v6859 = vpack.c.b16 %v6629, %v6627
        %v6860 = vpack.c.b16 %v6632, %v6630
        %v6861 = vpack.c.b16 %v6633, %v6631
        %v6862 = vpack.c.b16 %v6636, %v6634
        %v6863 = vpack.c.b16 %v6637, %v6635
        %v6864 = vpack.c.b16 %v6640, %v6638
        %v6865 = vpack.c.b16 %v6641, %v6639
        %v6866 = vpack.c.b16 %v6644, %v6642
        %v6867 = vpack.c.b16 %v6645, %v6643
        %v6868 = vpack.c.b16 %v6648, %v6646
        %v6869 = vpack.c.b16 %v6649, %v6647
        %v6870 = vpack.c.b16 %v6652, %v6650
        %v6871 = vpack.c.b16 %v6653, %v6651
        %v6872 = vpack.c.b16 %v6656, %v6654
        %v6873 = vpack.c.b16 %v6657, %v6655
        %v6874 = vpack.c.b16 %v6660, %v6658
        %v6875 = vpack.c.b16 %v6661, %v6659
        %v6876 = vpack.c.b16 %v6664, %v6662
        %v6877 = vpack.c.b16 %v6665, %v6663
        %v6878 = vpack.c.b16 %v6668, %v6666
        %v6879 = vpack.c.b16 %v6669, %v6667
        %v6880 = vpack.c.b16 %v6672, %v6670
        %v6881 = vpack.c.b16 %v6673, %v6671
        %v6882 = vpack.c.b16 %v6676, %v6674
        %v6883 = vpack.c.b16 %v6677, %v6675
        %v6884 = vpack.c.b16 %v6680, %v6678
        %v6885 = vpack.c.b16 %v6681, %v6679
        %v6886 = vpack.c.b16 %v6684, %v6682
        %v6887 = vpack.c.b16 %v6685, %v6683
        %v6888 = vpack.c.b16 %v6688, %v6686
        %v6889 = vpack.c.b16 %v6689, %v6687
        %v6890 = vpack.c.b16 %v6692, %v6690
        %v6891 = vpack.c.b16 %v6693, %v6691
        %v6892 = vpack.c.b16 %v6696, %v6694
        %v6893 = vpack.c.b16 %v6697, %v6695
        %v6894 = vpack.c.b16 %v6700, %v6698
        %v6895 = vpack.c.b16 %v6701, %v6699
        %v6896 = vpack.c.b16 %v6704, %v6702
        %v6897 = vpack.c.b16 %v6705, %v6703
        %v6898 = vpack.c.b16 %v6708, %v6706
        %v6899 = vpack.c.b16 %v6709, %v6707
        %v6900 = vpack.c.b16 %v6712, %v6710
        %v6901 = vpack.c.b16 %v6713, %v6711
        %v6902 = vpack.c.b16 %v6716, %v6714
        %v6903 = vpack.c.b16 %v6717, %v6715
        %v6904 = vpack.c.b16 %v6720, %v6718
        %v6905 = vpack.c.b16 %v6721, %v6719
        %v6906 = vpack.c.b16 %v6724, %v6722
        %v6907 = vpack.c.b16 %v6725, %v6723
        %v6908 = vpack.c.b16 %v6728, %v6726
        %v6909 = vpack.c.b16 %v6729, %v6727
        %v6910 = vpack.c.b16 %v6732, %v6730
        %v6911 = vpack.c.b16 %v6733, %v6731
        %v6912 = vpack.c.b16 %v6736, %v6734
        %v6913 = vpack.c.b16 %v6737, %v6735
        %v6914 = vpack.c.b16 %v6740, %v6738
        %v6915 = vpack.c.b16 %v6741, %v6739
        %v6916 = vpack.c.b16 %v6744, %v6742
        %v6917 = vpack.c.b16 %v6745, %v6743
        %v6918 = vpack.c.b16 %v6748, %v6746
        %v6919 = vpack.c.b16 %v6749, %v6747
        %v6920 = vpack.c.b16 %v6752, %v6750
        %v6921 = vpack.c.b16 %v6753, %v6751
        %v6922 = vpack.c.b16 %v6756, %v6754
        %v6923 = vpack.c.b16 %v6757, %v6755
        %v6924 = vpack.c.b16 %v6760, %v6758
        %v6925 = vpack.c.b16 %v6761, %v6759
        %v6926 = vpack.c.b16 %v6764, %v6762
        %v6927 = vpack.c.b16 %v6765, %v6763
        %v6928 = vpack.c.b16 %v6768, %v6766
        %v6929 = vpack.c.b16 %v6769, %v6767
        %v6930 = vpack.c.b16 %v6772, %v6770
        %v6931 = vpack.c.b16 %v6773, %v6771
        %v6932 = vpack.c.b16 %v6776, %v6774
        %v6933 = vpack.c.b16 %v6777, %v6775
        %v6934 = vpack.c.b16 %v6780, %v6778
        %v6935 = vpack.c.b16 %v6781, %v6779
        %v6936 = vpack.c.b16 %v6784, %v6782
        %v6937 = vpack.c.b16 %v6785, %v6783
        %v6938 = vpack.c.b16 %v6788, %v6786
        %v6939 = vpack.c.b16 %v6789, %v6787
        %v6940 = vpack.c.b16 %v6792, %v6790
        %v6941 = vpack.c.b16 %v6793, %v6791
        %v6942 = vpack.c.b16 %v6796, %v6794
        %v6943 = vpack.c.b16 %v6797, %v6795
        %v6944 = vpack.c.b16 %v6800, %v6798
        %v6945 = vpack.c.b16 %v6801, %v6799
        %v6946 = vpack.c.b16 %v6804, %v6802
        %v6947 = vpack.c.b16 %v6805, %v6803
        %v6948 = vpack.c.b16 %v6808, %v6806
        %v6949 = vpack.c.b16 %v6809, %v6807
        %v6950 = vpack.c.b16 %v6812, %v6810
        %v6951 = vpack.c.b16 %v6813, %v6811
        %v6952 = vpack.c.b16 %v6816, %v6814
        %v6953 = vpack.c.b16 %v6817, %v6815
        %v6954 = vpack.c.b16 %v6820, %v6818
        %v6955 = vpack.c.b16 %v6821, %v6819
        %v6956 = vpack.c.b16 %v6824, %v6822
        %v6957 = vpack.c.b16 %v6825, %v6823
        %v6958 = vpack.c.b16 %v6828, %v6826
        %v6959 = vpack.c.b16 %v6829, %v6827
        %v6960 = vpack.c.b16 %v6832, %v6830
        %v6961 = vpack.c.b16 %v6833, %v6831
        %7090 = vmatprep.subr.bf16.mxu0 %v6835
        %7091 = vmatpush1.bf16.msra.mxu0 %v6834
        %7092 = vmatprep.subr.bf16.mxu0 %v6837
        %7093 = vmatpush1.bf16.msra.mxu0 %v6836
        %7094 = vmatprep.subr.bf16.mxu0 %v6839
        %7095 = vmatpush1.bf16.msra.mxu0 %v6838
        %7096 = vmatprep.subr.bf16.mxu0 %v6841
        %7097 = vmatpush1.bf16.msra.mxu0 %v6840
        %7098 = vmatprep.subr.bf16.mxu0 %v6843
        %7099 = vmatpush1.bf16.msra.mxu0 %v6842
        %7100 = vmatprep.subr.bf16.mxu0 %v6845
        %7101 = vmatpush1.bf16.msra.mxu0 %v6844
        %7102 = vmatprep.subr.bf16.mxu0 %v6847
        %7103 = vmatpush1.bf16.msra.mxu0 %v6846
        %7104 = vmatprep.subr.bf16.mxu0 %v6849
        %7105 = vmatpush1.bf16.msra.mxu0 %v6848
        %7106 = vmatprep.subr.bf16.mxu0 %v6851
        %7107 = vmatpush1.bf16.msra.mxu0 %v6850
        %7108 = vmatprep.subr.bf16.mxu0 %v6853
        %7109 = vmatpush1.bf16.msra.mxu0 %v6852
        %7110 = vmatprep.subr.bf16.mxu0 %v6855
        %7111 = vmatpush1.bf16.msra.mxu0 %v6854
        %7112 = vmatprep.subr.bf16.mxu0 %v6857
        %7113 = vmatpush1.bf16.msra.mxu0 %v6856
        %7114 = vmatprep.subr.bf16.mxu0 %v6859
        %7115 = vmatpush1.bf16.msra.mxu0 %v6858
        %7116 = vmatprep.subr.bf16.mxu0 %v6861
        %7117 = vmatpush1.bf16.msra.mxu0 %v6860
        %7118 = vmatprep.subr.bf16.mxu0 %v6863
        %7119 = vmatpush1.bf16.msra.mxu0 %v6862
        %7120 = vmatprep.subr.bf16.mxu0 %v6865
        %7121 = vmatpush1.bf16.msra.mxu0 %v6864
        %7122 = vmatprep.mubr.bf16.mxu0 %v6303
        %7123 = vmatmul.mubr.bf16.gmra.mrb[0].mxu0 %v6302
        %v7124 = vpop.f32.mrb[0].mxu0
        %v7125 = vadd.f32 %v6443, %v7124
        %v7126 = vpop.f32.mrb[0].mxu0
        %v7127 = vadd.f32 %v6447, %v7126
        %v7128 = vpop.f32.mrb[0].mxu0
        %v7129 = vpop.f32.mrb[0].mxu0
        %7130 = vdwg.mxu0
        %7131 = vmatprep.subr.bf16.mxu0 %v6867
        %7132 = vmatpush1.bf16.msra.mxu0 %v6866
        %7133 = vmatprep.subr.bf16.mxu0 %v6869
        %7134 = vmatpush1.bf16.msra.mxu0 %v6868
        %7135 = vmatprep.subr.bf16.mxu0 %v6871
        %7136 = vmatpush1.bf16.msra.mxu0 %v6870
        %7137 = vmatprep.subr.bf16.mxu0 %v6873
        %7138 = vmatpush1.bf16.msra.mxu0 %v6872
        %7139 = vmatprep.subr.bf16.mxu0 %v6875
        %7140 = vmatpush1.bf16.msra.mxu0 %v6874
        %7141 = vmatprep.subr.bf16.mxu0 %v6877
        %7142 = vmatpush1.bf16.msra.mxu0 %v6876
        %7143 = vmatprep.subr.bf16.mxu0 %v6879
        %7144 = vmatpush1.bf16.msra.mxu0 %v6878
        %7145 = vmatprep.subr.bf16.mxu0 %v6881
        %7146 = vmatpush1.bf16.msra.mxu0 %v6880
        %7147 = vmatprep.subr.bf16.mxu0 %v6883
        %7148 = vmatpush1.bf16.msra.mxu0 %v6882
        %7149 = vmatprep.subr.bf16.mxu0 %v6885
        %7150 = vmatpush1.bf16.msra.mxu0 %v6884
        %7151 = vmatprep.subr.bf16.mxu0 %v6887
        %7152 = vmatpush1.bf16.msra.mxu0 %v6886
        %7153 = vmatprep.subr.bf16.mxu0 %v6889
        %7154 = vmatpush1.bf16.msra.mxu0 %v6888
        %7155 = vmatprep.subr.bf16.mxu0 %v6891
        %7156 = vmatpush1.bf16.msra.mxu0 %v6890
        %7157 = vmatprep.subr.bf16.mxu0 %v6893
        %7158 = vmatpush1.bf16.msra.mxu0 %v6892
        %7159 = vmatprep.subr.bf16.mxu0 %v6895
        %7160 = vmatpush1.bf16.msra.mxu0 %v6894
        %7161 = vmatprep.subr.bf16.mxu0 %v6897
        %7162 = vmatpush1.bf16.msra.mxu0 %v6896
        %7163 = vmatprep.mubr.bf16.mxu0 %v6305
        %7164 = vmatmul.mubr.bf16.gmra.mrb[0].mxu0 %v6304
        %v7165 = vpop.f32.mrb[0].mxu0
        %v7166 = vadd.f32 %v7125, %v7165
        %v7167 = vpop.f32.mrb[0].mxu0
        %v7168 = vadd.f32 %v7127, %v7167
        %v7169 = vpop.f32.mrb[0].mxu0
        %v7170 = vpop.f32.mrb[0].mxu0
        %7171 = vdwg.mxu0
        %7172 = vmatprep.subr.bf16.mxu0 %v6899
        %7173 = vmatpush1.bf16.msra.mxu0 %v6898
        %7174 = vmatprep.subr.bf16.mxu0 %v6901
        %7175 = vmatpush1.bf16.msra.mxu0 %v6900
        %7176 = vmatprep.subr.bf16.mxu0 %v6903
        %7177 = vmatpush1.bf16.msra.mxu0 %v6902
        %7178 = vmatprep.subr.bf16.mxu0 %v6905
        %7179 = vmatpush1.bf16.msra.mxu0 %v6904
        %7180 = vmatprep.subr.bf16.mxu0 %v6907
        %7181 = vmatpush1.bf16.msra.mxu0 %v6906
        %7182 = vmatprep.subr.bf16.mxu0 %v6909
        %7183 = vmatpush1.bf16.msra.mxu0 %v6908
        %7184 = vmatprep.subr.bf16.mxu0 %v6911
        %7185 = vmatpush1.bf16.msra.mxu0 %v6910
        %7186 = vmatprep.subr.bf16.mxu0 %v6913
        %7187 = vmatpush1.bf16.msra.mxu0 %v6912
        %7188 = vmatprep.subr.bf16.mxu0 %v6915
        %7189 = vmatpush1.bf16.msra.mxu0 %v6914
        %7190 = vmatprep.subr.bf16.mxu0 %v6917
        %7191 = vmatpush1.bf16.msra.mxu0 %v6916
        %7192 = vmatprep.subr.bf16.mxu0 %v6919
        %7193 = vmatpush1.bf16.msra.mxu0 %v6918
        %7194 = vmatprep.subr.bf16.mxu0 %v6921
        %7195 = vmatpush1.bf16.msra.mxu0 %v6920
        %7196 = vmatprep.subr.bf16.mxu0 %v6923
        %7197 = vmatpush1.bf16.msra.mxu0 %v6922
        %7198 = vmatprep.subr.bf16.mxu0 %v6925
        %7199 = vmatpush1.bf16.msra.mxu0 %v6924
        %7200 = vmatprep.subr.bf16.mxu0 %v6927
        %7201 = vmatpush1.bf16.msra.mxu0 %v6926
        %7202 = vmatprep.subr.bf16.mxu0 %v6929
        %7203 = vmatpush1.bf16.msra.mxu0 %v6928
        %7204 = vmatprep.mubr.bf16.mxu0 %v6307
        %7205 = vmatmul.mubr.bf16.gmra.mrb[0].mxu0 %v6306
        %v7206 = vpop.f32.mrb[0].mxu0
        %v7207 = vadd.f32 %v7166, %v7206
        %v7208 = vpop.f32.mrb[0].mxu0
        %v7209 = vadd.f32 %v7168, %v7208
        %v7210 = vpop.f32.mrb[0].mxu0
        %v7211 = vpop.f32.mrb[0].mxu0
        %7212 = vdwg.mxu0
        %7213 = vmatprep.subr.bf16.mxu0 %v6931
        %7214 = vmatpush1.bf16.msra.mxu0 %v6930
        %7215 = vmatprep.subr.bf16.mxu0 %v6933
        %7216 = vmatpush1.bf16.msra.mxu0 %v6932
        %7217 = vmatprep.subr.bf16.mxu0 %v6935
        %7218 = vmatpush1.bf16.msra.mxu0 %v6934
        %7219 = vmatprep.subr.bf16.mxu0 %v6937
        %7220 = vmatpush1.bf16.msra.mxu0 %v6936
        %7221 = vmatprep.subr.bf16.mxu0 %v6939
        %7222 = vmatpush1.bf16.msra.mxu0 %v6938
        %7223 = vmatprep.subr.bf16.mxu0 %v6941
        %7224 = vmatpush1.bf16.msra.mxu0 %v6940
        %7225 = vmatprep.subr.bf16.mxu0 %v6943
        %7226 = vmatpush1.bf16.msra.mxu0 %v6942
        %7227 = vmatprep.subr.bf16.mxu0 %v6945
        %7228 = vmatpush1.bf16.msra.mxu0 %v6944
        %7229 = vmatprep.subr.bf16.mxu0 %v6947
        %7230 = vmatpush1.bf16.msra.mxu0 %v6946
        %7231 = vmatprep.subr.bf16.mxu0 %v6949
        %7232 = vmatpush1.bf16.msra.mxu0 %v6948
        %7233 = vmatprep.subr.bf16.mxu0 %v6951
        %7234 = vmatpush1.bf16.msra.mxu0 %v6950
        %7235 = vmatprep.subr.bf16.mxu0 %v6953
        %7236 = vmatpush1.bf16.msra.mxu0 %v6952
        %7237 = vmatprep.subr.bf16.mxu0 %v6955
        %7238 = vmatpush1.bf16.msra.mxu0 %v6954
        %7239 = vmatprep.subr.bf16.mxu0 %v6957
        %7240 = vmatpush1.bf16.msra.mxu0 %v6956
        %7241 = vmatprep.subr.bf16.mxu0 %v6959
        %7242 = vmatpush1.bf16.msra.mxu0 %v6958
        %7243 = vmatprep.subr.bf16.mxu0 %v6961
        %7244 = vmatpush1.bf16.msra.mxu0 %v6960
        %7245 = vmatprep.mubr.bf16.mxu0 %v6309
        %7246 = vmatmul.mubr.bf16.gmra.mrb[0].mxu0 %v6308
        %v7247 = vpop.f32.mrb[0].mxu0
        %v7248 = vadd.f32 %v7207, %v7247
        %v7249 = vpop.f32.mrb[0].mxu0
        %v7250 = vadd.f32 %v7209, %v7249
        %v7251 = vpop.f32.mrb[0].mxu0
        %v7252 = vpop.f32.mrb[0].mxu0
        %7253 = vdwg.mxu0
        %v7256 = vcombine.low %v7248, %v7250
        %v7258 = vunpack.c.l.s4 1983009808
        %v7259 = vunpack.c.0.s8 %v7258
        %v7260 = vlaneseq
        %v7261 = vshrl.u32 %v7260, 7
        %v7262 = vsub.s32 %v7259, %v7261
        %v7263 = vrot.slane %v7256, %v7262
        %7265 = vst [vmem:[%s515] sm:$0xf] %v7263
        %s7266 = sand.u32 %s266, 1
        %s7267 = scalar_lea.sflag [#allocation4], %s7266
        %s7268 = sand.u32 %s266, 1
        %s7269 = smul.addr %s7268, 4
        %s7270 = scalar_lea.vmem [#allocation17], %s7269
        // Predicated region
        $region93: #{tpu_custom_call.1} parent=55 // pred_check
          %p7271 = pneg %p276
        $region94: #{tpu_custom_call.1} parent=55 // pred_check_branch
          %7273 = sbr.rel (%p7271) target = $region96
        $region95: #{tpu_custom_call.1} parent=55 // pred_region
          %s7274 = smul.u32 2, %s35
          %s7276 = ssub.s32 64, 64
          %7277 = vsyncadd %s7267, %s7276
          %s7278 = smul.addr %s34, 4
          %s7279 = sadd.s32 %s7274, %s7278
          %s7280 = smul.addr %s7279, 32
          %s7281 = scalar_lea.hbm %s9, %s7280
          %s7283 = sshll.u32 %s7270, 4
          %s7284 = int_to_ptr.vmem [resolvable:$true] %s7283
          %7286 = dma.vmem_to_hbm [thread:$0]  %s7284, 64, %s7281, %s7267
        $region96: #{tpu_custom_call.1} parent=55 // pred_fallthru
          _
      $region56: #{tpu_custom_call.1} parent=5 // pred_fallthru
        _
      %p7287 = scmp.le.s32.totalorder 2, %s25
      // Predicated region
      $region97: #{tpu_custom_call.1} parent=5 // pred_check
        %p7288 = pneg %p7287
      $region98: #{tpu_custom_call.1} parent=5 // pred_check_branch
        %7290 = sbr.rel (%p7288) target = $region100
      $region99: #{tpu_custom_call.1} parent=5 // pred_region
        %s7291 = ssub.s32 %s25, 2
        // Predicated region
        $region101: #{tpu_custom_call.1} parent=99 // pred_check
          %p7292 = pneg %p282
        $region102: #{tpu_custom_call.1} parent=99 // pred_check_branch
          %7294 = sbr.rel (%p7292) target = $region104
        $region103: #{tpu_custom_call.1} parent=99 // pred_region
          %s7295 = sand.u32 %s267, 1
          %s7296 = scalar_lea.sflag [#allocation4], %s7295
          %s7297 = sand.u32 %s267, 1
          %s7298 = smul.addr %s7297, 4
          %s7299 = scalar_lea.vmem [#allocation17], %s7298
          %7300 = dma.done %s7296, 64
        $region104: #{tpu_custom_call.1} parent=99 // pred_fallthru
          _
      $region100: #{tpu_custom_call.1} parent=5 // pred_fallthru
        _
    $region6: #{tpu_custom_call.1} parent=1 // loop_footer
      %s29 = sadd.s32 1, %s25
    $region7: #{tpu_custom_call.1} parent=1 // loop_footer_branch
      %24 = sbr.rel target = $region3
    $region8: #{tpu_custom_call.1} parent=1 // loop_exit
      _
    %7301 = vsyncpa [#allocation3], 1
    %s7302 = scalar_lea.sflag [#allocation3], 1
    %7303 = vsyncpa %s7302, 1
    %7304 = vsyncpa [#allocation6], 1
    %7305 = vsyncpa [#allocation9], 1
    %7306 = vsyncpa [#allocation12], 1
    %7307 = vsyncpa [#allocation15], 1
    %s7308 = scalar_lea.sflag [#allocation15], 1
    %7309 = vsyncpa %s7308, 1
    %7310 = vsyncpa [#allocation4], 1
    %s7311 = scalar_lea.sflag [#allocation4], 1
    %7312 = vsyncpa %s7311, 1

</llo_original>
